<compile_context>
chip_gen: v7x
topology: tpu7x:2x2x1
jax: 0.10.0
libtpu: 0.0.40
codegen_flags: <defaults>
</compile_context>

<pallas_src>
import jax
import jax.numpy as jnp
from jax.experimental import pallas as pl
from jax.experimental.pallas import tpu as pltpu

D_MODEL = 32
HEADS = 4
DK = D_MODEL // HEADS
D_FF = 64
EPS = 1e-6
NEG_INF = -1e18
SCALE = 1.0 / float(DK) ** 0.5
SUBLANE = 8  # f32 sublane tile height

# Lane spans inside the packed (32, 320) weight slab.
W_SA_QKV = (0, 96)
W_SA_O = (96, 128)
W_CA_Q = (128, 160)
W_CA_KV = (160, 224)
W_CA_O = (224, 256)
W_FF_W1 = (256, 320)

# (row, width) inside the packed (13, 96) bias / LayerNorm slab.
B_LN1_G, B_LN1_B = (0, 32), (1, 32)
B_SA_QKV, B_SA_O = (2, 96), (3, 32)
B_LN2_G, B_LN2_B = (4, 32), (5, 32)
B_CA_Q, B_CA_KV, B_CA_O = (6, 32), (7, 64), (8, 32)
B_FF_LN_G, B_FF_LN_B = (9, 32), (10, 32)
B_FF_B1, B_FF_B2 = (11, 64), (12, 32)


# --------------------------------------------------------------------------
# In-kernel helpers
# --------------------------------------------------------------------------
def _ln(x, g, b):
    mean = jnp.mean(x, axis=-1, keepdims=True)
    var = jnp.mean((x - mean) ** 2, axis=-1, keepdims=True)
    return (x - mean) * jax.lax.rsqrt(var + EPS) * g + b


def _gelu(x):
    # PreSumm's gelu (tanh approximation)
    return 0.5 * x * (1.0 + jnp.tanh(
        jnp.sqrt(2.0 / jnp.pi) * (x + 0.044715 * x * x * x)))


def _attention(q2, k2, v2, bias, wo, bo, bb, tq, tk):
    """Multi-head attention over a folded batch block.

    q2: (bb*tq, D), k2/v2: (bb*tk, D), bias: (bb, tq, tk) additive f32
    (0 for keep, -1e18 for masked), reused by every head.
    """
    q3 = q2.reshape(bb, tq, D_MODEL)
    k3 = k2.reshape(bb, tk, D_MODEL)
    v3 = v2.reshape(bb, tk, D_MODEL)
    ctx_heads = []
    for h in range(HEADS):
        lo, hi = h * DK, (h + 1) * DK
        s = jnp.einsum('bqd,bkd->bqk', q3[..., lo:hi], k3[..., lo:hi],
                       preferred_element_type=jnp.float32)
        s = s + bias
        s = s - jnp.max(s, axis=-1, keepdims=True)
        e = jnp.exp(s)
        a = e * pl.reciprocal(jnp.sum(e, axis=-1, keepdims=True), approx=True)
        ctx_heads.append(jnp.einsum('bqk,bkd->bqd', a, v3[..., lo:hi],
                                    preferred_element_type=jnp.float32))
    ctx = jnp.concatenate(ctx_heads, axis=-1).reshape(bb * tq, D_MODEL)
    return jnp.dot(ctx, wo, preferred_element_type=jnp.float32) + bo


# --------------------------------------------------------------------------
# Fused decoder-layer kernel (one batch block per grid step)
# --------------------------------------------------------------------------
def _decoder_layer_kernel(x_ref, mem_ref, tpad_ref, spad_ref,
                          w_ref, ffw2_ref, b_ref, out_ref):
    bb, tq, dm = x_ref.shape
    tk = mem_ref.shape[1]
    bt = bb * tq

    def wcols(span):
        lo, hi = span
        return w_ref[:, lo:hi]

    def bvec(span):
        row, width = span
        return b_ref[row:row + 1, :width]

    x2 = x_ref[...].reshape(bt, dm)
    mem2 = mem_ref[...].reshape(bb * tk, dm)

    # Additive attention biases (built once, shared across all heads).
    rows = jax.lax.broadcasted_iota(jnp.int32, (tq, tq), 0)
    cols = jax.lax.broadcasted_iota(jnp.int32, (tq, tq), 1)
    causal = (cols > rows)[None, :, :]
    dec_bias = jnp.where(jnp.logical_or(tpad_ref[...] > 0, causal),
                         jnp.float32(NEG_INF), jnp.float32(0.0))
    src_bias = jnp.where(spad_ref[...] > 0,
                         jnp.float32(NEG_INF), jnp.float32(0.0))

    # layer_norm_1 -> self-attention (fused QKV projection) -> residual
    input_norm = _ln(x2, bvec(B_LN1_G), bvec(B_LN1_B))
    qkv = jnp.dot(input_norm, wcols(W_SA_QKV),
                  preferred_element_type=jnp.float32) + bvec(B_SA_QKV)
    self_out = _attention(qkv[:, 0:D_MODEL] * SCALE,
                          qkv[:, D_MODEL:2 * D_MODEL],
                          qkv[:, 2 * D_MODEL:3 * D_MODEL],
                          dec_bias, wcols(W_SA_O), bvec(B_SA_O), bb, tq, tq)
    query = self_out + x2

    # layer_norm_2 -> context attention over memory bank (fused KV) -> residual
    query_norm = _ln(query, bvec(B_LN2_G), bvec(B_LN2_B))
    qc = (jnp.dot(query_norm, wcols(W_CA_Q),
                  preferred_element_type=jnp.float32) + bvec(B_CA_Q)) * SCALE
    kv = jnp.dot(mem2, wcols(W_CA_KV),
                 preferred_element_type=jnp.float32) + bvec(B_CA_KV)
    ctx_out = _attention(qc, kv[:, 0:D_MODEL], kv[:, D_MODEL:2 * D_MODEL],
                         src_bias, wcols(W_CA_O), bvec(B_CA_O), bb, tq, tk)
    ff_in = ctx_out + query

    # PositionwiseFeedForward: LN -> W1 -> gelu -> W2 -> +residual
    xn = _ln(ff_in, bvec(B_FF_LN_G), bvec(B_FF_LN_B))
    inter = _gelu(jnp.dot(xn, wcols(W_FF_W1),
                          preferred_element_type=jnp.float32) + bvec(B_FF_B1))
    out = jnp.dot(inter, ffw2_ref[...],
                  preferred_element_type=jnp.float32) + bvec(B_FF_B2) + ff_in

    # Single lane-dense store: [ output | all_input ]
    merged = jnp.concatenate([out, input_norm], axis=-1)
    out_ref[...] = merged.reshape(bb, tq, 2 * dm).astype(out_ref.dtype)


# --------------------------------------------------------------------------
# Parameter packing (3 slabs)
# --------------------------------------------------------------------------
def _pack_params(params):
    sa, ca, ff = params["self_attn"], params["ctx_attn"], params["ffn"]
    w_slab = jnp.concatenate(
        [sa["wq"], sa["wk"], sa["wv"], sa["wo"],
         ca["wq"], ca["wk"], ca["wv"], ca["wo"], ff["w1"]],
        axis=1).astype(jnp.float32)                       # (32, 320)
    ff_w2 = ff["w2"].astype(jnp.float32)                  # (64, 32)

    def row(vec):
        v = jnp.asarray(vec, jnp.float32).reshape(-1)
        return jnp.pad(v, (0, 96 - v.shape[0]))[None, :]

    b_slab = jnp.concatenate([
        row(params["ln1_g"]), row(params["ln1_b"]),
        row(jnp.concatenate([sa["bq"], sa["bk"], sa["bv"]])), row(sa["bo"]),
        row(params["ln2_g"]), row(params["ln2_b"]),
        row(ca["bq"]), row(jnp.concatenate([ca["bk"], ca["bv"]])), row(ca["bo"]),
        row(ff["ln_g"]), row(ff["ln_b"]), row(ff["b1"]), row(ff["b2"]),
    ], axis=0)                                            # (13, 96)
    return w_slab, ff_w2, b_slab


# --------------------------------------------------------------------------
# Wrapper
# --------------------------------------------------------------------------
def _round_up(n, m):
    return (n + m - 1) // m * m


def _batch_block(b):
    for bb in (8, 4, 2, 1):
        if b % bb == 0:
            return bb
    return 1


def _cost_estimate(b, tq, tk):
    d, dff, h, dk = D_MODEL, D_FF, HEADS, DK
    flops = 2 * b * (tq * d * 3 * d            # self fused QKV
                     + 2 * h * tq * tq * dk    # self scores + context
                     + tq * d * d              # self out proj
                     + tq * d * d              # ctx q proj
                     + tk * d * 2 * d          # ctx fused KV proj
                     + 2 * h * tq * tk * dk    # ctx scores + context
                     + tq * d * d              # ctx out proj
                     + 2 * tq * d * dff)       # FFN
    transcendentals = b * (h * tq * (tq + tk) + tq * dff + 3 * tq)
    bytes_accessed = 4 * (b * (2 * tq * d + tk * d + tq * tq + tq * tk
                               + 2 * tq * d)
                          + 32 * 320 + 64 * 32 + 13 * 96)
    return pl.CostEstimate(flops=flops, transcendentals=transcendentals,
                           bytes_accessed=bytes_accessed)


@jax.jit
def transformer_decoder_layer(params, inputs, memory_bank,
                              src_pad_mask, tgt_pad_mask):
    """previous_input=None, layer_cache=None, step=None path."""
    B, Tq, Dm = inputs.shape
    Tk = memory_bank.shape[1]
    # Pad sequence axes to sublane multiples; padded key positions are masked
    # out and padded query rows are sliced off, so real rows are unchanged.
    Tqp, Tkp = _round_up(Tq, SUBLANE), _round_up(Tk, SUBLANE)

    x = jnp.pad(inputs.astype(jnp.float32), ((0, 0), (0, Tqp - Tq), (0, 0)))
    mem = jnp.pad(memory_bank.astype(jnp.float32),
                  ((0, 0), (0, Tkp - Tk), (0, 0)))
    tpad = jnp.pad(tgt_pad_mask.astype(jnp.int32),
                   ((0, 0), (0, Tqp - Tq), (0, Tqp - Tq)), constant_values=1)
    spad = jnp.pad(src_pad_mask.astype(jnp.int32),
                   ((0, 0), (0, Tqp - Tq), (0, Tkp - Tk)), constant_values=1)

    w_slab, ff_w2, b_slab = _pack_params(params)

    BB = _batch_block(B)
    grid = (B // BB,)

    merged = pl.pallas_call(
        _decoder_layer_kernel,
        grid=grid,
        in_specs=[
            pl.BlockSpec((BB, Tqp, Dm), lambda i: (i, 0, 0)),
            pl.BlockSpec((BB, Tkp, Dm), lambda i: (i, 0, 0)),
            pl.BlockSpec((BB, Tqp, Tqp), lambda i: (i, 0, 0)),
            pl.BlockSpec((BB, Tqp, Tkp), lambda i: (i, 0, 0)),
            # Packed weight slabs: full blocks with constant index maps ->
            # fetched once and resident in VMEM across all grid steps.
            pl.BlockSpec((32, 320), lambda i: (0, 0)),
            pl.BlockSpec((64, 32), lambda i: (0, 0)),
            pl.BlockSpec((13, 96), lambda i: (0, 0)),
        ],
        out_specs=pl.BlockSpec((BB, Tqp, 2 * Dm), lambda i: (i, 0, 0)),
        out_shape=jax.ShapeDtypeStruct((B, Tqp, 2 * Dm), jnp.float32),
        compiler_params=pltpu.CompilerParams(
            dimension_semantics=("parallel",),
            vmem_limit_bytes=32 * 1024 * 1024),
        cost_estimate=_cost_estimate(B, Tqp, Tkp),
    )(x, mem, tpad, spad, w_slab, ff_w2, b_slab)

    out = merged[:, :Tq, :Dm]
    all_input = merged[:, :Tq, Dm:]
    return out, all_input


# --------------------------------------------------------------------------
# Deterministic parameter init (synthetic; shapes follow the PyTorch module)
# --------------------------------------------------------------------------
def init_params(key):
    keys = iter(jax.random.split(key, 32))

    def lin(d_in, d_out):
        w = 0.05 * jax.random.normal(next(keys), (d_in, d_out), jnp.float32)
        b = 0.01 * jax.random.normal(next(keys), (d_out,), jnp.float32)
        return w, b

    def mha():
        wq, bq = lin(D_MODEL, D_MODEL)
        wk, bk = lin(D_MODEL, D_MODEL)
        wv, bv = lin(D_MODEL, D_MODEL)
        wo, bo = lin(D_MODEL, D_MODEL)
        return dict(wq=wq, bq=bq, wk=wk, bk=bk, wv=wv, bv=bv, wo=wo, bo=bo)

    w1, b1 = lin(D_MODEL, D_FF)
    w2, b2 = lin(D_FF, D_MODEL)
    return {
        "self_attn": mha(),
        "ctx_attn": mha(),
        "ffn": dict(w1=w1, b1=b1, w2=w2, b2=b2,
                    ln_g=jnp.ones((D_MODEL,), jnp.float32),
                    ln_b=jnp.zeros((D_MODEL,), jnp.float32)),
        "ln1_g": jnp.ones((D_MODEL,), jnp.float32),
        "ln1_b": jnp.zeros((D_MODEL,), jnp.float32),
        "ln2_g": jnp.ones((D_MODEL,), jnp.float32),
        "ln2_b": jnp.zeros((D_MODEL,), jnp.float32),
    }


# --------------------------------------------------------------------------
# Pure-JAX reference (for validation only)
# --------------------------------------------------------------------------
def _ref_forward(params, inputs, memory_bank, src_pad_mask, tgt_pad_mask):
    def ln(x, g, b):
        m = x.mean(-1, keepdims=True)
        v = ((x - m) ** 2).mean(-1, keepdims=True)
        return (x - m) / jnp.sqrt(v + EPS) * g + b

    def gelu(x):
        return 0.5 * x * (1.0 + jnp.tanh(
            jnp.sqrt(2.0 / jnp.pi) * (x + 0.044715 * x ** 3)))

    def mha(p, k_in, v_in, q_in, mask):
        B, Tq, Dm = q_in.shape
        Tk = k_in.shape[1]
        dk = Dm // HEADS

        def proj(x, w, b, T):
            return (x @ w + b).reshape(B, T, HEADS, dk).transpose(0, 2, 1, 3)

        q = proj(q_in, p["wq"], p["bq"], Tq) / jnp.sqrt(jnp.float32(dk))
        k = proj(k_in, p["wk"], p["bk"], Tk)
        v = proj(v_in, p["wv"], p["bv"], Tk)
        s = q @ k.transpose(0, 1, 3, 2)
        s = jnp.where(mask[:, None, :, :], jnp.float32(-1e18), s)
        a = jax.nn.softmax(s, axis=-1)
        ctx = (a @ v).transpose(0, 2, 1, 3).reshape(B, Tq, Dm)
        return ctx @ p["wo"] + p["bo"]

    B, T, Dm = inputs.shape
    subsequent = jnp.triu(jnp.ones((1, T, T), jnp.int32), k=1)
    dec_mask = (tgt_pad_mask.astype(jnp.int32) + subsequent) > 0

    input_norm = ln(inputs, params["ln1_g"], params["ln1_b"])
    query = mha(params["self_attn"], input_norm, input_norm, input_norm, dec_mask)
    query = query + inputs
    query_norm = ln(query, params["ln2_g"], params["ln2_b"])
    mid = mha(params["ctx_attn"], memory_bank, memory_bank, query_norm, src_pad_mask)
    x = mid + query
    p = params["ffn"]
    out = (gelu(ln(x, p["ln_g"], p["ln_b"]) @ p["w1"] + p["b1"]) @ p["w2"] + p["b2"]) + x
    return out, input_norm


# --------------------------------------------------------------------------
if __name__ == "__main__":
    key = jax.random.PRNGKey(0)
    k_par, k_in, k_mem = jax.random.split(key, 3)

    B, T_TGT, T_SRC = 2, 8, 12
    params = init_params(k_par)
    inputs = jax.random.normal(k_in, (B, T_TGT, D_MODEL), jnp.float32)
    memory = jax.random.normal(k_mem, (B, T_SRC, D_MODEL), jnp.float32)

    # Padding masks (True = padded position), expanded as in PreSumm:
    # tgt_pad_mask: (B, T_tgt, T_tgt), src_pad_mask: (B, T_tgt, T_src)
    tgt_lens = jnp.array([8, 6])
    src_lens = jnp.array([12, 9])
    tgt_pad = jnp.arange(T_TGT)[None, :] >= tgt_lens[:, None]
    src_pad = jnp.arange(T_SRC)[None, :] >= src_lens[:, None]
    tgt_pad_mask = jnp.broadcast_to(tgt_pad[:, None, :], (B, T_TGT, T_TGT))
    src_pad_mask = jnp.broadcast_to(src_pad[:, None, :], (B, T_TGT, T_SRC))

    out, all_input = transformer_decoder_layer(
        params, inputs, memory, src_pad_mask, tgt_pad_mask)
    out = jax.block_until_ready(out)
    all_input = jax.block_until_ready(all_input)

    ref_out, ref_all = _ref_forward(
        params, inputs, memory, src_pad_mask, tgt_pad_mask)

    assert out.shape == (B, T_TGT, D_MODEL)
    assert all_input.shape == (B, T_TGT, D_MODEL)
    assert jnp.all(jnp.isfinite(out))
    # Tolerance accommodates the EUP approximate reciprocal in the softmax.
    assert jnp.allclose(out, ref_out, atol=2e-3, rtol=2e-3)
    assert jnp.allclose(all_input, ref_all, atol=2e-3, rtol=2e-3)

    print("KERNEL_OK")
</pallas_src>

<mosaic_0001>
module attributes {stable_mosaic.version = 11 : i64} {
  func.func @_decoder_layer_kernel(%arg0: i32, %arg1: memref<2x8x32xf32, #tpu.memory_space<vmem>>, %arg2: memref<2x16x32xf32, #tpu.memory_space<vmem>>, %arg3: memref<2x8x8xi32, #tpu.memory_space<vmem>>, %arg4: memref<2x8x16xi32, #tpu.memory_space<vmem>>, %arg5: memref<32x320xf32, #tpu.memory_space<vmem>>, %arg6: memref<64x32xf32, #tpu.memory_space<vmem>>, %arg7: memref<13x96xf32, #tpu.memory_space<vmem>>, %arg8: memref<2x8x64xf32, #tpu.memory_space<vmem>>) attributes {dimension_semantics = [#tpu.dimension_semantics<parallel>], iteration_bounds = array<i64: 1>, scalar_prefetch = 0 : i64, scratch_operands = 0 : i64, tpu.core_type = #tpu.core_type<tc>, window_params = [{transform_indices = @transform_0, window_bounds = array<i64: 2, 8, 32>}, {transform_indices = @transform_1, window_bounds = array<i64: 2, 16, 32>}, {transform_indices = @transform_2, window_bounds = array<i64: 2, 8, 8>}, {transform_indices = @transform_3, window_bounds = array<i64: 2, 8, 16>}, {pipeline_mode = #tpu.pipeline_mode<synchronous>, transform_indices = @transform_4, window_bounds = array<i64: 32, 320>}, {pipeline_mode = #tpu.pipeline_mode<synchronous>, transform_indices = @transform_5, window_bounds = array<i64: 64, 32>}, {pipeline_mode = #tpu.pipeline_mode<synchronous>, transform_indices = @transform_6, window_bounds = array<i64: 13, 96>}, {transform_indices = @transform_7, window_bounds = array<i64: 2, 8, 64>}]} {
    %c0 = arith.constant 0 : index
    %c0_0 = arith.constant 0 : index
    %c0_1 = arith.constant 0 : index
    %0 = vector.load %arg1[%c0, %c0_0, %c0_1] : memref<2x8x32xf32, #tpu.memory_space<vmem>>, vector<2x8x32xf32>
    %1 = vector.shape_cast %0 : vector<2x8x32xf32> to vector<16x32xf32>
    %c0_2 = arith.constant 0 : index
    %c0_3 = arith.constant 0 : index
    %c0_4 = arith.constant 0 : index
    %2 = vector.load %arg2[%c0_2, %c0_3, %c0_4] : memref<2x16x32xf32, #tpu.memory_space<vmem>>, vector<2x16x32xf32>
    %3 = vector.shape_cast %2 : vector<2x16x32xf32> to vector<32x32xf32>
    %4 = tpu.iota {dimensions = array<i32: 0>} : vector<8x8xi32>
    %5 = tpu.iota {dimensions = array<i32: 1>} : vector<8x8xi32>
    %6 = arith.cmpi sgt, %5, %4 : vector<8x8xi32>
    %7 = vector.shape_cast %6 : vector<8x8xi1> to vector<1x8x8xi1>
    %c0_5 = arith.constant 0 : index
    %c0_6 = arith.constant 0 : index
    %c0_7 = arith.constant 0 : index
    %8 = vector.load %arg3[%c0_5, %c0_6, %c0_7] : memref<2x8x8xi32, #tpu.memory_space<vmem>>, vector<2x8x8xi32>
    %c0_i32 = arith.constant 0 : i32
    %9 = vector.broadcast %c0_i32 : i32 to vector<2x8x8xi32>
    %10 = arith.cmpi sgt, %8, %9 : vector<2x8x8xi32>
    %11 = vector.broadcast %7 : vector<1x8x8xi1> to vector<2x8x8xi1>
    %12 = arith.ori %10, %11 : vector<2x8x8xi1>
    %cst = arith.constant -9.99999984E+17 : f32
    %cst_8 = arith.constant 0.000000e+00 : f32
    %13 = vector.broadcast %cst : f32 to vector<2x8x8xf32>
    %14 = vector.broadcast %cst_8 : f32 to vector<2x8x8xf32>
    %15 = arith.select %12, %13, %14 : vector<2x8x8xi1>, vector<2x8x8xf32>
    %c0_9 = arith.constant 0 : index
    %c0_10 = arith.constant 0 : index
    %c0_11 = arith.constant 0 : index
    %16 = vector.load %arg4[%c0_9, %c0_10, %c0_11] : memref<2x8x16xi32, #tpu.memory_space<vmem>>, vector<2x8x16xi32>
    %c0_i32_12 = arith.constant 0 : i32
    %17 = vector.broadcast %c0_i32_12 : i32 to vector<2x8x16xi32>
    %18 = arith.cmpi sgt, %16, %17 : vector<2x8x16xi32>
    %cst_13 = arith.constant -9.99999984E+17 : f32
    %cst_14 = arith.constant 0.000000e+00 : f32
    %19 = vector.broadcast %cst_13 : f32 to vector<2x8x16xf32>
    %20 = vector.broadcast %cst_14 : f32 to vector<2x8x16xf32>
    %21 = arith.select %18, %19, %20 : vector<2x8x16xi1>, vector<2x8x16xf32>
    %c0_15 = arith.constant 0 : index
    %c0_16 = arith.constant 0 : index
    %22 = vector.load %arg7[%c0_15, %c0_16] : memref<13x96xf32, #tpu.memory_space<vmem>>, vector<1x32xf32>
    %c1 = arith.constant 1 : index
    %c0_17 = arith.constant 0 : index
    %23 = vector.load %arg7[%c1, %c0_17] : memref<13x96xf32, #tpu.memory_space<vmem>>, vector<1x32xf32>
    %cst_18 = arith.constant dense<0.000000e+00> : vector<16xf32>
    %24 = vector.multi_reduction <add>, %1, %cst_18 [1] : vector<16x32xf32> to vector<16xf32>
    %25 = vector.shape_cast %24 : vector<16xf32> to vector<16x1xf32>
    %cst_19 = arith.constant 3.200000e+01 : f32
    %26 = vector.broadcast %cst_19 : f32 to vector<16x1xf32>
    %27 = arith.divf %25, %26 : vector<16x1xf32>
    %28 = vector.broadcast %27 : vector<16x1xf32> to vector<16x32xf32>
    %29 = arith.subf %1, %28 : vector<16x32xf32>
    %30 = arith.mulf %29, %29 : vector<16x32xf32>
    %cst_20 = arith.constant dense<0.000000e+00> : vector<16xf32>
    %31 = vector.multi_reduction <add>, %30, %cst_20 [1] : vector<16x32xf32> to vector<16xf32>
    %32 = vector.shape_cast %31 : vector<16xf32> to vector<16x1xf32>
    %cst_21 = arith.constant 3.200000e+01 : f32
    %33 = vector.broadcast %cst_21 : f32 to vector<16x1xf32>
    %34 = arith.divf %32, %33 : vector<16x1xf32>
    %35 = vector.broadcast %27 : vector<16x1xf32> to vector<16x32xf32>
    %36 = arith.subf %1, %35 : vector<16x32xf32>
    %cst_22 = arith.constant 9.99999997E-7 : f32
    %37 = vector.broadcast %cst_22 : f32 to vector<16x1xf32>
    %38 = arith.addf %34, %37 : vector<16x1xf32>
    %39 = math.rsqrt %38 : vector<16x1xf32>
    %40 = vector.broadcast %39 : vector<16x1xf32> to vector<16x32xf32>
    %41 = arith.mulf %36, %40 : vector<16x32xf32>
    %42 = vector.broadcast %22 : vector<1x32xf32> to vector<16x32xf32>
    %43 = arith.mulf %41, %42 : vector<16x32xf32>
    %44 = vector.broadcast %23 : vector<1x32xf32> to vector<16x32xf32>
    %45 = arith.addf %43, %44 : vector<16x32xf32>
    %c0_23 = arith.constant 0 : index
    %c0_24 = arith.constant 0 : index
    %46 = vector.load %arg5[%c0_23, %c0_24] : memref<32x320xf32, #tpu.memory_space<vmem>>, vector<32x96xf32>
    %cst_25 = arith.constant dense<0.000000e+00> : vector<16x96xf32>
    %47 = tpu.matmul %45, %46, %cst_25 {dimension_numbers = #tpu.dot_dimension_numbers<[1], [0], [0], [1], [0, 0, 1, 1], [], []>} : vector<16x32xf32>, vector<32x96xf32>, vector<16x96xf32> -> vector<16x96xf32>
    %c2 = arith.constant 2 : index
    %c0_26 = arith.constant 0 : index
    %48 = vector.load %arg7[%c2, %c0_26] : memref<13x96xf32, #tpu.memory_space<vmem>>, vector<1x96xf32>
    %49 = vector.broadcast %48 : vector<1x96xf32> to vector<16x96xf32>
    %50 = arith.addf %47, %49 : vector<16x96xf32>
    %51 = vector.extract_strided_slice %50 {offsets = [0, 0], sizes = [16, 32], strides = [1, 1]} : vector<16x96xf32> to vector<16x32xf32>
    %cst_27 = arith.constant 0.353553385 : f32
    %52 = vector.broadcast %cst_27 : f32 to vector<16x32xf32>
    %53 = arith.mulf %51, %52 : vector<16x32xf32>
    %54 = vector.extract_strided_slice %50 {offsets = [0, 32], sizes = [16, 32], strides = [1, 1]} : vector<16x96xf32> to vector<16x32xf32>
    %55 = vector.extract_strided_slice %50 {offsets = [0, 64], sizes = [16, 32], strides = [1, 1]} : vector<16x96xf32> to vector<16x32xf32>
    %c0_28 = arith.constant 0 : index
    %c96 = arith.constant 96 : index
    %56 = vector.load %arg5[%c0_28, %c96] : memref<32x320xf32, #tpu.memory_space<vmem>>, vector<32x32xf32>
    %c3 = arith.constant 3 : index
    %c0_29 = arith.constant 0 : index
    %57 = vector.load %arg7[%c3, %c0_29] : memref<13x96xf32, #tpu.memory_space<vmem>>, vector<1x32xf32>
    %58 = vector.shape_cast %53 : vector<16x32xf32> to vector<2x8x32xf32>
    %59 = vector.shape_cast %54 : vector<16x32xf32> to vector<2x8x32xf32>
    %60 = vector.shape_cast %55 : vector<16x32xf32> to vector<2x8x32xf32>
    %61 = vector.extract_strided_slice %58 {offsets = [0, 0, 0], sizes = [2, 8, 8], strides = [1, 1, 1]} : vector<2x8x32xf32> to vector<2x8x8xf32>
    %62 = vector.extract_strided_slice %59 {offsets = [0, 0, 0], sizes = [2, 8, 8], strides = [1, 1, 1]} : vector<2x8x32xf32> to vector<2x8x8xf32>
    "tpu.trace_start"() <{level = 10 : i32, message = "bqd,bkd->bqk"}> : () -> ()
    %cst_30 = arith.constant dense<0.000000e+00> : vector<2x8x8xf32>
    %63 = tpu.matmul %61, %62, %cst_30 {dimension_numbers = #tpu.dot_dimension_numbers<[2], [2], [1], [1], [0, 0, 0, 1, 1, 1], [0], [0]>} : vector<2x8x8xf32>, vector<2x8x8xf32>, vector<2x8x8xf32> -> vector<2x8x8xf32>
    "tpu.trace_stop"() : () -> ()
    %64 = arith.addf %63, %15 : vector<2x8x8xf32>
    %cst_31 = arith.constant dense<0xFF800000> : vector<2x8xf32>
    %65 = vector.multi_reduction <maximumf>, %64, %cst_31 [2] : vector<2x8x8xf32> to vector<2x8xf32>
    %66 = vector.shape_cast %65 : vector<2x8xf32> to vector<2x8x1xf32>
    %67 = vector.broadcast %66 : vector<2x8x1xf32> to vector<2x8x8xf32>
    %68 = arith.subf %64, %67 : vector<2x8x8xf32>
    %69 = math.exp %68 : vector<2x8x8xf32>
    %cst_32 = arith.constant dense<0.000000e+00> : vector<2x8xf32>
    %70 = vector.multi_reduction <add>, %69, %cst_32 [2] : vector<2x8x8xf32> to vector<2x8xf32>
    %71 = vector.shape_cast %70 : vector<2x8xf32> to vector<2x8x1xf32>
    %72 = tpu.reciprocal %71 {approx = true} : vector<2x8x1xf32> -> vector<2x8x1xf32>
    %73 = vector.broadcast %72 : vector<2x8x1xf32> to vector<2x8x8xf32>
    %74 = arith.mulf %69, %73 : vector<2x8x8xf32>
    %75 = vector.extract_strided_slice %60 {offsets = [0, 0, 0], sizes = [2, 8, 8], strides = [1, 1, 1]} : vector<2x8x32xf32> to vector<2x8x8xf32>
    "tpu.trace_start"() <{level = 10 : i32, message = "bqk,bkd->bqd"}> : () -> ()
    %cst_33 = arith.constant dense<0.000000e+00> : vector<2x8x8xf32>
    %76 = tpu.matmul %74, %75, %cst_33 {dimension_numbers = #tpu.dot_dimension_numbers<[2], [1], [1], [2], [0, 0, 0, 1, 1, 2], [0], [0]>} : vector<2x8x8xf32>, vector<2x8x8xf32>, vector<2x8x8xf32> -> vector<2x8x8xf32>
    "tpu.trace_stop"() : () -> ()
    %77 = vector.extract_strided_slice %58 {offsets = [0, 0, 8], sizes = [2, 8, 8], strides = [1, 1, 1]} : vector<2x8x32xf32> to vector<2x8x8xf32>
    %78 = vector.extract_strided_slice %59 {offsets = [0, 0, 8], sizes = [2, 8, 8], strides = [1, 1, 1]} : vector<2x8x32xf32> to vector<2x8x8xf32>
    "tpu.trace_start"() <{level = 10 : i32, message = "bqd,bkd->bqk"}> : () -> ()
    %cst_34 = arith.constant dense<0.000000e+00> : vector<2x8x8xf32>
    %79 = tpu.matmul %77, %78, %cst_34 {dimension_numbers = #tpu.dot_dimension_numbers<[2], [2], [1], [1], [0, 0, 0, 1, 1, 1], [0], [0]>} : vector<2x8x8xf32>, vector<2x8x8xf32>, vector<2x8x8xf32> -> vector<2x8x8xf32>
    "tpu.trace_stop"() : () -> ()
    %80 = arith.addf %79, %15 : vector<2x8x8xf32>
    %cst_35 = arith.constant dense<0xFF800000> : vector<2x8xf32>
    %81 = vector.multi_reduction <maximumf>, %80, %cst_35 [2] : vector<2x8x8xf32> to vector<2x8xf32>
    %82 = vector.shape_cast %81 : vector<2x8xf32> to vector<2x8x1xf32>
    %83 = vector.broadcast %82 : vector<2x8x1xf32> to vector<2x8x8xf32>
    %84 = arith.subf %80, %83 : vector<2x8x8xf32>
    %85 = math.exp %84 : vector<2x8x8xf32>
    %cst_36 = arith.constant dense<0.000000e+00> : vector<2x8xf32>
    %86 = vector.multi_reduction <add>, %85, %cst_36 [2] : vector<2x8x8xf32> to vector<2x8xf32>
    %87 = vector.shape_cast %86 : vector<2x8xf32> to vector<2x8x1xf32>
    %88 = tpu.reciprocal %87 {approx = true} : vector<2x8x1xf32> -> vector<2x8x1xf32>
    %89 = vector.broadcast %88 : vector<2x8x1xf32> to vector<2x8x8xf32>
    %90 = arith.mulf %85, %89 : vector<2x8x8xf32>
    %91 = vector.extract_strided_slice %60 {offsets = [0, 0, 8], sizes = [2, 8, 8], strides = [1, 1, 1]} : vector<2x8x32xf32> to vector<2x8x8xf32>
    "tpu.trace_start"() <{level = 10 : i32, message = "bqk,bkd->bqd"}> : () -> ()
    %cst_37 = arith.constant dense<0.000000e+00> : vector<2x8x8xf32>
    %92 = tpu.matmul %90, %91, %cst_37 {dimension_numbers = #tpu.dot_dimension_numbers<[2], [1], [1], [2], [0, 0, 0, 1, 1, 2], [0], [0]>} : vector<2x8x8xf32>, vector<2x8x8xf32>, vector<2x8x8xf32> -> vector<2x8x8xf32>
    "tpu.trace_stop"() : () -> ()
    %93 = vector.extract_strided_slice %58 {offsets = [0, 0, 16], sizes = [2, 8, 8], strides = [1, 1, 1]} : vector<2x8x32xf32> to vector<2x8x8xf32>
    %94 = vector.extract_strided_slice %59 {offsets = [0, 0, 16], sizes = [2, 8, 8], strides = [1, 1, 1]} : vector<2x8x32xf32> to vector<2x8x8xf32>
    "tpu.trace_start"() <{level = 10 : i32, message = "bqd,bkd->bqk"}> : () -> ()
    %cst_38 = arith.constant dense<0.000000e+00> : vector<2x8x8xf32>
    %95 = tpu.matmul %93, %94, %cst_38 {dimension_numbers = #tpu.dot_dimension_numbers<[2], [2], [1], [1], [0, 0, 0, 1, 1, 1], [0], [0]>} : vector<2x8x8xf32>, vector<2x8x8xf32>, vector<2x8x8xf32> -> vector<2x8x8xf32>
    "tpu.trace_stop"() : () -> ()
    %96 = arith.addf %95, %15 : vector<2x8x8xf32>
    %cst_39 = arith.constant dense<0xFF800000> : vector<2x8xf32>
    %97 = vector.multi_reduction <maximumf>, %96, %cst_39 [2] : vector<2x8x8xf32> to vector<2x8xf32>
    %98 = vector.shape_cast %97 : vector<2x8xf32> to vector<2x8x1xf32>
    %99 = vector.broadcast %98 : vector<2x8x1xf32> to vector<2x8x8xf32>
    %100 = arith.subf %96, %99 : vector<2x8x8xf32>
    %101 = math.exp %100 : vector<2x8x8xf32>
    %cst_40 = arith.constant dense<0.000000e+00> : vector<2x8xf32>
    %102 = vector.multi_reduction <add>, %101, %cst_40 [2] : vector<2x8x8xf32> to vector<2x8xf32>
    %103 = vector.shape_cast %102 : vector<2x8xf32> to vector<2x8x1xf32>
    %104 = tpu.reciprocal %103 {approx = true} : vector<2x8x1xf32> -> vector<2x8x1xf32>
    %105 = vector.broadcast %104 : vector<2x8x1xf32> to vector<2x8x8xf32>
    %106 = arith.mulf %101, %105 : vector<2x8x8xf32>
    %107 = vector.extract_strided_slice %60 {offsets = [0, 0, 16], sizes = [2, 8, 8], strides = [1, 1, 1]} : vector<2x8x32xf32> to vector<2x8x8xf32>
    "tpu.trace_start"() <{level = 10 : i32, message = "bqk,bkd->bqd"}> : () -> ()
    %cst_41 = arith.constant dense<0.000000e+00> : vector<2x8x8xf32>
    %108 = tpu.matmul %106, %107, %cst_41 {dimension_numbers = #tpu.dot_dimension_numbers<[2], [1], [1], [2], [0, 0, 0, 1, 1, 2], [0], [0]>} : vector<2x8x8xf32>, vector<2x8x8xf32>, vector<2x8x8xf32> -> vector<2x8x8xf32>
    "tpu.trace_stop"() : () -> ()
    %109 = vector.extract_strided_slice %58 {offsets = [0, 0, 24], sizes = [2, 8, 8], strides = [1, 1, 1]} : vector<2x8x32xf32> to vector<2x8x8xf32>
    %110 = vector.extract_strided_slice %59 {offsets = [0, 0, 24], sizes = [2, 8, 8], strides = [1, 1, 1]} : vector<2x8x32xf32> to vector<2x8x8xf32>
    "tpu.trace_start"() <{level = 10 : i32, message = "bqd,bkd->bqk"}> : () -> ()
    %cst_42 = arith.constant dense<0.000000e+00> : vector<2x8x8xf32>
    %111 = tpu.matmul %109, %110, %cst_42 {dimension_numbers = #tpu.dot_dimension_numbers<[2], [2], [1], [1], [0, 0, 0, 1, 1, 1], [0], [0]>} : vector<2x8x8xf32>, vector<2x8x8xf32>, vector<2x8x8xf32> -> vector<2x8x8xf32>
    "tpu.trace_stop"() : () -> ()
    %112 = arith.addf %111, %15 : vector<2x8x8xf32>
    %cst_43 = arith.constant dense<0xFF800000> : vector<2x8xf32>
    %113 = vector.multi_reduction <maximumf>, %112, %cst_43 [2] : vector<2x8x8xf32> to vector<2x8xf32>
    %114 = vector.shape_cast %113 : vector<2x8xf32> to vector<2x8x1xf32>
    %115 = vector.broadcast %114 : vector<2x8x1xf32> to vector<2x8x8xf32>
    %116 = arith.subf %112, %115 : vector<2x8x8xf32>
    %117 = math.exp %116 : vector<2x8x8xf32>
    %cst_44 = arith.constant dense<0.000000e+00> : vector<2x8xf32>
    %118 = vector.multi_reduction <add>, %117, %cst_44 [2] : vector<2x8x8xf32> to vector<2x8xf32>
    %119 = vector.shape_cast %118 : vector<2x8xf32> to vector<2x8x1xf32>
    %120 = tpu.reciprocal %119 {approx = true} : vector<2x8x1xf32> -> vector<2x8x1xf32>
    %121 = vector.broadcast %120 : vector<2x8x1xf32> to vector<2x8x8xf32>
    %122 = arith.mulf %117, %121 : vector<2x8x8xf32>
    %123 = vector.extract_strided_slice %60 {offsets = [0, 0, 24], sizes = [2, 8, 8], strides = [1, 1, 1]} : vector<2x8x32xf32> to vector<2x8x8xf32>
    "tpu.trace_start"() <{level = 10 : i32, message = "bqk,bkd->bqd"}> : () -> ()
    %cst_45 = arith.constant dense<0.000000e+00> : vector<2x8x8xf32>
    %124 = tpu.matmul %122, %123, %cst_45 {dimension_numbers = #tpu.dot_dimension_numbers<[2], [1], [1], [2], [0, 0, 0, 1, 1, 2], [0], [0]>} : vector<2x8x8xf32>, vector<2x8x8xf32>, vector<2x8x8xf32> -> vector<2x8x8xf32>
    "tpu.trace_stop"() : () -> ()
    %125 = tpu.concatenate %76, %92, %108, %124 in 2 : vector<2x8x8xf32>, vector<2x8x8xf32>, vector<2x8x8xf32>, vector<2x8x8xf32> -> vector<2x8x32xf32>
    %126 = vector.shape_cast %125 : vector<2x8x32xf32> to vector<16x32xf32>
    %cst_46 = arith.constant dense<0.000000e+00> : vector<16x32xf32>
    %127 = tpu.matmul %126, %56, %cst_46 {dimension_numbers = #tpu.dot_dimension_numbers<[1], [0], [0], [1], [0, 0, 1, 1], [], []>} : vector<16x32xf32>, vector<32x32xf32>, vector<16x32xf32> -> vector<16x32xf32>
    %128 = vector.broadcast %57 : vector<1x32xf32> to vector<16x32xf32>
    %129 = arith.addf %127, %128 : vector<16x32xf32>
    %130 = arith.addf %129, %1 : vector<16x32xf32>
    %c4 = arith.constant 4 : index
    %c0_47 = arith.constant 0 : index
    %131 = vector.load %arg7[%c4, %c0_47] : memref<13x96xf32, #tpu.memory_space<vmem>>, vector<1x32xf32>
    %c5 = arith.constant 5 : index
    %c0_48 = arith.constant 0 : index
    %132 = vector.load %arg7[%c5, %c0_48] : memref<13x96xf32, #tpu.memory_space<vmem>>, vector<1x32xf32>
    %cst_49 = arith.constant dense<0.000000e+00> : vector<16xf32>
    %133 = vector.multi_reduction <add>, %130, %cst_49 [1] : vector<16x32xf32> to vector<16xf32>
    %134 = vector.shape_cast %133 : vector<16xf32> to vector<16x1xf32>
    %cst_50 = arith.constant 3.200000e+01 : f32
    %135 = vector.broadcast %cst_50 : f32 to vector<16x1xf32>
    %136 = arith.divf %134, %135 : vector<16x1xf32>
    %137 = vector.broadcast %136 : vector<16x1xf32> to vector<16x32xf32>
    %138 = arith.subf %130, %137 : vector<16x32xf32>
    %139 = arith.mulf %138, %138 : vector<16x32xf32>
    %cst_51 = arith.constant dense<0.000000e+00> : vector<16xf32>
    %140 = vector.multi_reduction <add>, %139, %cst_51 [1] : vector<16x32xf32> to vector<16xf32>
    %141 = vector.shape_cast %140 : vector<16xf32> to vector<16x1xf32>
    %cst_52 = arith.constant 3.200000e+01 : f32
    %142 = vector.broadcast %cst_52 : f32 to vector<16x1xf32>
    %143 = arith.divf %141, %142 : vector<16x1xf32>
    %144 = vector.broadcast %136 : vector<16x1xf32> to vector<16x32xf32>
    %145 = arith.subf %130, %144 : vector<16x32xf32>
    %cst_53 = arith.constant 9.99999997E-7 : f32
    %146 = vector.broadcast %cst_53 : f32 to vector<16x1xf32>
    %147 = arith.addf %143, %146 : vector<16x1xf32>
    %148 = math.rsqrt %147 : vector<16x1xf32>
    %149 = vector.broadcast %148 : vector<16x1xf32> to vector<16x32xf32>
    %150 = arith.mulf %145, %149 : vector<16x32xf32>
    %151 = vector.broadcast %131 : vector<1x32xf32> to vector<16x32xf32>
    %152 = arith.mulf %150, %151 : vector<16x32xf32>
    %153 = vector.broadcast %132 : vector<1x32xf32> to vector<16x32xf32>
    %154 = arith.addf %152, %153 : vector<16x32xf32>
    %c0_54 = arith.constant 0 : index
    %c128 = arith.constant 128 : index
    %155 = vector.load %arg5[%c0_54, %c128] : memref<32x320xf32, #tpu.memory_space<vmem>>, vector<32x32xf32>
    %cst_55 = arith.constant dense<0.000000e+00> : vector<16x32xf32>
    %156 = tpu.matmul %154, %155, %cst_55 {dimension_numbers = #tpu.dot_dimension_numbers<[1], [0], [0], [1], [0, 0, 1, 1], [], []>} : vector<16x32xf32>, vector<32x32xf32>, vector<16x32xf32> -> vector<16x32xf32>
    %c6 = arith.constant 6 : index
    %c0_56 = arith.constant 0 : index
    %157 = vector.load %arg7[%c6, %c0_56] : memref<13x96xf32, #tpu.memory_space<vmem>>, vector<1x32xf32>
    %158 = vector.broadcast %157 : vector<1x32xf32> to vector<16x32xf32>
    %159 = arith.addf %156, %158 : vector<16x32xf32>
    %cst_57 = arith.constant 0.353553385 : f32
    %160 = vector.broadcast %cst_57 : f32 to vector<16x32xf32>
    %161 = arith.mulf %159, %160 : vector<16x32xf32>
    %c0_58 = arith.constant 0 : index
    %c160 = arith.constant 160 : index
    %162 = vector.load %arg5[%c0_58, %c160] : memref<32x320xf32, #tpu.memory_space<vmem>>, vector<32x64xf32>
    %cst_59 = arith.constant dense<0.000000e+00> : vector<32x64xf32>
    %163 = tpu.matmul %3, %162, %cst_59 {dimension_numbers = #tpu.dot_dimension_numbers<[1], [0], [0], [1], [0, 0, 1, 1], [], []>} : vector<32x32xf32>, vector<32x64xf32>, vector<32x64xf32> -> vector<32x64xf32>
    %c7 = arith.constant 7 : index
    %c0_60 = arith.constant 0 : index
    %164 = vector.load %arg7[%c7, %c0_60] : memref<13x96xf32, #tpu.memory_space<vmem>>, vector<1x64xf32>
    %165 = vector.broadcast %164 : vector<1x64xf32> to vector<32x64xf32>
    %166 = arith.addf %163, %165 : vector<32x64xf32>
    %167 = vector.extract_strided_slice %166 {offsets = [0, 0], sizes = [32, 32], strides = [1, 1]} : vector<32x64xf32> to vector<32x32xf32>
    %168 = vector.extract_strided_slice %166 {offsets = [0, 32], sizes = [32, 32], strides = [1, 1]} : vector<32x64xf32> to vector<32x32xf32>
    %c0_61 = arith.constant 0 : index
    %c224 = arith.constant 224 : index
    %169 = vector.load %arg5[%c0_61, %c224] : memref<32x320xf32, #tpu.memory_space<vmem>>, vector<32x32xf32>
    %c8 = arith.constant 8 : index
    %c0_62 = arith.constant 0 : index
    %170 = vector.load %arg7[%c8, %c0_62] : memref<13x96xf32, #tpu.memory_space<vmem>>, vector<1x32xf32>
    %171 = vector.shape_cast %161 : vector<16x32xf32> to vector<2x8x32xf32>
    %172 = vector.shape_cast %167 : vector<32x32xf32> to vector<2x16x32xf32>
    %173 = vector.shape_cast %168 : vector<32x32xf32> to vector<2x16x32xf32>
    %174 = vector.extract_strided_slice %171 {offsets = [0, 0, 0], sizes = [2, 8, 8], strides = [1, 1, 1]} : vector<2x8x32xf32> to vector<2x8x8xf32>
    %175 = vector.extract_strided_slice %172 {offsets = [0, 0, 0], sizes = [2, 16, 8], strides = [1, 1, 1]} : vector<2x16x32xf32> to vector<2x16x8xf32>
    "tpu.trace_start"() <{level = 10 : i32, message = "bqd,bkd->bqk"}> : () -> ()
    %cst_63 = arith.constant dense<0.000000e+00> : vector<2x8x16xf32>
    %176 = tpu.matmul %174, %175, %cst_63 {dimension_numbers = #tpu.dot_dimension_numbers<[2], [2], [1], [1], [0, 0, 0, 1, 1, 1], [0], [0]>} : vector<2x8x8xf32>, vector<2x16x8xf32>, vector<2x8x16xf32> -> vector<2x8x16xf32>
    "tpu.trace_stop"() : () -> ()
    %177 = arith.addf %176, %21 : vector<2x8x16xf32>
    %cst_64 = arith.constant dense<0xFF800000> : vector<2x8xf32>
    %178 = vector.multi_reduction <maximumf>, %177, %cst_64 [2] : vector<2x8x16xf32> to vector<2x8xf32>
    %179 = vector.shape_cast %178 : vector<2x8xf32> to vector<2x8x1xf32>
    %180 = vector.broadcast %179 : vector<2x8x1xf32> to vector<2x8x16xf32>
    %181 = arith.subf %177, %180 : vector<2x8x16xf32>
    %182 = math.exp %181 : vector<2x8x16xf32>
    %cst_65 = arith.constant dense<0.000000e+00> : vector<2x8xf32>
    %183 = vector.multi_reduction <add>, %182, %cst_65 [2] : vector<2x8x16xf32> to vector<2x8xf32>
    %184 = vector.shape_cast %183 : vector<2x8xf32> to vector<2x8x1xf32>
    %185 = tpu.reciprocal %184 {approx = true} : vector<2x8x1xf32> -> vector<2x8x1xf32>
    %186 = vector.broadcast %185 : vector<2x8x1xf32> to vector<2x8x16xf32>
    %187 = arith.mulf %182, %186 : vector<2x8x16xf32>
    %188 = vector.extract_strided_slice %173 {offsets = [0, 0, 0], sizes = [2, 16, 8], strides = [1, 1, 1]} : vector<2x16x32xf32> to vector<2x16x8xf32>
    "tpu.trace_start"() <{level = 10 : i32, message = "bqk,bkd->bqd"}> : () -> ()
    %cst_66 = arith.constant dense<0.000000e+00> : vector<2x8x8xf32>
    %189 = tpu.matmul %187, %188, %cst_66 {dimension_numbers = #tpu.dot_dimension_numbers<[2], [1], [1], [2], [0, 0, 0, 1, 1, 2], [0], [0]>} : vector<2x8x16xf32>, vector<2x16x8xf32>, vector<2x8x8xf32> -> vector<2x8x8xf32>
    "tpu.trace_stop"() : () -> ()
    %190 = vector.extract_strided_slice %171 {offsets = [0, 0, 8], sizes = [2, 8, 8], strides = [1, 1, 1]} : vector<2x8x32xf32> to vector<2x8x8xf32>
    %191 = vector.extract_strided_slice %172 {offsets = [0, 0, 8], sizes = [2, 16, 8], strides = [1, 1, 1]} : vector<2x16x32xf32> to vector<2x16x8xf32>
    "tpu.trace_start"() <{level = 10 : i32, message = "bqd,bkd->bqk"}> : () -> ()
    %cst_67 = arith.constant dense<0.000000e+00> : vector<2x8x16xf32>
    %192 = tpu.matmul %190, %191, %cst_67 {dimension_numbers = #tpu.dot_dimension_numbers<[2], [2], [1], [1], [0, 0, 0, 1, 1, 1], [0], [0]>} : vector<2x8x8xf32>, vector<2x16x8xf32>, vector<2x8x16xf32> -> vector<2x8x16xf32>
    "tpu.trace_stop"() : () -> ()
    %193 = arith.addf %192, %21 : vector<2x8x16xf32>
    %cst_68 = arith.constant dense<0xFF800000> : vector<2x8xf32>
    %194 = vector.multi_reduction <maximumf>, %193, %cst_68 [2] : vector<2x8x16xf32> to vector<2x8xf32>
    %195 = vector.shape_cast %194 : vector<2x8xf32> to vector<2x8x1xf32>
    %196 = vector.broadcast %195 : vector<2x8x1xf32> to vector<2x8x16xf32>
    %197 = arith.subf %193, %196 : vector<2x8x16xf32>
    %198 = math.exp %197 : vector<2x8x16xf32>
    %cst_69 = arith.constant dense<0.000000e+00> : vector<2x8xf32>
    %199 = vector.multi_reduction <add>, %198, %cst_69 [2] : vector<2x8x16xf32> to vector<2x8xf32>
    %200 = vector.shape_cast %199 : vector<2x8xf32> to vector<2x8x1xf32>
    %201 = tpu.reciprocal %200 {approx = true} : vector<2x8x1xf32> -> vector<2x8x1xf32>
    %202 = vector.broadcast %201 : vector<2x8x1xf32> to vector<2x8x16xf32>
    %203 = arith.mulf %198, %202 : vector<2x8x16xf32>
    %204 = vector.extract_strided_slice %173 {offsets = [0, 0, 8], sizes = [2, 16, 8], strides = [1, 1, 1]} : vector<2x16x32xf32> to vector<2x16x8xf32>
    "tpu.trace_start"() <{level = 10 : i32, message = "bqk,bkd->bqd"}> : () -> ()
    %cst_70 = arith.constant dense<0.000000e+00> : vector<2x8x8xf32>
    %205 = tpu.matmul %203, %204, %cst_70 {dimension_numbers = #tpu.dot_dimension_numbers<[2], [1], [1], [2], [0, 0, 0, 1, 1, 2], [0], [0]>} : vector<2x8x16xf32>, vector<2x16x8xf32>, vector<2x8x8xf32> -> vector<2x8x8xf32>
    "tpu.trace_stop"() : () -> ()
    %206 = vector.extract_strided_slice %171 {offsets = [0, 0, 16], sizes = [2, 8, 8], strides = [1, 1, 1]} : vector<2x8x32xf32> to vector<2x8x8xf32>
    %207 = vector.extract_strided_slice %172 {offsets = [0, 0, 16], sizes = [2, 16, 8], strides = [1, 1, 1]} : vector<2x16x32xf32> to vector<2x16x8xf32>
    "tpu.trace_start"() <{level = 10 : i32, message = "bqd,bkd->bqk"}> : () -> ()
    %cst_71 = arith.constant dense<0.000000e+00> : vector<2x8x16xf32>
    %208 = tpu.matmul %206, %207, %cst_71 {dimension_numbers = #tpu.dot_dimension_numbers<[2], [2], [1], [1], [0, 0, 0, 1, 1, 1], [0], [0]>} : vector<2x8x8xf32>, vector<2x16x8xf32>, vector<2x8x16xf32> -> vector<2x8x16xf32>
    "tpu.trace_stop"() : () -> ()
    %209 = arith.addf %208, %21 : vector<2x8x16xf32>
    %cst_72 = arith.constant dense<0xFF800000> : vector<2x8xf32>
    %210 = vector.multi_reduction <maximumf>, %209, %cst_72 [2] : vector<2x8x16xf32> to vector<2x8xf32>
    %211 = vector.shape_cast %210 : vector<2x8xf32> to vector<2x8x1xf32>
    %212 = vector.broadcast %211 : vector<2x8x1xf32> to vector<2x8x16xf32>
    %213 = arith.subf %209, %212 : vector<2x8x16xf32>
    %214 = math.exp %213 : vector<2x8x16xf32>
    %cst_73 = arith.constant dense<0.000000e+00> : vector<2x8xf32>
    %215 = vector.multi_reduction <add>, %214, %cst_73 [2] : vector<2x8x16xf32> to vector<2x8xf32>
    %216 = vector.shape_cast %215 : vector<2x8xf32> to vector<2x8x1xf32>
    %217 = tpu.reciprocal %216 {approx = true} : vector<2x8x1xf32> -> vector<2x8x1xf32>
    %218 = vector.broadcast %217 : vector<2x8x1xf32> to vector<2x8x16xf32>
    %219 = arith.mulf %214, %218 : vector<2x8x16xf32>
    %220 = vector.extract_strided_slice %173 {offsets = [0, 0, 16], sizes = [2, 16, 8], strides = [1, 1, 1]} : vector<2x16x32xf32> to vector<2x16x8xf32>
    "tpu.trace_start"() <{level = 10 : i32, message = "bqk,bkd->bqd"}> : () -> ()
    %cst_74 = arith.constant dense<0.000000e+00> : vector<2x8x8xf32>
    %221 = tpu.matmul %219, %220, %cst_74 {dimension_numbers = #tpu.dot_dimension_numbers<[2], [1], [1], [2], [0, 0, 0, 1, 1, 2], [0], [0]>} : vector<2x8x16xf32>, vector<2x16x8xf32>, vector<2x8x8xf32> -> vector<2x8x8xf32>
    "tpu.trace_stop"() : () -> ()
    %222 = vector.extract_strided_slice %171 {offsets = [0, 0, 24], sizes = [2, 8, 8], strides = [1, 1, 1]} : vector<2x8x32xf32> to vector<2x8x8xf32>
    %223 = vector.extract_strided_slice %172 {offsets = [0, 0, 24], sizes = [2, 16, 8], strides = [1, 1, 1]} : vector<2x16x32xf32> to vector<2x16x8xf32>
    "tpu.trace_start"() <{level = 10 : i32, message = "bqd,bkd->bqk"}> : () -> ()
    %cst_75 = arith.constant dense<0.000000e+00> : vector<2x8x16xf32>
    %224 = tpu.matmul %222, %223, %cst_75 {dimension_numbers = #tpu.dot_dimension_numbers<[2], [2], [1], [1], [0, 0, 0, 1, 1, 1], [0], [0]>} : vector<2x8x8xf32>, vector<2x16x8xf32>, vector<2x8x16xf32> -> vector<2x8x16xf32>
    "tpu.trace_stop"() : () -> ()
    %225 = arith.addf %224, %21 : vector<2x8x16xf32>
    %cst_76 = arith.constant dense<0xFF800000> : vector<2x8xf32>
    %226 = vector.multi_reduction <maximumf>, %225, %cst_76 [2] : vector<2x8x16xf32> to vector<2x8xf32>
    %227 = vector.shape_cast %226 : vector<2x8xf32> to vector<2x8x1xf32>
    %228 = vector.broadcast %227 : vector<2x8x1xf32> to vector<2x8x16xf32>
    %229 = arith.subf %225, %228 : vector<2x8x16xf32>
    %230 = math.exp %229 : vector<2x8x16xf32>
    %cst_77 = arith.constant dense<0.000000e+00> : vector<2x8xf32>
    %231 = vector.multi_reduction <add>, %230, %cst_77 [2] : vector<2x8x16xf32> to vector<2x8xf32>
    %232 = vector.shape_cast %231 : vector<2x8xf32> to vector<2x8x1xf32>
    %233 = tpu.reciprocal %232 {approx = true} : vector<2x8x1xf32> -> vector<2x8x1xf32>
    %234 = vector.broadcast %233 : vector<2x8x1xf32> to vector<2x8x16xf32>
    %235 = arith.mulf %230, %234 : vector<2x8x16xf32>
    %236 = vector.extract_strided_slice %173 {offsets = [0, 0, 24], sizes = [2, 16, 8], strides = [1, 1, 1]} : vector<2x16x32xf32> to vector<2x16x8xf32>
    "tpu.trace_start"() <{level = 10 : i32, message = "bqk,bkd->bqd"}> : () -> ()
    %cst_78 = arith.constant dense<0.000000e+00> : vector<2x8x8xf32>
    %237 = tpu.matmul %235, %236, %cst_78 {dimension_numbers = #tpu.dot_dimension_numbers<[2], [1], [1], [2], [0, 0, 0, 1, 1, 2], [0], [0]>} : vector<2x8x16xf32>, vector<2x16x8xf32>, vector<2x8x8xf32> -> vector<2x8x8xf32>
    "tpu.trace_stop"() : () -> ()
    %238 = tpu.concatenate %189, %205, %221, %237 in 2 : vector<2x8x8xf32>, vector<2x8x8xf32>, vector<2x8x8xf32>, vector<2x8x8xf32> -> vector<2x8x32xf32>
    %239 = vector.shape_cast %238 : vector<2x8x32xf32> to vector<16x32xf32>
    %cst_79 = arith.constant dense<0.000000e+00> : vector<16x32xf32>
    %240 = tpu.matmul %239, %169, %cst_79 {dimension_numbers = #tpu.dot_dimension_numbers<[1], [0], [0], [1], [0, 0, 1, 1], [], []>} : vector<16x32xf32>, vector<32x32xf32>, vector<16x32xf32> -> vector<16x32xf32>
    %241 = vector.broadcast %170 : vector<1x32xf32> to vector<16x32xf32>
    %242 = arith.addf %240, %241 : vector<16x32xf32>
    %243 = arith.addf %242, %130 : vector<16x32xf32>
    %c9 = arith.constant 9 : index
    %c0_80 = arith.constant 0 : index
    %244 = vector.load %arg7[%c9, %c0_80] : memref<13x96xf32, #tpu.memory_space<vmem>>, vector<1x32xf32>
    %c10 = arith.constant 10 : index
    %c0_81 = arith.constant 0 : index
    %245 = vector.load %arg7[%c10, %c0_81] : memref<13x96xf32, #tpu.memory_space<vmem>>, vector<1x32xf32>
    %cst_82 = arith.constant dense<0.000000e+00> : vector<16xf32>
    %246 = vector.multi_reduction <add>, %243, %cst_82 [1] : vector<16x32xf32> to vector<16xf32>
    %247 = vector.shape_cast %246 : vector<16xf32> to vector<16x1xf32>
    %cst_83 = arith.constant 3.200000e+01 : f32
    %248 = vector.broadcast %cst_83 : f32 to vector<16x1xf32>
    %249 = arith.divf %247, %248 : vector<16x1xf32>
    %250 = vector.broadcast %249 : vector<16x1xf32> to vector<16x32xf32>
    %251 = arith.subf %243, %250 : vector<16x32xf32>
    %252 = arith.mulf %251, %251 : vector<16x32xf32>
    %cst_84 = arith.constant dense<0.000000e+00> : vector<16xf32>
    %253 = vector.multi_reduction <add>, %252, %cst_84 [1] : vector<16x32xf32> to vector<16xf32>
    %254 = vector.shape_cast %253 : vector<16xf32> to vector<16x1xf32>
    %cst_85 = arith.constant 3.200000e+01 : f32
    %255 = vector.broadcast %cst_85 : f32 to vector<16x1xf32>
    %256 = arith.divf %254, %255 : vector<16x1xf32>
    %257 = vector.broadcast %249 : vector<16x1xf32> to vector<16x32xf32>
    %258 = arith.subf %243, %257 : vector<16x32xf32>
    %cst_86 = arith.constant 9.99999997E-7 : f32
    %259 = vector.broadcast %cst_86 : f32 to vector<16x1xf32>
    %260 = arith.addf %256, %259 : vector<16x1xf32>
    %261 = math.rsqrt %260 : vector<16x1xf32>
    %262 = vector.broadcast %261 : vector<16x1xf32> to vector<16x32xf32>
    %263 = arith.mulf %258, %262 : vector<16x32xf32>
    %264 = vector.broadcast %244 : vector<1x32xf32> to vector<16x32xf32>
    %265 = arith.mulf %263, %264 : vector<16x32xf32>
    %266 = vector.broadcast %245 : vector<1x32xf32> to vector<16x32xf32>
    %267 = arith.addf %265, %266 : vector<16x32xf32>
    %c0_87 = arith.constant 0 : index
    %c256 = arith.constant 256 : index
    %268 = vector.load %arg5[%c0_87, %c256] : memref<32x320xf32, #tpu.memory_space<vmem>>, vector<32x64xf32>
    %cst_88 = arith.constant dense<0.000000e+00> : vector<16x64xf32>
    %269 = tpu.matmul %267, %268, %cst_88 {dimension_numbers = #tpu.dot_dimension_numbers<[1], [0], [0], [1], [0, 0, 1, 1], [], []>} : vector<16x32xf32>, vector<32x64xf32>, vector<16x64xf32> -> vector<16x64xf32>
    %c11 = arith.constant 11 : index
    %c0_89 = arith.constant 0 : index
    %270 = vector.load %arg7[%c11, %c0_89] : memref<13x96xf32, #tpu.memory_space<vmem>>, vector<1x64xf32>
    %271 = vector.broadcast %270 : vector<1x64xf32> to vector<16x64xf32>
    %272 = arith.addf %269, %271 : vector<16x64xf32>
    %cst_90 = arith.constant 5.000000e-01 : f32
    %273 = vector.broadcast %cst_90 : f32 to vector<16x64xf32>
    %274 = arith.mulf %273, %272 : vector<16x64xf32>
    %cst_91 = arith.constant 0.636619746 : f32
    %275 = math.sqrt %cst_91 : f32
    %cst_92 = arith.constant 4.471500e-02 : f32
    %276 = vector.broadcast %cst_92 : f32 to vector<16x64xf32>
    %277 = arith.mulf %276, %272 : vector<16x64xf32>
    %278 = arith.mulf %277, %272 : vector<16x64xf32>
    %279 = arith.mulf %278, %272 : vector<16x64xf32>
    %280 = arith.addf %272, %279 : vector<16x64xf32>
    %281 = vector.broadcast %275 : f32 to vector<16x64xf32>
    %282 = arith.mulf %281, %280 : vector<16x64xf32>
    %283 = math.tanh %282 : vector<16x64xf32>
    %cst_93 = arith.constant 1.000000e+00 : f32
    %284 = vector.broadcast %cst_93 : f32 to vector<16x64xf32>
    %285 = arith.addf %284, %283 : vector<16x64xf32>
    %286 = arith.mulf %274, %285 : vector<16x64xf32>
    %c0_94 = arith.constant 0 : index
    %c0_95 = arith.constant 0 : index
    %287 = vector.load %arg6[%c0_94, %c0_95] : memref<64x32xf32, #tpu.memory_space<vmem>>, vector<64x32xf32>
    %cst_96 = arith.constant dense<0.000000e+00> : vector<16x32xf32>
    %288 = tpu.matmul %286, %287, %cst_96 {dimension_numbers = #tpu.dot_dimension_numbers<[1], [0], [0], [1], [0, 0, 1, 1], [], []>} : vector<16x64xf32>, vector<64x32xf32>, vector<16x32xf32> -> vector<16x32xf32>
    %c12 = arith.constant 12 : index
    %c0_97 = arith.constant 0 : index
    %289 = vector.load %arg7[%c12, %c0_97] : memref<13x96xf32, #tpu.memory_space<vmem>>, vector<1x32xf32>
    %290 = vector.broadcast %289 : vector<1x32xf32> to vector<16x32xf32>
    %291 = arith.addf %288, %290 : vector<16x32xf32>
    %292 = arith.addf %291, %243 : vector<16x32xf32>
    %293 = tpu.concatenate %292, %45 in 1 : vector<16x32xf32>, vector<16x32xf32> -> vector<16x64xf32>
    %294 = vector.shape_cast %293 : vector<16x64xf32> to vector<2x8x64xf32>
    %c0_98 = arith.constant 0 : index
    %c0_99 = arith.constant 0 : index
    %c0_100 = arith.constant 0 : index
    %295 = vector.load %arg8[%c0_98, %c0_99, %c0_100] : memref<2x8x64xf32, #tpu.memory_space<vmem>>, vector<2x8x64xf32>
    tpu.vector_store %arg8[%c0_98, %c0_99, %c0_100], %294 {strides = array<i32>} : memref<2x8x64xf32, #tpu.memory_space<vmem>>, vector<2x8x64xf32>,
    return
  }
  func.func @transform_0(%arg0: i32) -> (i32, i32, i32) {
    %c0_i32 = arith.constant 0 : i32
    %c0_i32_0 = arith.constant 0 : i32
    %c0_i32_1 = arith.constant 0 : i32
    return %arg0, %c0_i32, %c0_i32_0 : i32, i32, i32
  }
  func.func @transform_1(%arg0: i32) -> (i32, i32, i32) {
    %c0_i32 = arith.constant 0 : i32
    %c0_i32_0 = arith.constant 0 : i32
    %c0_i32_1 = arith.constant 0 : i32
    return %arg0, %c0_i32, %c0_i32_0 : i32, i32, i32
  }
  func.func @transform_2(%arg0: i32) -> (i32, i32, i32) {
    %c0_i32 = arith.constant 0 : i32
    %c0_i32_0 = arith.constant 0 : i32
    %c0_i32_1 = arith.constant 0 : i32
    return %arg0, %c0_i32, %c0_i32_0 : i32, i32, i32
  }
  func.func @transform_3(%arg0: i32) -> (i32, i32, i32) {
    %c0_i32 = arith.constant 0 : i32
    %c0_i32_0 = arith.constant 0 : i32
    %c0_i32_1 = arith.constant 0 : i32
    return %arg0, %c0_i32, %c0_i32_0 : i32, i32, i32
  }
  func.func @transform_4(%arg0: i32) -> (i32, i32) {
    %c0_i32 = arith.constant 0 : i32
    %c0_i32_0 = arith.constant 0 : i32
    %c0_i32_1 = arith.constant 0 : i32
    return %c0_i32, %c0_i32_0 : i32, i32
  }
  func.func @transform_5(%arg0: i32) -> (i32, i32) {
    %c0_i32 = arith.constant 0 : i32
    %c0_i32_0 = arith.constant 0 : i32
    %c0_i32_1 = arith.constant 0 : i32
    return %c0_i32, %c0_i32_0 : i32, i32
  }
  func.func @transform_6(%arg0: i32) -> (i32, i32) {
    %c0_i32 = arith.constant 0 : i32
    %c0_i32_0 = arith.constant 0 : i32
    %c0_i32_1 = arith.constant 0 : i32
    return %c0_i32, %c0_i32_0 : i32, i32
  }
  func.func @transform_7(%arg0: i32) -> (i32, i32, i32) {
    %c0_i32 = arith.constant 0 : i32
    %c0_i32_0 = arith.constant 0 : i32
    %c0_i32_1 = arith.constant 0 : i32
    return %arg0, %c0_i32, %c0_i32_0 : i32, i32, i32
  }
}

</mosaic_0001>

<llo_original>
// kernel: transformer_decoder_layer.1
$region0: #{transformer_decoder_layer.1}
  #allocation0 [shape = 'u32[]', space=smem, size = 0x4, offset = 0x4, fixed_abs, tag = 'smem constant byte address 0x4 - core index']
  #allocation1 [shape = 'u32[144,128]{1,0:T(1,128)}', space=vmem, size = 0x12000, scoped, tag = 'internal scratch']
  %s0 = inlined_call_operand.vmem [shape: f32[2,8,32], index: 0, kind: input, shape index: {}]
  %s1 = inlined_call_operand.vmem [shape: f32[2,16,32], index: 1, kind: input, shape index: {}]
  %s2 = inlined_call_operand.vmem [shape: s32[2,8,8], index: 2, kind: input, shape index: {}]
  %s3 = inlined_call_operand.vmem [shape: s32[2,8,16], index: 3, kind: input, shape index: {}]
  %s4 = inlined_call_operand.vmem [shape: f32[32,320], index: 4, kind: input, shape index: {}]
  %s5 = inlined_call_operand.vmem [shape: f32[64,32], index: 5, kind: input, shape index: {}]
  %s6 = inlined_call_operand.vmem [shape: f32[13,96], index: 6, kind: input, shape index: {}]
  %s7 = inlined_call_operand.vmem [shape: f32[2,8,64], index: 7, kind: output, shape index: {}]
  %s8 = sld [smem:[#allocation0]]
  $region38: #{transformer_decoder_layer.1} parent=0
    _
  %s10 = ssub.s32 1, %s8
  %s11 = scalar_select 0, %s10, %s8
  // Predicated region
  $region2: #{transformer_decoder_layer.1} parent=0 // pred_check
    _
  $region3: #{transformer_decoder_layer.1} parent=0 // pred_check_branch
    %13 = sbr.rel (0) target = $region5
  $region4: #{transformer_decoder_layer.1} parent=0 // pred_region
    _
  $region5: #{transformer_decoder_layer.1} parent=0 // pred_fallthru
    _
  // Predicated region
  $region6: #{transformer_decoder_layer.1} parent=0 // pred_check
    _
  $region7: #{transformer_decoder_layer.1} parent=0 // pred_check_branch
    %15 = sbr.rel (0) target = $region9
  $region8: #{transformer_decoder_layer.1} parent=0 // pred_region
    _
  $region9: #{transformer_decoder_layer.1} parent=0 // pred_fallthru
    _
  // Predicated region
  $region10: #{transformer_decoder_layer.1} parent=0 // pred_check
    _
  $region11: #{transformer_decoder_layer.1} parent=0 // pred_check_branch
    %17 = sbr.rel (0) target = $region13
  $region12: #{transformer_decoder_layer.1} parent=0 // pred_region
    _
  $region13: #{transformer_decoder_layer.1} parent=0 // pred_fallthru
    _
  // Predicated region
  $region14: #{transformer_decoder_layer.1} parent=0 // pred_check
    _
  $region15: #{transformer_decoder_layer.1} parent=0 // pred_check_branch
    %19 = sbr.rel (0) target = $region17
  $region16: #{transformer_decoder_layer.1} parent=0 // pred_region
    _
  $region17: #{transformer_decoder_layer.1} parent=0 // pred_fallthru
    _
  // Predicated region
  $region18: #{transformer_decoder_layer.1} parent=0 // pred_check
    _
  $region19: #{transformer_decoder_layer.1} parent=0 // pred_check_branch
    %21 = sbr.rel (0) target = $region21
  $region20: #{transformer_decoder_layer.1} parent=0 // pred_region
    _
  $region21: #{transformer_decoder_layer.1} parent=0 // pred_fallthru
    _
  // Predicated region
  $region22: #{transformer_decoder_layer.1} parent=0 // pred_check
    _
  $region23: #{transformer_decoder_layer.1} parent=0 // pred_check_branch
    %23 = sbr.rel (0) target = $region25
  $region24: #{transformer_decoder_layer.1} parent=0 // pred_region
    _
  $region25: #{transformer_decoder_layer.1} parent=0 // pred_fallthru
    _
  // Predicated region
  $region26: #{transformer_decoder_layer.1} parent=0 // pred_check
    _
  $region27: #{transformer_decoder_layer.1} parent=0 // pred_check_branch
    %25 = sbr.rel (0) target = $region29
  $region28: #{transformer_decoder_layer.1} parent=0 // pred_region
    _
  $region29: #{transformer_decoder_layer.1} parent=0 // pred_fallthru
    _
  %v26 = vld [vmem:[%s0] sm:$0xff]
  %v27 = vld [vmem:[%s0 + $0x8] sm:$0xff]
  %v28 = vld [vmem:[%s1] sm:$0xff]
  %v29 = vld [vmem:[%s1 + $0x8] sm:$0xff]
  %v30 = vld [vmem:[%s1 + $0x10] sm:$0xff]
  %v31 = vld [vmem:[%s1 + $0x18] sm:$0xff]
  %v32 = vlaneseq
  %v33 = vshrl.u32 %v32, 7
  %v34 = vlaneseq
  %v35 = vand.u32 %v34, 127
  %vm36 = vcmp.gt.s32.totalorder %v35, %v33
  %v37 = vld [vmem:[%s2] sm:$0xff]
  %v38 = vld [vmem:[%s2 + $0x8] sm:$0xff]
  %vm39 = vcmp.gt.s32.totalorder %v37, 0
  %vm40 = vcmp.gt.s32.totalorder %v38, 0
  %v41 = vsel %vm36, 1, 0
  %vm42 = vcmp.eq.s32.totalorder %v41, 1
  %vm43 = vmor %vm39, %vm42
  %vm44 = vmor %vm40, %vm42
  %v45 = vsel %vm43, -1e+18, 0.0
  %v46 = vsel %vm44, -1e+18, 0.0
  %v47 = vld [vmem:[%s3] sm:$0xff]
  %v48 = vld [vmem:[%s3 + $0x8] sm:$0xff]
  %vm49 = vcmp.gt.s32.totalorder %v47, 0
  %vm50 = vcmp.gt.s32.totalorder %v48, 0
  %v51 = vsel %vm49, -1e+18, 0.0
  %v52 = vsel %vm50, -1e+18, 0.0
  %v53 = vld [vmem:[%s6] sm:$0x1]
  %v54 = vld [vmem:[%s6 + $0x1] sm:$0x1]
  %vm55 = vcmask 261120
  %v56 = vsel %vm55, %v26, 0.0
  %57 = vadd.xlane.f32.xlu0 %v56
  %v58 = vpop.xlane.xlu0 %57
  %v59 = vsel %vm55, %v27, 0.0
  %60 = vadd.xlane.f32.xlu0 %v59
  %v61 = vpop.xlane.xlu0 %60
  %v62 = vrcp.pop 32.0
  %v63 = vmul.f32 %v58, %v62
  %v64 = vmul.f32 %v61, %v62
  %v65 = vsub.f32 %v26, %v63
  %v66 = vsub.f32 %v27, %v64
  %v67 = vmul.f32 %v65, %v65
  %v68 = vmul.f32 %v66, %v66
  %v69 = vsel %vm55, %v67, 0.0
  %70 = vadd.xlane.f32.xlu0 %v69
  %v71 = vpop.xlane.xlu0 %70
  %v72 = vsel %vm55, %v68, 0.0
  %73 = vadd.xlane.f32.xlu0 %v72
  %v74 = vpop.xlane.xlu0 %73
  %v75 = vmul.f32 %v71, %v62
  %v76 = vmul.f32 %v74, %v62
  %v77 = vadd.f32 %v75, 1e-06
  %v78 = vadd.f32 %v76, 1e-06
  %v79 = vrsqrt.pop %v77
  %v80 = vrsqrt.pop %v78
  %v81 = vmul.f32 %v65, %v79
  %v82 = vmul.f32 %v66, %v80
  %v83 = vlaneseq
  %v84 = vshrl.u32 %v83, 7
  %v85 = vsub.s32 0, %v84
  %v86 = vrot.slane %v53, %v85
  %v87 = vmul.f32 %v81, %v86
  %v88 = vmul.f32 %v82, %v86
  %v89 = vlaneseq
  %v90 = vshrl.u32 %v89, 7
  %v91 = vsub.s32 0, %v90
  %v92 = vrot.slane %v54, %v91
  %v93 = vadd.f32 %v87, %v92
  %v94 = vadd.f32 %v88, %v92
  %v95 = vld [vmem:[%s4] sm:$0xff]
  %v96 = vld [vmem:[%s4 + $0x18] sm:$0xff]
  %v97 = vld [vmem:[%s4 + $0x30] sm:$0xff]
  %v98 = vld [vmem:[%s4 + $0x48] sm:$0xff]
  %v99 = vld [vmem:[%s6 + $0x2] sm:$0x1]
  %v100 = vlaneseq
  %v101 = vshrl.u32 %v100, 7
  %v102 = vsub.s32 0, %v101
  %v103 = vrot.slane %v99, %v102
  %v105 = vsel %vm55, %v93, 0
  %v108 = vsel %vm55, %v94, 0
  %110 = vmatprep.subr.mxu0 0.0
  %111 = vmatpush1.msra.mxu0 %v95
  %112 = vmatprep.subr.mxu0 0.0
  %113 = vmatpush1.msra.mxu0 %v96
  %114 = vmatprep.subr.mxu0 0.0
  %115 = vmatpush1.msra.mxu0 %v97
  %116 = vmatprep.subr.mxu0 0.0
  %117 = vmatpush1.msra.mxu0 %v98
  %118 = vmatprep.subr.mxu0 0.0
  %119 = vmatpush1.msra.mxu0 0.0
  %120 = vmatprep.subr.mxu0 0.0
  %121 = vmatpush1.msra.mxu0 0.0
  %122 = vmatprep.subr.mxu0 0.0
  %123 = vmatpush1.msra.mxu0 0.0
  %124 = vmatprep.subr.mxu0 0.0
  %125 = vmatpush1.msra.mxu0 0.0
  %126 = vmatprep.subr.mxu0 0.0
  %127 = vmatpush1.msra.mxu0 0.0
  %128 = vmatprep.subr.mxu0 0.0
  %129 = vmatpush1.msra.mxu0 0.0
  %130 = vmatprep.subr.mxu0 0.0
  %131 = vmatpush1.msra.mxu0 0.0
  %132 = vmatprep.subr.mxu0 0.0
  %133 = vmatpush1.msra.mxu0 0.0
  %134 = vmatprep.subr.mxu0 0.0
  %135 = vmatpush1.msra.mxu0 0.0
  %136 = vmatprep.subr.mxu0 0.0
  %137 = vmatpush1.msra.mxu0 0.0
  %138 = vmatprep.subr.mxu0 0.0
  %139 = vmatpush1.msra.mxu0 0.0
  %140 = vmatprep.subr.mxu0 0.0
  %141 = vmatpush1.msra.mxu0 0.0
  %142 = vmatprep.subr.mxu0 0.0
  %143 = vmatpush1.msra.mxu0 0.0
  %144 = vmatprep.subr.mxu0 0.0
  %145 = vmatpush1.msra.mxu0 0.0
  %146 = vmatprep.subr.mxu0 0.0
  %147 = vmatpush1.msra.mxu0 0.0
  %148 = vmatprep.subr.mxu0 0.0
  %149 = vmatpush1.msra.mxu0 0.0
  %150 = vmatprep.subr.mxu0 0.0
  %151 = vmatpush1.msra.mxu0 0.0
  %152 = vmatprep.subr.mxu0 0.0
  %153 = vmatpush1.msra.mxu0 0.0
  %154 = vmatprep.subr.mxu0 0.0
  %155 = vmatpush1.msra.mxu0 0.0
  %156 = vmatprep.subr.mxu0 0.0
  %157 = vmatpush1.msra.mxu0 0.0
  %158 = vmatprep.subr.mxu0 0.0
  %159 = vmatpush1.msra.mxu0 0.0
  %160 = vmatprep.subr.mxu0 0.0
  %161 = vmatpush1.msra.mxu0 0.0
  %162 = vmatprep.subr.mxu0 0.0
  %163 = vmatpush1.msra.mxu0 0.0
  %164 = vmatprep.subr.mxu0 0.0
  %165 = vmatpush1.msra.mxu0 0.0
  %166 = vmatprep.subr.mxu0 0.0
  %167 = vmatpush1.msra.mxu0 0.0
  %168 = vmatprep.subr.mxu0 0.0
  %169 = vmatpush1.msra.mxu0 0.0
  %170 = vmatprep.subr.mxu0 0.0
  %171 = vmatpush1.msra.mxu0 0.0
  %172 = vmatprep.subr.mxu0 0.0
  %173 = vmatpush1.msra.mxu0 0.0
  %174 = vmatprep.mubr.f32.mxu0 0.0
  %175 = vmatmul.mubr.f32.gmra.mrb[0].mxu0 %v105
  %v176 = vpop.f32.mrb[0].mxu0
  %v177 = vadd.f32 %v103, %v176
  %v178 = vpop.f32.mrb[0].mxu0
  %179 = vmatprep.mubr.f32.mxu0 0.0
  %180 = vmatmul.mubr.f32.gmra.mrb[0].mxu0 %v108
  %v181 = vpop.f32.mrb[0].mxu0
  %v182 = vadd.f32 %v103, %v181
  %v183 = vpop.f32.mrb[0].mxu0
  %184 = vdwg.mxu0
  %v185 = vmul.f32 %v177, 0.35355338
  %v186 = vmul.f32 %v182, 0.35355338
  %v187 = vld [vmem:[%s6 + $0x3] sm:$0x1]
  %189 = vrot.lane.b32.xlu0 %v177, 96
  %v190 = vpop.permute.xlu0 %189
  %vm191 = vcmask 64512
  %v193 = vsel %vm191, %v185, 0
  %v195 = vsel %vm191, %v190, 0
  %197 = vmatprep.subr.mxu0 0.0
  %198 = vmatpush1.xpose.msra.mxu0 %v195
  %199 = vmatprep.subr.mxu0 0.0
  %200 = vmatpush1.xpose.msra.mxu0 0.0
  %201 = vmatprep.subr.mxu0 0.0
  %202 = vmatpush1.xpose.msra.mxu0 0.0
  %203 = vmatprep.subr.mxu0 0.0
  %204 = vmatpush1.xpose.msra.mxu0 0.0
  %205 = vmatprep.subr.mxu0 0.0
  %206 = vmatpush1.xpose.msra.mxu0 0.0
  %207 = vmatprep.subr.mxu0 0.0
  %208 = vmatpush1.xpose.msra.mxu0 0.0
  %209 = vmatprep.subr.mxu0 0.0
  %210 = vmatpush1.xpose.msra.mxu0 0.0
  %211 = vmatprep.subr.mxu0 0.0
  %212 = vmatpush1.xpose.msra.mxu0 0.0
  %213 = vmatprep.subr.mxu0 0.0
  %214 = vmatpush1.xpose.msra.mxu0 0.0
  %215 = vmatprep.subr.mxu0 0.0
  %216 = vmatpush1.xpose.msra.mxu0 0.0
  %217 = vmatprep.subr.mxu0 0.0
  %218 = vmatpush1.xpose.msra.mxu0 0.0
  %219 = vmatprep.subr.mxu0 0.0
  %220 = vmatpush1.xpose.msra.mxu0 0.0
  %221 = vmatprep.subr.mxu0 0.0
  %222 = vmatpush1.xpose.msra.mxu0 0.0
  %223 = vmatprep.subr.mxu0 0.0
  %224 = vmatpush1.xpose.msra.mxu0 0.0
  %225 = vmatprep.subr.mxu0 0.0
  %226 = vmatpush1.xpose.msra.mxu0 0.0
  %227 = vmatprep.subr.mxu0 0.0
  %228 = vmatpush1.xpose.msra.mxu0 0.0
  %229 = vmatprep.subr.mxu0 0.0
  %230 = vmatpush1.xpose.msra.mxu0 0.0
  %231 = vmatprep.subr.mxu0 0.0
  %232 = vmatpush1.xpose.msra.mxu0 0.0
  %233 = vmatprep.subr.mxu0 0.0
  %234 = vmatpush1.xpose.msra.mxu0 0.0
  %235 = vmatprep.subr.mxu0 0.0
  %236 = vmatpush1.xpose.msra.mxu0 0.0
  %237 = vmatprep.subr.mxu0 0.0
  %238 = vmatpush1.xpose.msra.mxu0 0.0
  %239 = vmatprep.subr.mxu0 0.0
  %240 = vmatpush1.xpose.msra.mxu0 0.0
  %241 = vmatprep.subr.mxu0 0.0
  %242 = vmatpush1.xpose.msra.mxu0 0.0
  %243 = vmatprep.subr.mxu0 0.0
  %244 = vmatpush1.xpose.msra.mxu0 0.0
  %245 = vmatprep.subr.mxu0 0.0
  %246 = vmatpush1.xpose.msra.mxu0 0.0
  %247 = vmatprep.subr.mxu0 0.0
  %248 = vmatpush1.xpose.msra.mxu0 0.0
  %249 = vmatprep.subr.mxu0 0.0
  %250 = vmatpush1.xpose.msra.mxu0 0.0
  %251 = vmatprep.subr.mxu0 0.0
  %252 = vmatpush1.xpose.msra.mxu0 0.0
  %253 = vmatprep.subr.mxu0 0.0
  %254 = vmatpush1.xpose.msra.mxu0 0.0
  %255 = vmatprep.subr.mxu0 0.0
  %256 = vmatpush1.xpose.msra.mxu0 0.0
  %257 = vmatprep.subr.mxu0 0.0
  %258 = vmatpush1.xpose.msra.mxu0 0.0
  %259 = vmatprep.subr.mxu0 0.0
  %260 = vmatpush1.xpose.msra.mxu0 0.0
  %261 = vmatprep.mubr.f32.mxu0 0.0
  %262 = vmatmul.mubr.f32.gmra.mrb[0].mxu0 %v193
  %v263 = vpop.f32.mrb[0].mxu0
  %v264 = vadd.f32 %v45, %v263
  %v265 = vpop.f32.mrb[0].mxu0
  %266 = vdwg.mxu0
  %268 = vrot.lane.b32.xlu0 %v182, 96
  %v269 = vpop.permute.xlu0 %268
  %v271 = vsel %vm191, %v186, 0
  %v273 = vsel %vm191, %v269, 0
  %275 = vmatprep.subr.mxu0 0.0
  %276 = vmatpush1.xpose.msra.mxu0 %v273
  %277 = vmatprep.subr.mxu0 0.0
  %278 = vmatpush1.xpose.msra.mxu0 0.0
  %279 = vmatprep.subr.mxu0 0.0
  %280 = vmatpush1.xpose.msra.mxu0 0.0
  %281 = vmatprep.subr.mxu0 0.0
  %282 = vmatpush1.xpose.msra.mxu0 0.0
  %283 = vmatprep.subr.mxu0 0.0
  %284 = vmatpush1.xpose.msra.mxu0 0.0
  %285 = vmatprep.subr.mxu0 0.0
  %286 = vmatpush1.xpose.msra.mxu0 0.0
  %287 = vmatprep.subr.mxu0 0.0
  %288 = vmatpush1.xpose.msra.mxu0 0.0
  %289 = vmatprep.subr.mxu0 0.0
  %290 = vmatpush1.xpose.msra.mxu0 0.0
  %291 = vmatprep.subr.mxu0 0.0
  %292 = vmatpush1.xpose.msra.mxu0 0.0
  %293 = vmatprep.subr.mxu0 0.0
  %294 = vmatpush1.xpose.msra.mxu0 0.0
  %295 = vmatprep.subr.mxu0 0.0
  %296 = vmatpush1.xpose.msra.mxu0 0.0
  %297 = vmatprep.subr.mxu0 0.0
  %298 = vmatpush1.xpose.msra.mxu0 0.0
  %299 = vmatprep.subr.mxu0 0.0
  %300 = vmatpush1.xpose.msra.mxu0 0.0
  %301 = vmatprep.subr.mxu0 0.0
  %302 = vmatpush1.xpose.msra.mxu0 0.0
  %303 = vmatprep.subr.mxu0 0.0
  %304 = vmatpush1.xpose.msra.mxu0 0.0
  %305 = vmatprep.subr.mxu0 0.0
  %306 = vmatpush1.xpose.msra.mxu0 0.0
  %307 = vmatprep.subr.mxu0 0.0
  %308 = vmatpush1.xpose.msra.mxu0 0.0
  %309 = vmatprep.subr.mxu0 0.0
  %310 = vmatpush1.xpose.msra.mxu0 0.0
  %311 = vmatprep.subr.mxu0 0.0
  %312 = vmatpush1.xpose.msra.mxu0 0.0
  %313 = vmatprep.subr.mxu0 0.0
  %314 = vmatpush1.xpose.msra.mxu0 0.0
  %315 = vmatprep.subr.mxu0 0.0
  %316 = vmatpush1.xpose.msra.mxu0 0.0
  %317 = vmatprep.subr.mxu0 0.0
  %318 = vmatpush1.xpose.msra.mxu0 0.0
  %319 = vmatprep.subr.mxu0 0.0
  %320 = vmatpush1.xpose.msra.mxu0 0.0
  %321 = vmatprep.subr.mxu0 0.0
  %322 = vmatpush1.xpose.msra.mxu0 0.0
  %323 = vmatprep.subr.mxu0 0.0
  %324 = vmatpush1.xpose.msra.mxu0 0.0
  %325 = vmatprep.subr.mxu0 0.0
  %326 = vmatpush1.xpose.msra.mxu0 0.0
  %327 = vmatprep.subr.mxu0 0.0
  %328 = vmatpush1.xpose.msra.mxu0 0.0
  %329 = vmatprep.subr.mxu0 0.0
  %330 = vmatpush1.xpose.msra.mxu0 0.0
  %331 = vmatprep.subr.mxu0 0.0
  %332 = vmatpush1.xpose.msra.mxu0 0.0
  %333 = vmatprep.subr.mxu0 0.0
  %334 = vmatpush1.xpose.msra.mxu0 0.0
  %335 = vmatprep.subr.mxu0 0.0
  %336 = vmatpush1.xpose.msra.mxu0 0.0
  %337 = vmatprep.subr.mxu0 0.0
  %338 = vmatpush1.xpose.msra.mxu0 0.0
  %339 = vmatprep.mubr.f32.mxu0 0.0
  %340 = vmatmul.mubr.f32.gmra.mrb[0].mxu0 %v271
  %v341 = vpop.f32.mrb[0].mxu0
  %v342 = vadd.f32 %v46, %v341
  %v343 = vpop.f32.mrb[0].mxu0
  %344 = vdwg.mxu0
  %v345 = vsel %vm191, %v264, -inf
  %346 = vmax.xlane.f32.xlu0 %v345
  %v347 = vpop.xlane.xlu0 %346
  %v348 = vsel %vm191, %v342, -inf
  %349 = vmax.xlane.f32.xlu0 %v348
  %v350 = vpop.xlane.xlu0 %349
  %v351 = vsub.f32 %v264, %v347
  %v352 = vsub.f32 %v342, %v350
  %v353 = vmul.f32 %v351, 1.442695
  %v354 = vpow.pop %v353
  %v355 = vmul.f32 %v352, 1.442695
  %v356 = vpow.pop %v355
  %v357 = vsel %vm191, %v354, 0.0
  %358 = vadd.xlane.f32.xlu0 %v357
  %v359 = vpop.xlane.xlu0 %358
  %v360 = vsel %vm191, %v356, 0.0
  %361 = vadd.xlane.f32.xlu0 %v360
  %v362 = vpop.xlane.xlu0 %361
  %v363 = vrcp.pop %v359
  %v364 = vrcp.pop %v362
  %v365 = vmul.f32 %v354, %v363
  %v366 = vmul.f32 %v356, %v364
  %367 = vrot.lane.b32.xlu0 %v177, 64
  %v368 = vpop.permute.xlu0 %367
  %v371 = vsel %vm191, %v365, 0
  %373 = vmatprep.subr.mxu0 0.0
  %374 = vmatpush1.msra.mxu0 %v368
  %375 = vmatprep.subr.mxu0 0.0
  %376 = vmatpush1.msra.mxu0 0.0
  %377 = vmatprep.subr.mxu0 0.0
  %378 = vmatpush1.msra.mxu0 0.0
  %379 = vmatprep.subr.mxu0 0.0
  %380 = vmatpush1.msra.mxu0 0.0
  %381 = vmatprep.subr.mxu0 0.0
  %382 = vmatpush1.msra.mxu0 0.0
  %383 = vmatprep.subr.mxu0 0.0
  %384 = vmatpush1.msra.mxu0 0.0
  %385 = vmatprep.subr.mxu0 0.0
  %386 = vmatpush1.msra.mxu0 0.0
  %387 = vmatprep.subr.mxu0 0.0
  %388 = vmatpush1.msra.mxu0 0.0
  %389 = vmatprep.subr.mxu0 0.0
  %390 = vmatpush1.msra.mxu0 0.0
  %391 = vmatprep.subr.mxu0 0.0
  %392 = vmatpush1.msra.mxu0 0.0
  %393 = vmatprep.subr.mxu0 0.0
  %394 = vmatpush1.msra.mxu0 0.0
  %395 = vmatprep.subr.mxu0 0.0
  %396 = vmatpush1.msra.mxu0 0.0
  %397 = vmatprep.subr.mxu0 0.0
  %398 = vmatpush1.msra.mxu0 0.0
  %399 = vmatprep.subr.mxu0 0.0
  %400 = vmatpush1.msra.mxu0 0.0
  %401 = vmatprep.subr.mxu0 0.0
  %402 = vmatpush1.msra.mxu0 0.0
  %403 = vmatprep.subr.mxu0 0.0
  %404 = vmatpush1.msra.mxu0 0.0
  %405 = vmatprep.subr.mxu0 0.0
  %406 = vmatpush1.msra.mxu0 0.0
  %407 = vmatprep.subr.mxu0 0.0
  %408 = vmatpush1.msra.mxu0 0.0
  %409 = vmatprep.subr.mxu0 0.0
  %410 = vmatpush1.msra.mxu0 0.0
  %411 = vmatprep.subr.mxu0 0.0
  %412 = vmatpush1.msra.mxu0 0.0
  %413 = vmatprep.subr.mxu0 0.0
  %414 = vmatpush1.msra.mxu0 0.0
  %415 = vmatprep.subr.mxu0 0.0
  %416 = vmatpush1.msra.mxu0 0.0
  %417 = vmatprep.subr.mxu0 0.0
  %418 = vmatpush1.msra.mxu0 0.0
  %419 = vmatprep.subr.mxu0 0.0
  %420 = vmatpush1.msra.mxu0 0.0
  %421 = vmatprep.subr.mxu0 0.0
  %422 = vmatpush1.msra.mxu0 0.0
  %423 = vmatprep.subr.mxu0 0.0
  %424 = vmatpush1.msra.mxu0 0.0
  %425 = vmatprep.subr.mxu0 0.0
  %426 = vmatpush1.msra.mxu0 0.0
  %427 = vmatprep.subr.mxu0 0.0
  %428 = vmatpush1.msra.mxu0 0.0
  %429 = vmatprep.subr.mxu0 0.0
  %430 = vmatpush1.msra.mxu0 0.0
  %431 = vmatprep.subr.mxu0 0.0
  %432 = vmatpush1.msra.mxu0 0.0
  %433 = vmatprep.subr.mxu0 0.0
  %434 = vmatpush1.msra.mxu0 0.0
  %435 = vmatprep.subr.mxu0 0.0
  %436 = vmatpush1.msra.mxu0 0.0
  %437 = vmatprep.mubr.f32.mxu0 0.0
  %438 = vmatmul.mubr.f32.gmra.mrb[0].mxu0 %v371
  %v439 = vpop.f32.mrb[0].mxu0
  %v440 = vadd.f32 0.0, %v439
  %v441 = vpop.f32.mrb[0].mxu0
  %442 = vdwg.mxu0
  %443 = vrot.lane.b32.xlu0 %v182, 64
  %v444 = vpop.permute.xlu0 %443
  %v447 = vsel %vm191, %v366, 0
  %449 = vmatprep.subr.mxu0 0.0
  %450 = vmatpush1.msra.mxu0 %v444
  %451 = vmatprep.subr.mxu0 0.0
  %452 = vmatpush1.msra.mxu0 0.0
  %453 = vmatprep.subr.mxu0 0.0
  %454 = vmatpush1.msra.mxu0 0.0
  %455 = vmatprep.subr.mxu0 0.0
  %456 = vmatpush1.msra.mxu0 0.0
  %457 = vmatprep.subr.mxu0 0.0
  %458 = vmatpush1.msra.mxu0 0.0
  %459 = vmatprep.subr.mxu0 0.0
  %460 = vmatpush1.msra.mxu0 0.0
  %461 = vmatprep.subr.mxu0 0.0
  %462 = vmatpush1.msra.mxu0 0.0
  %463 = vmatprep.subr.mxu0 0.0
  %464 = vmatpush1.msra.mxu0 0.0
  %465 = vmatprep.subr.mxu0 0.0
  %466 = vmatpush1.msra.mxu0 0.0
  %467 = vmatprep.subr.mxu0 0.0
  %468 = vmatpush1.msra.mxu0 0.0
  %469 = vmatprep.subr.mxu0 0.0
  %470 = vmatpush1.msra.mxu0 0.0
  %471 = vmatprep.subr.mxu0 0.0
  %472 = vmatpush1.msra.mxu0 0.0
  %473 = vmatprep.subr.mxu0 0.0
  %474 = vmatpush1.msra.mxu0 0.0
  %475 = vmatprep.subr.mxu0 0.0
  %476 = vmatpush1.msra.mxu0 0.0
  %477 = vmatprep.subr.mxu0 0.0
  %478 = vmatpush1.msra.mxu0 0.0
  %479 = vmatprep.subr.mxu0 0.0
  %480 = vmatpush1.msra.mxu0 0.0
  %481 = vmatprep.subr.mxu0 0.0
  %482 = vmatpush1.msra.mxu0 0.0
  %483 = vmatprep.subr.mxu0 0.0
  %484 = vmatpush1.msra.mxu0 0.0
  %485 = vmatprep.subr.mxu0 0.0
  %486 = vmatpush1.msra.mxu0 0.0
  %487 = vmatprep.subr.mxu0 0.0
  %488 = vmatpush1.msra.mxu0 0.0
  %489 = vmatprep.subr.mxu0 0.0
  %490 = vmatpush1.msra.mxu0 0.0
  %491 = vmatprep.subr.mxu0 0.0
  %492 = vmatpush1.msra.mxu0 0.0
  %493 = vmatprep.subr.mxu0 0.0
  %494 = vmatpush1.msra.mxu0 0.0
  %495 = vmatprep.subr.mxu0 0.0
  %496 = vmatpush1.msra.mxu0 0.0
  %497 = vmatprep.subr.mxu0 0.0
  %498 = vmatpush1.msra.mxu0 0.0
  %499 = vmatprep.subr.mxu0 0.0
  %500 = vmatpush1.msra.mxu0 0.0
  %501 = vmatprep.subr.mxu0 0.0
  %502 = vmatpush1.msra.mxu0 0.0
  %503 = vmatprep.subr.mxu0 0.0
  %504 = vmatpush1.msra.mxu0 0.0
  %505 = vmatprep.subr.mxu0 0.0
  %506 = vmatpush1.msra.mxu0 0.0
  %507 = vmatprep.subr.mxu0 0.0
  %508 = vmatpush1.msra.mxu0 0.0
  %509 = vmatprep.subr.mxu0 0.0
  %510 = vmatpush1.msra.mxu0 0.0
  %511 = vmatprep.subr.mxu0 0.0
  %512 = vmatpush1.msra.mxu0 0.0
  %513 = vmatprep.mubr.f32.mxu0 0.0
  %514 = vmatmul.mubr.f32.gmra.mrb[0].mxu0 %v447
  %v515 = vpop.f32.mrb[0].mxu0
  %v516 = vadd.f32 0.0, %v515
  %v517 = vpop.f32.mrb[0].mxu0
  %518 = vdwg.mxu0
  %519 = vrot.lane.b32.xlu0 %v185, 120
  %v520 = vpop.permute.xlu0 %519
  %521 = vrot.lane.b32.xlu0 %v177, 88
  %v522 = vpop.permute.xlu0 %521
  %v523 = vsel %vm191, %v520, 0
  %v525 = vsel %vm191, %v522, 0
  %527 = vmatprep.subr.mxu0 0.0
  %528 = vmatpush1.xpose.msra.mxu0 %v525
  %529 = vmatprep.subr.mxu0 0.0
  %530 = vmatpush1.xpose.msra.mxu0 0.0
  %531 = vmatprep.subr.mxu0 0.0
  %532 = vmatpush1.xpose.msra.mxu0 0.0
  %533 = vmatprep.subr.mxu0 0.0
  %534 = vmatpush1.xpose.msra.mxu0 0.0
  %535 = vmatprep.subr.mxu0 0.0
  %536 = vmatpush1.xpose.msra.mxu0 0.0
  %537 = vmatprep.subr.mxu0 0.0
  %538 = vmatpush1.xpose.msra.mxu0 0.0
  %539 = vmatprep.subr.mxu0 0.0
  %540 = vmatpush1.xpose.msra.mxu0 0.0
  %541 = vmatprep.subr.mxu0 0.0
  %542 = vmatpush1.xpose.msra.mxu0 0.0
  %543 = vmatprep.subr.mxu0 0.0
  %544 = vmatpush1.xpose.msra.mxu0 0.0
  %545 = vmatprep.subr.mxu0 0.0
  %546 = vmatpush1.xpose.msra.mxu0 0.0
  %547 = vmatprep.subr.mxu0 0.0
  %548 = vmatpush1.xpose.msra.mxu0 0.0
  %549 = vmatprep.subr.mxu0 0.0
  %550 = vmatpush1.xpose.msra.mxu0 0.0
  %551 = vmatprep.subr.mxu0 0.0
  %552 = vmatpush1.xpose.msra.mxu0 0.0
  %553 = vmatprep.subr.mxu0 0.0
  %554 = vmatpush1.xpose.msra.mxu0 0.0
  %555 = vmatprep.subr.mxu0 0.0
  %556 = vmatpush1.xpose.msra.mxu0 0.0
  %557 = vmatprep.subr.mxu0 0.0
  %558 = vmatpush1.xpose.msra.mxu0 0.0
  %559 = vmatprep.subr.mxu0 0.0
  %560 = vmatpush1.xpose.msra.mxu0 0.0
  %561 = vmatprep.subr.mxu0 0.0
  %562 = vmatpush1.xpose.msra.mxu0 0.0
  %563 = vmatprep.subr.mxu0 0.0
  %564 = vmatpush1.xpose.msra.mxu0 0.0
  %565 = vmatprep.subr.mxu0 0.0
  %566 = vmatpush1.xpose.msra.mxu0 0.0
  %567 = vmatprep.subr.mxu0 0.0
  %568 = vmatpush1.xpose.msra.mxu0 0.0
  %569 = vmatprep.subr.mxu0 0.0
  %570 = vmatpush1.xpose.msra.mxu0 0.0
  %571 = vmatprep.subr.mxu0 0.0
  %572 = vmatpush1.xpose.msra.mxu0 0.0
  %573 = vmatprep.subr.mxu0 0.0
  %574 = vmatpush1.xpose.msra.mxu0 0.0
  %575 = vmatprep.subr.mxu0 0.0
  %576 = vmatpush1.xpose.msra.mxu0 0.0
  %577 = vmatprep.subr.mxu0 0.0
  %578 = vmatpush1.xpose.msra.mxu0 0.0
  %579 = vmatprep.subr.mxu0 0.0
  %580 = vmatpush1.xpose.msra.mxu0 0.0
  %581 = vmatprep.subr.mxu0 0.0
  %582 = vmatpush1.xpose.msra.mxu0 0.0
  %583 = vmatprep.subr.mxu0 0.0
  %584 = vmatpush1.xpose.msra.mxu0 0.0
  %585 = vmatprep.subr.mxu0 0.0
  %586 = vmatpush1.xpose.msra.mxu0 0.0
  %587 = vmatprep.subr.mxu0 0.0
  %588 = vmatpush1.xpose.msra.mxu0 0.0
  %589 = vmatprep.subr.mxu0 0.0
  %590 = vmatpush1.xpose.msra.mxu0 0.0
  %591 = vmatprep.mubr.f32.mxu0 0.0
  %592 = vmatmul.mubr.f32.gmra.mrb[0].mxu0 %v523
  %v593 = vpop.f32.mrb[0].mxu0
  %v594 = vadd.f32 %v45, %v593
  %v595 = vpop.f32.mrb[0].mxu0
  %596 = vdwg.mxu0
  %597 = vrot.lane.b32.xlu0 %v186, 120
  %v598 = vpop.permute.xlu0 %597
  %599 = vrot.lane.b32.xlu0 %v182, 88
  %v600 = vpop.permute.xlu0 %599
  %v601 = vsel %vm191, %v598, 0
  %v603 = vsel %vm191, %v600, 0
  %605 = vmatprep.subr.mxu0 0.0
  %606 = vmatpush1.xpose.msra.mxu0 %v603
  %607 = vmatprep.subr.mxu0 0.0
  %608 = vmatpush1.xpose.msra.mxu0 0.0
  %609 = vmatprep.subr.mxu0 0.0
  %610 = vmatpush1.xpose.msra.mxu0 0.0
  %611 = vmatprep.subr.mxu0 0.0
  %612 = vmatpush1.xpose.msra.mxu0 0.0
  %613 = vmatprep.subr.mxu0 0.0
  %614 = vmatpush1.xpose.msra.mxu0 0.0
  %615 = vmatprep.subr.mxu0 0.0
  %616 = vmatpush1.xpose.msra.mxu0 0.0
  %617 = vmatprep.subr.mxu0 0.0
  %618 = vmatpush1.xpose.msra.mxu0 0.0
  %619 = vmatprep.subr.mxu0 0.0
  %620 = vmatpush1.xpose.msra.mxu0 0.0
  %621 = vmatprep.subr.mxu0 0.0
  %622 = vmatpush1.xpose.msra.mxu0 0.0
  %623 = vmatprep.subr.mxu0 0.0
  %624 = vmatpush1.xpose.msra.mxu0 0.0
  %625 = vmatprep.subr.mxu0 0.0
  %626 = vmatpush1.xpose.msra.mxu0 0.0
  %627 = vmatprep.subr.mxu0 0.0
  %628 = vmatpush1.xpose.msra.mxu0 0.0
  %629 = vmatprep.subr.mxu0 0.0
  %630 = vmatpush1.xpose.msra.mxu0 0.0
  %631 = vmatprep.subr.mxu0 0.0
  %632 = vmatpush1.xpose.msra.mxu0 0.0
  %633 = vmatprep.subr.mxu0 0.0
  %634 = vmatpush1.xpose.msra.mxu0 0.0
  %635 = vmatprep.subr.mxu0 0.0
  %636 = vmatpush1.xpose.msra.mxu0 0.0
  %637 = vmatprep.subr.mxu0 0.0
  %638 = vmatpush1.xpose.msra.mxu0 0.0
  %639 = vmatprep.subr.mxu0 0.0
  %640 = vmatpush1.xpose.msra.mxu0 0.0
  %641 = vmatprep.subr.mxu0 0.0
  %642 = vmatpush1.xpose.msra.mxu0 0.0
  %643 = vmatprep.subr.mxu0 0.0
  %644 = vmatpush1.xpose.msra.mxu0 0.0
  %645 = vmatprep.subr.mxu0 0.0
  %646 = vmatpush1.xpose.msra.mxu0 0.0
  %647 = vmatprep.subr.mxu0 0.0
  %648 = vmatpush1.xpose.msra.mxu0 0.0
  %649 = vmatprep.subr.mxu0 0.0
  %650 = vmatpush1.xpose.msra.mxu0 0.0
  %651 = vmatprep.subr.mxu0 0.0
  %652 = vmatpush1.xpose.msra.mxu0 0.0
  %653 = vmatprep.subr.mxu0 0.0
  %654 = vmatpush1.xpose.msra.mxu0 0.0
  %655 = vmatprep.subr.mxu0 0.0
  %656 = vmatpush1.xpose.msra.mxu0 0.0
  %657 = vmatprep.subr.mxu0 0.0
  %658 = vmatpush1.xpose.msra.mxu0 0.0
  %659 = vmatprep.subr.mxu0 0.0
  %660 = vmatpush1.xpose.msra.mxu0 0.0
  %661 = vmatprep.subr.mxu0 0.0
  %662 = vmatpush1.xpose.msra.mxu0 0.0
  %663 = vmatprep.subr.mxu0 0.0
  %664 = vmatpush1.xpose.msra.mxu0 0.0
  %665 = vmatprep.subr.mxu0 0.0
  %666 = vmatpush1.xpose.msra.mxu0 0.0
  %667 = vmatprep.subr.mxu0 0.0
  %668 = vmatpush1.xpose.msra.mxu0 0.0
  %669 = vmatprep.mubr.f32.mxu0 0.0
  %670 = vmatmul.mubr.f32.gmra.mrb[0].mxu0 %v601
  %v671 = vpop.f32.mrb[0].mxu0
  %v672 = vadd.f32 %v46, %v671
  %v673 = vpop.f32.mrb[0].mxu0
  %674 = vdwg.mxu0
  %v675 = vsel %vm191, %v594, -inf
  %676 = vmax.xlane.f32.xlu0 %v675
  %v677 = vpop.xlane.xlu0 %676
  %v678 = vsel %vm191, %v672, -inf
  %679 = vmax.xlane.f32.xlu0 %v678
  %v680 = vpop.xlane.xlu0 %679
  %v681 = vsub.f32 %v594, %v677
  %v682 = vsub.f32 %v672, %v680
  %v683 = vmul.f32 %v681, 1.442695
  %v684 = vpow.pop %v683
  %v685 = vmul.f32 %v682, 1.442695
  %v686 = vpow.pop %v685
  %v687 = vsel %vm191, %v684, 0.0
  %688 = vadd.xlane.f32.xlu0 %v687
  %v689 = vpop.xlane.xlu0 %688
  %v690 = vsel %vm191, %v686, 0.0
  %691 = vadd.xlane.f32.xlu0 %v690
  %v692 = vpop.xlane.xlu0 %691
  %v693 = vrcp.pop %v689
  %v694 = vrcp.pop %v692
  %v695 = vmul.f32 %v684, %v693
  %v696 = vmul.f32 %v686, %v694
  %697 = vrot.lane.b32.xlu0 %v177, 56
  %v698 = vpop.permute.xlu0 %697
  %v701 = vsel %vm191, %v695, 0
  %703 = vmatprep.subr.mxu0 0.0
  %704 = vmatpush1.msra.mxu0 %v698
  %705 = vmatprep.subr.mxu0 0.0
  %706 = vmatpush1.msra.mxu0 0.0
  %707 = vmatprep.subr.mxu0 0.0
  %708 = vmatpush1.msra.mxu0 0.0
  %709 = vmatprep.subr.mxu0 0.0
  %710 = vmatpush1.msra.mxu0 0.0
  %711 = vmatprep.subr.mxu0 0.0
  %712 = vmatpush1.msra.mxu0 0.0
  %713 = vmatprep.subr.mxu0 0.0
  %714 = vmatpush1.msra.mxu0 0.0
  %715 = vmatprep.subr.mxu0 0.0
  %716 = vmatpush1.msra.mxu0 0.0
  %717 = vmatprep.subr.mxu0 0.0
  %718 = vmatpush1.msra.mxu0 0.0
  %719 = vmatprep.subr.mxu0 0.0
  %720 = vmatpush1.msra.mxu0 0.0
  %721 = vmatprep.subr.mxu0 0.0
  %722 = vmatpush1.msra.mxu0 0.0
  %723 = vmatprep.subr.mxu0 0.0
  %724 = vmatpush1.msra.mxu0 0.0
  %725 = vmatprep.subr.mxu0 0.0
  %726 = vmatpush1.msra.mxu0 0.0
  %727 = vmatprep.subr.mxu0 0.0
  %728 = vmatpush1.msra.mxu0 0.0
  %729 = vmatprep.subr.mxu0 0.0
  %730 = vmatpush1.msra.mxu0 0.0
  %731 = vmatprep.subr.mxu0 0.0
  %732 = vmatpush1.msra.mxu0 0.0
  %733 = vmatprep.subr.mxu0 0.0
  %734 = vmatpush1.msra.mxu0 0.0
  %735 = vmatprep.subr.mxu0 0.0
  %736 = vmatpush1.msra.mxu0 0.0
  %737 = vmatprep.subr.mxu0 0.0
  %738 = vmatpush1.msra.mxu0 0.0
  %739 = vmatprep.subr.mxu0 0.0
  %740 = vmatpush1.msra.mxu0 0.0
  %741 = vmatprep.subr.mxu0 0.0
  %742 = vmatpush1.msra.mxu0 0.0
  %743 = vmatprep.subr.mxu0 0.0
  %744 = vmatpush1.msra.mxu0 0.0
  %745 = vmatprep.subr.mxu0 0.0
  %746 = vmatpush1.msra.mxu0 0.0
  %747 = vmatprep.subr.mxu0 0.0
  %748 = vmatpush1.msra.mxu0 0.0
  %749 = vmatprep.subr.mxu0 0.0
  %750 = vmatpush1.msra.mxu0 0.0
  %751 = vmatprep.subr.mxu0 0.0
  %752 = vmatpush1.msra.mxu0 0.0
  %753 = vmatprep.subr.mxu0 0.0
  %754 = vmatpush1.msra.mxu0 0.0
  %755 = vmatprep.subr.mxu0 0.0
  %756 = vmatpush1.msra.mxu0 0.0
  %757 = vmatprep.subr.mxu0 0.0
  %758 = vmatpush1.msra.mxu0 0.0
  %759 = vmatprep.subr.mxu0 0.0
  %760 = vmatpush1.msra.mxu0 0.0
  %761 = vmatprep.subr.mxu0 0.0
  %762 = vmatpush1.msra.mxu0 0.0
  %763 = vmatprep.subr.mxu0 0.0
  %764 = vmatpush1.msra.mxu0 0.0
  %765 = vmatprep.subr.mxu0 0.0
  %766 = vmatpush1.msra.mxu0 0.0
  %767 = vmatprep.mubr.f32.mxu0 0.0
  %768 = vmatmul.mubr.f32.gmra.mrb[0].mxu0 %v701
  %v769 = vpop.f32.mrb[0].mxu0
  %v770 = vadd.f32 0.0, %v769
  %v771 = vpop.f32.mrb[0].mxu0
  %772 = vdwg.mxu0
  %773 = vrot.lane.b32.xlu0 %v182, 56
  %v774 = vpop.permute.xlu0 %773
  %v777 = vsel %vm191, %v696, 0
  %779 = vmatprep.subr.mxu0 0.0
  %780 = vmatpush1.msra.mxu0 %v774
  %781 = vmatprep.subr.mxu0 0.0
  %782 = vmatpush1.msra.mxu0 0.0
  %783 = vmatprep.subr.mxu0 0.0
  %784 = vmatpush1.msra.mxu0 0.0
  %785 = vmatprep.subr.mxu0 0.0
  %786 = vmatpush1.msra.mxu0 0.0
  %787 = vmatprep.subr.mxu0 0.0
  %788 = vmatpush1.msra.mxu0 0.0
  %789 = vmatprep.subr.mxu0 0.0
  %790 = vmatpush1.msra.mxu0 0.0
  %791 = vmatprep.subr.mxu0 0.0
  %792 = vmatpush1.msra.mxu0 0.0
  %793 = vmatprep.subr.mxu0 0.0
  %794 = vmatpush1.msra.mxu0 0.0
  %795 = vmatprep.subr.mxu0 0.0
  %796 = vmatpush1.msra.mxu0 0.0
  %797 = vmatprep.subr.mxu0 0.0
  %798 = vmatpush1.msra.mxu0 0.0
  %799 = vmatprep.subr.mxu0 0.0
  %800 = vmatpush1.msra.mxu0 0.0
  %801 = vmatprep.subr.mxu0 0.0
  %802 = vmatpush1.msra.mxu0 0.0
  %803 = vmatprep.subr.mxu0 0.0
  %804 = vmatpush1.msra.mxu0 0.0
  %805 = vmatprep.subr.mxu0 0.0
  %806 = vmatpush1.msra.mxu0 0.0
  %807 = vmatprep.subr.mxu0 0.0
  %808 = vmatpush1.msra.mxu0 0.0
  %809 = vmatprep.subr.mxu0 0.0
  %810 = vmatpush1.msra.mxu0 0.0
  %811 = vmatprep.subr.mxu0 0.0
  %812 = vmatpush1.msra.mxu0 0.0
  %813 = vmatprep.subr.mxu0 0.0
  %814 = vmatpush1.msra.mxu0 0.0
  %815 = vmatprep.subr.mxu0 0.0
  %816 = vmatpush1.msra.mxu0 0.0
  %817 = vmatprep.subr.mxu0 0.0
  %818 = vmatpush1.msra.mxu0 0.0
  %819 = vmatprep.subr.mxu0 0.0
  %820 = vmatpush1.msra.mxu0 0.0
  %821 = vmatprep.subr.mxu0 0.0
  %822 = vmatpush1.msra.mxu0 0.0
  %823 = vmatprep.subr.mxu0 0.0
  %824 = vmatpush1.msra.mxu0 0.0
  %825 = vmatprep.subr.mxu0 0.0
  %826 = vmatpush1.msra.mxu0 0.0
  %827 = vmatprep.subr.mxu0 0.0
  %828 = vmatpush1.msra.mxu0 0.0
  %829 = vmatprep.subr.mxu0 0.0
  %830 = vmatpush1.msra.mxu0 0.0
  %831 = vmatprep.subr.mxu0 0.0
  %832 = vmatpush1.msra.mxu0 0.0
  %833 = vmatprep.subr.mxu0 0.0
  %834 = vmatpush1.msra.mxu0 0.0
  %835 = vmatprep.subr.mxu0 0.0
  %836 = vmatpush1.msra.mxu0 0.0
  %837 = vmatprep.subr.mxu0 0.0
  %838 = vmatpush1.msra.mxu0 0.0
  %839 = vmatprep.subr.mxu0 0.0
  %840 = vmatpush1.msra.mxu0 0.0
  %841 = vmatprep.subr.mxu0 0.0
  %842 = vmatpush1.msra.mxu0 0.0
  %843 = vmatprep.mubr.f32.mxu0 0.0
  %844 = vmatmul.mubr.f32.gmra.mrb[0].mxu0 %v777
  %v845 = vpop.f32.mrb[0].mxu0
  %v846 = vadd.f32 0.0, %v845
  %v847 = vpop.f32.mrb[0].mxu0
  %848 = vdwg.mxu0
  %849 = vrot.lane.b32.xlu0 %v185, 112
  %v850 = vpop.permute.xlu0 %849
  %851 = vrot.lane.b32.xlu0 %v177, 80
  %v852 = vpop.permute.xlu0 %851
  %v853 = vsel %vm191, %v850, 0
  %v855 = vsel %vm191, %v852, 0
  %857 = vmatprep.subr.mxu0 0.0
  %858 = vmatpush1.xpose.msra.mxu0 %v855
  %859 = vmatprep.subr.mxu0 0.0
  %860 = vmatpush1.xpose.msra.mxu0 0.0
  %861 = vmatprep.subr.mxu0 0.0
  %862 = vmatpush1.xpose.msra.mxu0 0.0
  %863 = vmatprep.subr.mxu0 0.0
  %864 = vmatpush1.xpose.msra.mxu0 0.0
  %865 = vmatprep.subr.mxu0 0.0
  %866 = vmatpush1.xpose.msra.mxu0 0.0
  %867 = vmatprep.subr.mxu0 0.0
  %868 = vmatpush1.xpose.msra.mxu0 0.0
  %869 = vmatprep.subr.mxu0 0.0
  %870 = vmatpush1.xpose.msra.mxu0 0.0
  %871 = vmatprep.subr.mxu0 0.0
  %872 = vmatpush1.xpose.msra.mxu0 0.0
  %873 = vmatprep.subr.mxu0 0.0
  %874 = vmatpush1.xpose.msra.mxu0 0.0
  %875 = vmatprep.subr.mxu0 0.0
  %876 = vmatpush1.xpose.msra.mxu0 0.0
  %877 = vmatprep.subr.mxu0 0.0
  %878 = vmatpush1.xpose.msra.mxu0 0.0
  %879 = vmatprep.subr.mxu0 0.0
  %880 = vmatpush1.xpose.msra.mxu0 0.0
  %881 = vmatprep.subr.mxu0 0.0
  %882 = vmatpush1.xpose.msra.mxu0 0.0
  %883 = vmatprep.subr.mxu0 0.0
  %884 = vmatpush1.xpose.msra.mxu0 0.0
  %885 = vmatprep.subr.mxu0 0.0
  %886 = vmatpush1.xpose.msra.mxu0 0.0
  %887 = vmatprep.subr.mxu0 0.0
  %888 = vmatpush1.xpose.msra.mxu0 0.0
  %889 = vmatprep.subr.mxu0 0.0
  %890 = vmatpush1.xpose.msra.mxu0 0.0
  %891 = vmatprep.subr.mxu0 0.0
  %892 = vmatpush1.xpose.msra.mxu0 0.0
  %893 = vmatprep.subr.mxu0 0.0
  %894 = vmatpush1.xpose.msra.mxu0 0.0
  %895 = vmatprep.subr.mxu0 0.0
  %896 = vmatpush1.xpose.msra.mxu0 0.0
  %897 = vmatprep.subr.mxu0 0.0
  %898 = vmatpush1.xpose.msra.mxu0 0.0
  %899 = vmatprep.subr.mxu0 0.0
  %900 = vmatpush1.xpose.msra.mxu0 0.0
  %901 = vmatprep.subr.mxu0 0.0
  %902 = vmatpush1.xpose.msra.mxu0 0.0
  %903 = vmatprep.subr.mxu0 0.0
  %904 = vmatpush1.xpose.msra.mxu0 0.0
  %905 = vmatprep.subr.mxu0 0.0
  %906 = vmatpush1.xpose.msra.mxu0 0.0
  %907 = vmatprep.subr.mxu0 0.0
  %908 = vmatpush1.xpose.msra.mxu0 0.0
  %909 = vmatprep.subr.mxu0 0.0
  %910 = vmatpush1.xpose.msra.mxu0 0.0
  %911 = vmatprep.subr.mxu0 0.0
  %912 = vmatpush1.xpose.msra.mxu0 0.0
  %913 = vmatprep.subr.mxu0 0.0
  %914 = vmatpush1.xpose.msra.mxu0 0.0
  %915 = vmatprep.subr.mxu0 0.0
  %916 = vmatpush1.xpose.msra.mxu0 0.0
  %917 = vmatprep.subr.mxu0 0.0
  %918 = vmatpush1.xpose.msra.mxu0 0.0
  %919 = vmatprep.subr.mxu0 0.0
  %920 = vmatpush1.xpose.msra.mxu0 0.0
  %921 = vmatprep.mubr.f32.mxu0 0.0
  %922 = vmatmul.mubr.f32.gmra.mrb[0].mxu0 %v853
  %v923 = vpop.f32.mrb[0].mxu0
  %v924 = vadd.f32 %v45, %v923
  %v925 = vpop.f32.mrb[0].mxu0
  %926 = vdwg.mxu0
  %927 = vrot.lane.b32.xlu0 %v186, 112
  %v928 = vpop.permute.xlu0 %927
  %929 = vrot.lane.b32.xlu0 %v182, 80
  %v930 = vpop.permute.xlu0 %929
  %v931 = vsel %vm191, %v928, 0
  %v933 = vsel %vm191, %v930, 0
  %935 = vmatprep.subr.mxu0 0.0
  %936 = vmatpush1.xpose.msra.mxu0 %v933
  %937 = vmatprep.subr.mxu0 0.0
  %938 = vmatpush1.xpose.msra.mxu0 0.0
  %939 = vmatprep.subr.mxu0 0.0
  %940 = vmatpush1.xpose.msra.mxu0 0.0
  %941 = vmatprep.subr.mxu0 0.0
  %942 = vmatpush1.xpose.msra.mxu0 0.0
  %943 = vmatprep.subr.mxu0 0.0
  %944 = vmatpush1.xpose.msra.mxu0 0.0
  %945 = vmatprep.subr.mxu0 0.0
  %946 = vmatpush1.xpose.msra.mxu0 0.0
  %947 = vmatprep.subr.mxu0 0.0
  %948 = vmatpush1.xpose.msra.mxu0 0.0
  %949 = vmatprep.subr.mxu0 0.0
  %950 = vmatpush1.xpose.msra.mxu0 0.0
  %951 = vmatprep.subr.mxu0 0.0
  %952 = vmatpush1.xpose.msra.mxu0 0.0
  %953 = vmatprep.subr.mxu0 0.0
  %954 = vmatpush1.xpose.msra.mxu0 0.0
  %955 = vmatprep.subr.mxu0 0.0
  %956 = vmatpush1.xpose.msra.mxu0 0.0
  %957 = vmatprep.subr.mxu0 0.0
  %958 = vmatpush1.xpose.msra.mxu0 0.0
  %959 = vmatprep.subr.mxu0 0.0
  %960 = vmatpush1.xpose.msra.mxu0 0.0
  %961 = vmatprep.subr.mxu0 0.0
  %962 = vmatpush1.xpose.msra.mxu0 0.0
  %963 = vmatprep.subr.mxu0 0.0
  %964 = vmatpush1.xpose.msra.mxu0 0.0
  %965 = vmatprep.subr.mxu0 0.0
  %966 = vmatpush1.xpose.msra.mxu0 0.0
  %967 = vmatprep.subr.mxu0 0.0
  %968 = vmatpush1.xpose.msra.mxu0 0.0
  %969 = vmatprep.subr.mxu0 0.0
  %970 = vmatpush1.xpose.msra.mxu0 0.0
  %971 = vmatprep.subr.mxu0 0.0
  %972 = vmatpush1.xpose.msra.mxu0 0.0
  %973 = vmatprep.subr.mxu0 0.0
  %974 = vmatpush1.xpose.msra.mxu0 0.0
  %975 = vmatprep.subr.mxu0 0.0
  %976 = vmatpush1.xpose.msra.mxu0 0.0
  %977 = vmatprep.subr.mxu0 0.0
  %978 = vmatpush1.xpose.msra.mxu0 0.0
  %979 = vmatprep.subr.mxu0 0.0
  %980 = vmatpush1.xpose.msra.mxu0 0.0
  %981 = vmatprep.subr.mxu0 0.0
  %982 = vmatpush1.xpose.msra.mxu0 0.0
  %983 = vmatprep.subr.mxu0 0.0
  %984 = vmatpush1.xpose.msra.mxu0 0.0
  %985 = vmatprep.subr.mxu0 0.0
  %986 = vmatpush1.xpose.msra.mxu0 0.0
  %987 = vmatprep.subr.mxu0 0.0
  %988 = vmatpush1.xpose.msra.mxu0 0.0
  %989 = vmatprep.subr.mxu0 0.0
  %990 = vmatpush1.xpose.msra.mxu0 0.0
  %991 = vmatprep.subr.mxu0 0.0
  %992 = vmatpush1.xpose.msra.mxu0 0.0
  %993 = vmatprep.subr.mxu0 0.0
  %994 = vmatpush1.xpose.msra.mxu0 0.0
  %995 = vmatprep.subr.mxu0 0.0
  %996 = vmatpush1.xpose.msra.mxu0 0.0
  %997 = vmatprep.subr.mxu0 0.0
  %998 = vmatpush1.xpose.msra.mxu0 0.0
  %999 = vmatprep.mubr.f32.mxu0 0.0
  %1000 = vmatmul.mubr.f32.gmra.mrb[0].mxu0 %v931
  %v1001 = vpop.f32.mrb[0].mxu0
  %v1002 = vadd.f32 %v46, %v1001
  %v1003 = vpop.f32.mrb[0].mxu0
  %1004 = vdwg.mxu0
  %v1005 = vsel %vm191, %v924, -inf
  %1006 = vmax.xlane.f32.xlu0 %v1005
  %v1007 = vpop.xlane.xlu0 %1006
  %v1008 = vsel %vm191, %v1002, -inf
  %1009 = vmax.xlane.f32.xlu0 %v1008
  %v1010 = vpop.xlane.xlu0 %1009
  %v1011 = vsub.f32 %v924, %v1007
  %v1012 = vsub.f32 %v1002, %v1010
  %v1013 = vmul.f32 %v1011, 1.442695
  %v1014 = vpow.pop %v1013
  %v1015 = vmul.f32 %v1012, 1.442695
  %v1016 = vpow.pop %v1015
  %v1017 = vsel %vm191, %v1014, 0.0
  %1018 = vadd.xlane.f32.xlu0 %v1017
  %v1019 = vpop.xlane.xlu0 %1018
  %v1020 = vsel %vm191, %v1016, 0.0
  %1021 = vadd.xlane.f32.xlu0 %v1020
  %v1022 = vpop.xlane.xlu0 %1021
  %v1023 = vrcp.pop %v1019
  %v1024 = vrcp.pop %v1022
  %v1025 = vmul.f32 %v1014, %v1023
  %v1026 = vmul.f32 %v1016, %v1024
  %1027 = vrot.lane.b32.xlu0 %v177, 48
  %v1028 = vpop.permute.xlu0 %1027
  %v1031 = vsel %vm191, %v1025, 0
  %1033 = vmatprep.subr.mxu0 0.0
  %1034 = vmatpush1.msra.mxu0 %v1028
  %1035 = vmatprep.subr.mxu0 0.0
  %1036 = vmatpush1.msra.mxu0 0.0
  %1037 = vmatprep.subr.mxu0 0.0
  %1038 = vmatpush1.msra.mxu0 0.0
  %1039 = vmatprep.subr.mxu0 0.0
  %1040 = vmatpush1.msra.mxu0 0.0
  %1041 = vmatprep.subr.mxu0 0.0
  %1042 = vmatpush1.msra.mxu0 0.0
  %1043 = vmatprep.subr.mxu0 0.0
  %1044 = vmatpush1.msra.mxu0 0.0
  %1045 = vmatprep.subr.mxu0 0.0
  %1046 = vmatpush1.msra.mxu0 0.0
  %1047 = vmatprep.subr.mxu0 0.0
  %1048 = vmatpush1.msra.mxu0 0.0
  %1049 = vmatprep.subr.mxu0 0.0
  %1050 = vmatpush1.msra.mxu0 0.0
  %1051 = vmatprep.subr.mxu0 0.0
  %1052 = vmatpush1.msra.mxu0 0.0
  %1053 = vmatprep.subr.mxu0 0.0
  %1054 = vmatpush1.msra.mxu0 0.0
  %1055 = vmatprep.subr.mxu0 0.0
  %1056 = vmatpush1.msra.mxu0 0.0
  %1057 = vmatprep.subr.mxu0 0.0
  %1058 = vmatpush1.msra.mxu0 0.0
  %1059 = vmatprep.subr.mxu0 0.0
  %1060 = vmatpush1.msra.mxu0 0.0
  %1061 = vmatprep.subr.mxu0 0.0
  %1062 = vmatpush1.msra.mxu0 0.0
  %1063 = vmatprep.subr.mxu0 0.0
  %1064 = vmatpush1.msra.mxu0 0.0
  %1065 = vmatprep.subr.mxu0 0.0
  %1066 = vmatpush1.msra.mxu0 0.0
  %1067 = vmatprep.subr.mxu0 0.0
  %1068 = vmatpush1.msra.mxu0 0.0
  %1069 = vmatprep.subr.mxu0 0.0
  %1070 = vmatpush1.msra.mxu0 0.0
  %1071 = vmatprep.subr.mxu0 0.0
  %1072 = vmatpush1.msra.mxu0 0.0
  %1073 = vmatprep.subr.mxu0 0.0
  %1074 = vmatpush1.msra.mxu0 0.0
  %1075 = vmatprep.subr.mxu0 0.0
  %1076 = vmatpush1.msra.mxu0 0.0
  %1077 = vmatprep.subr.mxu0 0.0
  %1078 = vmatpush1.msra.mxu0 0.0
  %1079 = vmatprep.subr.mxu0 0.0
  %1080 = vmatpush1.msra.mxu0 0.0
  %1081 = vmatprep.subr.mxu0 0.0
  %1082 = vmatpush1.msra.mxu0 0.0
  %1083 = vmatprep.subr.mxu0 0.0
  %1084 = vmatpush1.msra.mxu0 0.0
  %1085 = vmatprep.subr.mxu0 0.0
  %1086 = vmatpush1.msra.mxu0 0.0
  %1087 = vmatprep.subr.mxu0 0.0
  %1088 = vmatpush1.msra.mxu0 0.0
  %1089 = vmatprep.subr.mxu0 0.0
  %1090 = vmatpush1.msra.mxu0 0.0
  %1091 = vmatprep.subr.mxu0 0.0
  %1092 = vmatpush1.msra.mxu0 0.0
  %1093 = vmatprep.subr.mxu0 0.0
  %1094 = vmatpush1.msra.mxu0 0.0
  %1095 = vmatprep.subr.mxu0 0.0
  %1096 = vmatpush1.msra.mxu0 0.0
  %1097 = vmatprep.mubr.f32.mxu0 0.0
  %1098 = vmatmul.mubr.f32.gmra.mrb[0].mxu0 %v1031
  %v1099 = vpop.f32.mrb[0].mxu0
  %v1100 = vadd.f32 0.0, %v1099
  %v1101 = vpop.f32.mrb[0].mxu0
  %1102 = vdwg.mxu0
  %1103 = vrot.lane.b32.xlu0 %v182, 48
  %v1104 = vpop.permute.xlu0 %1103
  %v1107 = vsel %vm191, %v1026, 0
  %1109 = vmatprep.subr.mxu0 0.0
  %1110 = vmatpush1.msra.mxu0 %v1104
  %1111 = vmatprep.subr.mxu0 0.0
  %1112 = vmatpush1.msra.mxu0 0.0
  %1113 = vmatprep.subr.mxu0 0.0
  %1114 = vmatpush1.msra.mxu0 0.0
  %1115 = vmatprep.subr.mxu0 0.0
  %1116 = vmatpush1.msra.mxu0 0.0
  %1117 = vmatprep.subr.mxu0 0.0
  %1118 = vmatpush1.msra.mxu0 0.0
  %1119 = vmatprep.subr.mxu0 0.0
  %1120 = vmatpush1.msra.mxu0 0.0
  %1121 = vmatprep.subr.mxu0 0.0
  %1122 = vmatpush1.msra.mxu0 0.0
  %1123 = vmatprep.subr.mxu0 0.0
  %1124 = vmatpush1.msra.mxu0 0.0
  %1125 = vmatprep.subr.mxu0 0.0
  %1126 = vmatpush1.msra.mxu0 0.0
  %1127 = vmatprep.subr.mxu0 0.0
  %1128 = vmatpush1.msra.mxu0 0.0
  %1129 = vmatprep.subr.mxu0 0.0
  %1130 = vmatpush1.msra.mxu0 0.0
  %1131 = vmatprep.subr.mxu0 0.0
  %1132 = vmatpush1.msra.mxu0 0.0
  %1133 = vmatprep.subr.mxu0 0.0
  %1134 = vmatpush1.msra.mxu0 0.0
  %1135 = vmatprep.subr.mxu0 0.0
  %1136 = vmatpush1.msra.mxu0 0.0
  %1137 = vmatprep.subr.mxu0 0.0
  %1138 = vmatpush1.msra.mxu0 0.0
  %1139 = vmatprep.subr.mxu0 0.0
  %1140 = vmatpush1.msra.mxu0 0.0
  %1141 = vmatprep.subr.mxu0 0.0
  %1142 = vmatpush1.msra.mxu0 0.0
  %1143 = vmatprep.subr.mxu0 0.0
  %1144 = vmatpush1.msra.mxu0 0.0
  %1145 = vmatprep.subr.mxu0 0.0
  %1146 = vmatpush1.msra.mxu0 0.0
  %1147 = vmatprep.subr.mxu0 0.0
  %1148 = vmatpush1.msra.mxu0 0.0
  %1149 = vmatprep.subr.mxu0 0.0
  %1150 = vmatpush1.msra.mxu0 0.0
  %1151 = vmatprep.subr.mxu0 0.0
  %1152 = vmatpush1.msra.mxu0 0.0
  %1153 = vmatprep.subr.mxu0 0.0
  %1154 = vmatpush1.msra.mxu0 0.0
  %1155 = vmatprep.subr.mxu0 0.0
  %1156 = vmatpush1.msra.mxu0 0.0
  %1157 = vmatprep.subr.mxu0 0.0
  %1158 = vmatpush1.msra.mxu0 0.0
  %1159 = vmatprep.subr.mxu0 0.0
  %1160 = vmatpush1.msra.mxu0 0.0
  %1161 = vmatprep.subr.mxu0 0.0
  %1162 = vmatpush1.msra.mxu0 0.0
  %1163 = vmatprep.subr.mxu0 0.0
  %1164 = vmatpush1.msra.mxu0 0.0
  %1165 = vmatprep.subr.mxu0 0.0
  %1166 = vmatpush1.msra.mxu0 0.0
  %1167 = vmatprep.subr.mxu0 0.0
  %1168 = vmatpush1.msra.mxu0 0.0
  %1169 = vmatprep.subr.mxu0 0.0
  %1170 = vmatpush1.msra.mxu0 0.0
  %1171 = vmatprep.subr.mxu0 0.0
  %1172 = vmatpush1.msra.mxu0 0.0
  %1173 = vmatprep.mubr.f32.mxu0 0.0
  %1174 = vmatmul.mubr.f32.gmra.mrb[0].mxu0 %v1107
  %v1175 = vpop.f32.mrb[0].mxu0
  %v1176 = vadd.f32 0.0, %v1175
  %v1177 = vpop.f32.mrb[0].mxu0
  %1178 = vdwg.mxu0
  %1179 = vrot.lane.b32.xlu0 %v185, 104
  %v1180 = vpop.permute.xlu0 %1179
  %1181 = vrot.lane.b32.xlu0 %v177, 72
  %v1182 = vpop.permute.xlu0 %1181
  %v1183 = vsel %vm191, %v1180, 0
  %v1185 = vsel %vm191, %v1182, 0
  %1187 = vmatprep.subr.mxu0 0.0
  %1188 = vmatpush1.xpose.msra.mxu0 %v1185
  %1189 = vmatprep.subr.mxu0 0.0
  %1190 = vmatpush1.xpose.msra.mxu0 0.0
  %1191 = vmatprep.subr.mxu0 0.0
  %1192 = vmatpush1.xpose.msra.mxu0 0.0
  %1193 = vmatprep.subr.mxu0 0.0
  %1194 = vmatpush1.xpose.msra.mxu0 0.0
  %1195 = vmatprep.subr.mxu0 0.0
  %1196 = vmatpush1.xpose.msra.mxu0 0.0
  %1197 = vmatprep.subr.mxu0 0.0
  %1198 = vmatpush1.xpose.msra.mxu0 0.0
  %1199 = vmatprep.subr.mxu0 0.0
  %1200 = vmatpush1.xpose.msra.mxu0 0.0
  %1201 = vmatprep.subr.mxu0 0.0
  %1202 = vmatpush1.xpose.msra.mxu0 0.0
  %1203 = vmatprep.subr.mxu0 0.0
  %1204 = vmatpush1.xpose.msra.mxu0 0.0
  %1205 = vmatprep.subr.mxu0 0.0
  %1206 = vmatpush1.xpose.msra.mxu0 0.0
  %1207 = vmatprep.subr.mxu0 0.0
  %1208 = vmatpush1.xpose.msra.mxu0 0.0
  %1209 = vmatprep.subr.mxu0 0.0
  %1210 = vmatpush1.xpose.msra.mxu0 0.0
  %1211 = vmatprep.subr.mxu0 0.0
  %1212 = vmatpush1.xpose.msra.mxu0 0.0
  %1213 = vmatprep.subr.mxu0 0.0
  %1214 = vmatpush1.xpose.msra.mxu0 0.0
  %1215 = vmatprep.subr.mxu0 0.0
  %1216 = vmatpush1.xpose.msra.mxu0 0.0
  %1217 = vmatprep.subr.mxu0 0.0
  %1218 = vmatpush1.xpose.msra.mxu0 0.0
  %1219 = vmatprep.subr.mxu0 0.0
  %1220 = vmatpush1.xpose.msra.mxu0 0.0
  %1221 = vmatprep.subr.mxu0 0.0
  %1222 = vmatpush1.xpose.msra.mxu0 0.0
  %1223 = vmatprep.subr.mxu0 0.0
  %1224 = vmatpush1.xpose.msra.mxu0 0.0
  %1225 = vmatprep.subr.mxu0 0.0
  %1226 = vmatpush1.xpose.msra.mxu0 0.0
  %1227 = vmatprep.subr.mxu0 0.0
  %1228 = vmatpush1.xpose.msra.mxu0 0.0
  %1229 = vmatprep.subr.mxu0 0.0
  %1230 = vmatpush1.xpose.msra.mxu0 0.0
  %1231 = vmatprep.subr.mxu0 0.0
  %1232 = vmatpush1.xpose.msra.mxu0 0.0
  %1233 = vmatprep.subr.mxu0 0.0
  %1234 = vmatpush1.xpose.msra.mxu0 0.0
  %1235 = vmatprep.subr.mxu0 0.0
  %1236 = vmatpush1.xpose.msra.mxu0 0.0
  %1237 = vmatprep.subr.mxu0 0.0
  %1238 = vmatpush1.xpose.msra.mxu0 0.0
  %1239 = vmatprep.subr.mxu0 0.0
  %1240 = vmatpush1.xpose.msra.mxu0 0.0
  %1241 = vmatprep.subr.mxu0 0.0
  %1242 = vmatpush1.xpose.msra.mxu0 0.0
  %1243 = vmatprep.subr.mxu0 0.0
  %1244 = vmatpush1.xpose.msra.mxu0 0.0
  %1245 = vmatprep.subr.mxu0 0.0
  %1246 = vmatpush1.xpose.msra.mxu0 0.0
  %1247 = vmatprep.subr.mxu0 0.0
  %1248 = vmatpush1.xpose.msra.mxu0 0.0
  %1249 = vmatprep.subr.mxu0 0.0
  %1250 = vmatpush1.xpose.msra.mxu0 0.0
  %1251 = vmatprep.mubr.f32.mxu0 0.0
  %1252 = vmatmul.mubr.f32.gmra.mrb[0].mxu0 %v1183
  %v1253 = vpop.f32.mrb[0].mxu0
  %v1254 = vadd.f32 %v45, %v1253
  %v1255 = vpop.f32.mrb[0].mxu0
  %1256 = vdwg.mxu0
  %1257 = vrot.lane.b32.xlu0 %v186, 104
  %v1258 = vpop.permute.xlu0 %1257
  %1259 = vrot.lane.b32.xlu0 %v182, 72
  %v1260 = vpop.permute.xlu0 %1259
  %v1261 = vsel %vm191, %v1258, 0
  %v1263 = vsel %vm191, %v1260, 0
  %1265 = vmatprep.subr.mxu0 0.0
  %1266 = vmatpush1.xpose.msra.mxu0 %v1263
  %1267 = vmatprep.subr.mxu0 0.0
  %1268 = vmatpush1.xpose.msra.mxu0 0.0
  %1269 = vmatprep.subr.mxu0 0.0
  %1270 = vmatpush1.xpose.msra.mxu0 0.0
  %1271 = vmatprep.subr.mxu0 0.0
  %1272 = vmatpush1.xpose.msra.mxu0 0.0
  %1273 = vmatprep.subr.mxu0 0.0
  %1274 = vmatpush1.xpose.msra.mxu0 0.0
  %1275 = vmatprep.subr.mxu0 0.0
  %1276 = vmatpush1.xpose.msra.mxu0 0.0
  %1277 = vmatprep.subr.mxu0 0.0
  %1278 = vmatpush1.xpose.msra.mxu0 0.0
  %1279 = vmatprep.subr.mxu0 0.0
  %1280 = vmatpush1.xpose.msra.mxu0 0.0
  %1281 = vmatprep.subr.mxu0 0.0
  %1282 = vmatpush1.xpose.msra.mxu0 0.0
  %1283 = vmatprep.subr.mxu0 0.0
  %1284 = vmatpush1.xpose.msra.mxu0 0.0
  %1285 = vmatprep.subr.mxu0 0.0
  %1286 = vmatpush1.xpose.msra.mxu0 0.0
  %1287 = vmatprep.subr.mxu0 0.0
  %1288 = vmatpush1.xpose.msra.mxu0 0.0
  %1289 = vmatprep.subr.mxu0 0.0
  %1290 = vmatpush1.xpose.msra.mxu0 0.0
  %1291 = vmatprep.subr.mxu0 0.0
  %1292 = vmatpush1.xpose.msra.mxu0 0.0
  %1293 = vmatprep.subr.mxu0 0.0
  %1294 = vmatpush1.xpose.msra.mxu0 0.0
  %1295 = vmatprep.subr.mxu0 0.0
  %1296 = vmatpush1.xpose.msra.mxu0 0.0
  %1297 = vmatprep.subr.mxu0 0.0
  %1298 = vmatpush1.xpose.msra.mxu0 0.0
  %1299 = vmatprep.subr.mxu0 0.0
  %1300 = vmatpush1.xpose.msra.mxu0 0.0
  %1301 = vmatprep.subr.mxu0 0.0
  %1302 = vmatpush1.xpose.msra.mxu0 0.0
  %1303 = vmatprep.subr.mxu0 0.0
  %1304 = vmatpush1.xpose.msra.mxu0 0.0
  %1305 = vmatprep.subr.mxu0 0.0
  %1306 = vmatpush1.xpose.msra.mxu0 0.0
  %1307 = vmatprep.subr.mxu0 0.0
  %1308 = vmatpush1.xpose.msra.mxu0 0.0
  %1309 = vmatprep.subr.mxu0 0.0
  %1310 = vmatpush1.xpose.msra.mxu0 0.0
  %1311 = vmatprep.subr.mxu0 0.0
  %1312 = vmatpush1.xpose.msra.mxu0 0.0
  %1313 = vmatprep.subr.mxu0 0.0
  %1314 = vmatpush1.xpose.msra.mxu0 0.0
  %1315 = vmatprep.subr.mxu0 0.0
  %1316 = vmatpush1.xpose.msra.mxu0 0.0
  %1317 = vmatprep.subr.mxu0 0.0
  %1318 = vmatpush1.xpose.msra.mxu0 0.0
  %1319 = vmatprep.subr.mxu0 0.0
  %1320 = vmatpush1.xpose.msra.mxu0 0.0
  %1321 = vmatprep.subr.mxu0 0.0
  %1322 = vmatpush1.xpose.msra.mxu0 0.0
  %1323 = vmatprep.subr.mxu0 0.0
  %1324 = vmatpush1.xpose.msra.mxu0 0.0
  %1325 = vmatprep.subr.mxu0 0.0
  %1326 = vmatpush1.xpose.msra.mxu0 0.0
  %1327 = vmatprep.subr.mxu0 0.0
  %1328 = vmatpush1.xpose.msra.mxu0 0.0
  %1329 = vmatprep.mubr.f32.mxu0 0.0
  %1330 = vmatmul.mubr.f32.gmra.mrb[0].mxu0 %v1261
  %v1331 = vpop.f32.mrb[0].mxu0
  %v1332 = vadd.f32 %v46, %v1331
  %v1333 = vpop.f32.mrb[0].mxu0
  %1334 = vdwg.mxu0
  %v1335 = vsel %vm191, %v1254, -inf
  %1336 = vmax.xlane.f32.xlu0 %v1335
  %v1337 = vpop.xlane.xlu0 %1336
  %v1338 = vsel %vm191, %v1332, -inf
  %1339 = vmax.xlane.f32.xlu0 %v1338
  %v1340 = vpop.xlane.xlu0 %1339
  %v1341 = vsub.f32 %v1254, %v1337
  %v1342 = vsub.f32 %v1332, %v1340
  %v1343 = vmul.f32 %v1341, 1.442695
  %v1344 = vpow.pop %v1343
  %v1345 = vmul.f32 %v1342, 1.442695
  %v1346 = vpow.pop %v1345
  %v1347 = vsel %vm191, %v1344, 0.0
  %1348 = vadd.xlane.f32.xlu0 %v1347
  %v1349 = vpop.xlane.xlu0 %1348
  %v1350 = vsel %vm191, %v1346, 0.0
  %1351 = vadd.xlane.f32.xlu0 %v1350
  %v1352 = vpop.xlane.xlu0 %1351
  %v1353 = vrcp.pop %v1349
  %v1354 = vrcp.pop %v1352
  %v1355 = vmul.f32 %v1344, %v1353
  %v1356 = vmul.f32 %v1346, %v1354
  %1357 = vrot.lane.b32.xlu0 %v177, 40
  %v1358 = vpop.permute.xlu0 %1357
  %v1361 = vsel %vm191, %v1355, 0
  %1363 = vmatprep.subr.mxu0 0.0
  %1364 = vmatpush1.msra.mxu0 %v1358
  %1365 = vmatprep.subr.mxu0 0.0
  %1366 = vmatpush1.msra.mxu0 0.0
  %1367 = vmatprep.subr.mxu0 0.0
  %1368 = vmatpush1.msra.mxu0 0.0
  %1369 = vmatprep.subr.mxu0 0.0
  %1370 = vmatpush1.msra.mxu0 0.0
  %1371 = vmatprep.subr.mxu0 0.0
  %1372 = vmatpush1.msra.mxu0 0.0
  %1373 = vmatprep.subr.mxu0 0.0
  %1374 = vmatpush1.msra.mxu0 0.0
  %1375 = vmatprep.subr.mxu0 0.0
  %1376 = vmatpush1.msra.mxu0 0.0
  %1377 = vmatprep.subr.mxu0 0.0
  %1378 = vmatpush1.msra.mxu0 0.0
  %1379 = vmatprep.subr.mxu0 0.0
  %1380 = vmatpush1.msra.mxu0 0.0
  %1381 = vmatprep.subr.mxu0 0.0
  %1382 = vmatpush1.msra.mxu0 0.0
  %1383 = vmatprep.subr.mxu0 0.0
  %1384 = vmatpush1.msra.mxu0 0.0
  %1385 = vmatprep.subr.mxu0 0.0
  %1386 = vmatpush1.msra.mxu0 0.0
  %1387 = vmatprep.subr.mxu0 0.0
  %1388 = vmatpush1.msra.mxu0 0.0
  %1389 = vmatprep.subr.mxu0 0.0
  %1390 = vmatpush1.msra.mxu0 0.0
  %1391 = vmatprep.subr.mxu0 0.0
  %1392 = vmatpush1.msra.mxu0 0.0
  %1393 = vmatprep.subr.mxu0 0.0
  %1394 = vmatpush1.msra.mxu0 0.0
  %1395 = vmatprep.subr.mxu0 0.0
  %1396 = vmatpush1.msra.mxu0 0.0
  %1397 = vmatprep.subr.mxu0 0.0
  %1398 = vmatpush1.msra.mxu0 0.0
  %1399 = vmatprep.subr.mxu0 0.0
  %1400 = vmatpush1.msra.mxu0 0.0
  %1401 = vmatprep.subr.mxu0 0.0
  %1402 = vmatpush1.msra.mxu0 0.0
  %1403 = vmatprep.subr.mxu0 0.0
  %1404 = vmatpush1.msra.mxu0 0.0
  %1405 = vmatprep.subr.mxu0 0.0
  %1406 = vmatpush1.msra.mxu0 0.0
  %1407 = vmatprep.subr.mxu0 0.0
  %1408 = vmatpush1.msra.mxu0 0.0
  %1409 = vmatprep.subr.mxu0 0.0
  %1410 = vmatpush1.msra.mxu0 0.0
  %1411 = vmatprep.subr.mxu0 0.0
  %1412 = vmatpush1.msra.mxu0 0.0
  %1413 = vmatprep.subr.mxu0 0.0
  %1414 = vmatpush1.msra.mxu0 0.0
  %1415 = vmatprep.subr.mxu0 0.0
  %1416 = vmatpush1.msra.mxu0 0.0
  %1417 = vmatprep.subr.mxu0 0.0
  %1418 = vmatpush1.msra.mxu0 0.0
  %1419 = vmatprep.subr.mxu0 0.0
  %1420 = vmatpush1.msra.mxu0 0.0
  %1421 = vmatprep.subr.mxu0 0.0
  %1422 = vmatpush1.msra.mxu0 0.0
  %1423 = vmatprep.subr.mxu0 0.0
  %1424 = vmatpush1.msra.mxu0 0.0
  %1425 = vmatprep.subr.mxu0 0.0
  %1426 = vmatpush1.msra.mxu0 0.0
  %1427 = vmatprep.mubr.f32.mxu0 0.0
  %1428 = vmatmul.mubr.f32.gmra.mrb[0].mxu0 %v1361
  %v1429 = vpop.f32.mrb[0].mxu0
  %v1430 = vadd.f32 0.0, %v1429
  %v1431 = vpop.f32.mrb[0].mxu0
  %1432 = vdwg.mxu0
  %1433 = vrot.lane.b32.xlu0 %v182, 40
  %v1434 = vpop.permute.xlu0 %1433
  %v1437 = vsel %vm191, %v1356, 0
  %1439 = vmatprep.subr.mxu0 0.0
  %1440 = vmatpush1.msra.mxu0 %v1434
  %1441 = vmatprep.subr.mxu0 0.0
  %1442 = vmatpush1.msra.mxu0 0.0
  %1443 = vmatprep.subr.mxu0 0.0
  %1444 = vmatpush1.msra.mxu0 0.0
  %1445 = vmatprep.subr.mxu0 0.0
  %1446 = vmatpush1.msra.mxu0 0.0
  %1447 = vmatprep.subr.mxu0 0.0
  %1448 = vmatpush1.msra.mxu0 0.0
  %1449 = vmatprep.subr.mxu0 0.0
  %1450 = vmatpush1.msra.mxu0 0.0
  %1451 = vmatprep.subr.mxu0 0.0
  %1452 = vmatpush1.msra.mxu0 0.0
  %1453 = vmatprep.subr.mxu0 0.0
  %1454 = vmatpush1.msra.mxu0 0.0
  %1455 = vmatprep.subr.mxu0 0.0
  %1456 = vmatpush1.msra.mxu0 0.0
  %1457 = vmatprep.subr.mxu0 0.0
  %1458 = vmatpush1.msra.mxu0 0.0
  %1459 = vmatprep.subr.mxu0 0.0
  %1460 = vmatpush1.msra.mxu0 0.0
  %1461 = vmatprep.subr.mxu0 0.0
  %1462 = vmatpush1.msra.mxu0 0.0
  %1463 = vmatprep.subr.mxu0 0.0
  %1464 = vmatpush1.msra.mxu0 0.0
  %1465 = vmatprep.subr.mxu0 0.0
  %1466 = vmatpush1.msra.mxu0 0.0
  %1467 = vmatprep.subr.mxu0 0.0
  %1468 = vmatpush1.msra.mxu0 0.0
  %1469 = vmatprep.subr.mxu0 0.0
  %1470 = vmatpush1.msra.mxu0 0.0
  %1471 = vmatprep.subr.mxu0 0.0
  %1472 = vmatpush1.msra.mxu0 0.0
  %1473 = vmatprep.subr.mxu0 0.0
  %1474 = vmatpush1.msra.mxu0 0.0
  %1475 = vmatprep.subr.mxu0 0.0
  %1476 = vmatpush1.msra.mxu0 0.0
  %1477 = vmatprep.subr.mxu0 0.0
  %1478 = vmatpush1.msra.mxu0 0.0
  %1479 = vmatprep.subr.mxu0 0.0
  %1480 = vmatpush1.msra.mxu0 0.0
  %1481 = vmatprep.subr.mxu0 0.0
  %1482 = vmatpush1.msra.mxu0 0.0
  %1483 = vmatprep.subr.mxu0 0.0
  %1484 = vmatpush1.msra.mxu0 0.0
  %1485 = vmatprep.subr.mxu0 0.0
  %1486 = vmatpush1.msra.mxu0 0.0
  %1487 = vmatprep.subr.mxu0 0.0
  %1488 = vmatpush1.msra.mxu0 0.0
  %1489 = vmatprep.subr.mxu0 0.0
  %1490 = vmatpush1.msra.mxu0 0.0
  %1491 = vmatprep.subr.mxu0 0.0
  %1492 = vmatpush1.msra.mxu0 0.0
  %1493 = vmatprep.subr.mxu0 0.0
  %1494 = vmatpush1.msra.mxu0 0.0
  %1495 = vmatprep.subr.mxu0 0.0
  %1496 = vmatpush1.msra.mxu0 0.0
  %1497 = vmatprep.subr.mxu0 0.0
  %1498 = vmatpush1.msra.mxu0 0.0
  %1499 = vmatprep.subr.mxu0 0.0
  %1500 = vmatpush1.msra.mxu0 0.0
  %1501 = vmatprep.subr.mxu0 0.0
  %1502 = vmatpush1.msra.mxu0 0.0
  %1503 = vmatprep.mubr.f32.mxu0 0.0
  %1504 = vmatmul.mubr.f32.gmra.mrb[0].mxu0 %v1437
  %v1505 = vpop.f32.mrb[0].mxu0
  %v1506 = vadd.f32 0.0, %v1505
  %v1507 = vpop.f32.mrb[0].mxu0
  %1508 = vdwg.mxu0
  %1511 = vrot.lane.b32.xlu0 %v770, 8
  %v1512 = vpop.permute.xlu0 %1511
  %1513 = vrot.lane.b32.xlu0 %v846, 8
  %v1514 = vpop.permute.xlu0 %1513
  %1519 = vrot.lane.b32.xlu0 %v1100, 16
  %v1520 = vpop.permute.xlu0 %1519
  %1521 = vrot.lane.b32.xlu0 %v1176, 16
  %v1522 = vpop.permute.xlu0 %1521
  %1527 = vrot.lane.b32.xlu0 %v1430, 24
  %v1528 = vpop.permute.xlu0 %1527
  %1529 = vrot.lane.b32.xlu0 %v1506, 24
  %v1530 = vpop.permute.xlu0 %1529
  %v1533 = vsel %vm191, %v440, %v1512
  %v1534 = vsel %vm191, %v516, %v1514
  %vm1535 = vcmask 130048
  %v1536 = vsel %vm1535, %v1533, %v1520
  %v1537 = vsel %vm1535, %v1534, %v1522
  %vm1538 = vcmask 195584
  %v1539 = vsel %vm1538, %v1536, %v1528
  %v1540 = vsel %vm1538, %v1537, %v1530
  %v1541 = vlaneseq
  %v1542 = vshrl.u32 %v1541, 7
  %v1543 = vsub.s32 0, %v1542
  %v1544 = vrot.slane %v187, %v1543
  %1549 = vrot.lane.b32.xlu0 %v95, 32
  %v1550 = vpop.permute.xlu0 %1549
  %1551 = vrot.lane.b32.xlu0 %v96, 32
  %v1552 = vpop.permute.xlu0 %1551
  %1553 = vrot.lane.b32.xlu0 %v97, 32
  %v1554 = vpop.permute.xlu0 %1553
  %1555 = vrot.lane.b32.xlu0 %v98, 32
  %v1556 = vpop.permute.xlu0 %1555
  %v1562 = vsel %vm55, %v1539, 0
  %v1565 = vsel %vm55, %v1540, 0
  %1567 = vmatprep.subr.mxu0 0.0
  %1568 = vmatpush1.msra.mxu0 %v1550
  %1569 = vmatprep.subr.mxu0 0.0
  %1570 = vmatpush1.msra.mxu0 %v1552
  %1571 = vmatprep.subr.mxu0 0.0
  %1572 = vmatpush1.msra.mxu0 %v1554
  %1573 = vmatprep.subr.mxu0 0.0
  %1574 = vmatpush1.msra.mxu0 %v1556
  %1575 = vmatprep.subr.mxu0 0.0
  %1576 = vmatpush1.msra.mxu0 0.0
  %1577 = vmatprep.subr.mxu0 0.0
  %1578 = vmatpush1.msra.mxu0 0.0
  %1579 = vmatprep.subr.mxu0 0.0
  %1580 = vmatpush1.msra.mxu0 0.0
  %1581 = vmatprep.subr.mxu0 0.0
  %1582 = vmatpush1.msra.mxu0 0.0
  %1583 = vmatprep.subr.mxu0 0.0
  %1584 = vmatpush1.msra.mxu0 0.0
  %1585 = vmatprep.subr.mxu0 0.0
  %1586 = vmatpush1.msra.mxu0 0.0
  %1587 = vmatprep.subr.mxu0 0.0
  %1588 = vmatpush1.msra.mxu0 0.0
  %1589 = vmatprep.subr.mxu0 0.0
  %1590 = vmatpush1.msra.mxu0 0.0
  %1591 = vmatprep.subr.mxu0 0.0
  %1592 = vmatpush1.msra.mxu0 0.0
  %1593 = vmatprep.subr.mxu0 0.0
  %1594 = vmatpush1.msra.mxu0 0.0
  %1595 = vmatprep.subr.mxu0 0.0
  %1596 = vmatpush1.msra.mxu0 0.0
  %1597 = vmatprep.subr.mxu0 0.0
  %1598 = vmatpush1.msra.mxu0 0.0
  %1599 = vmatprep.subr.mxu0 0.0
  %1600 = vmatpush1.msra.mxu0 0.0
  %1601 = vmatprep.subr.mxu0 0.0
  %1602 = vmatpush1.msra.mxu0 0.0
  %1603 = vmatprep.subr.mxu0 0.0
  %1604 = vmatpush1.msra.mxu0 0.0
  %1605 = vmatprep.subr.mxu0 0.0
  %1606 = vmatpush1.msra.mxu0 0.0
  %1607 = vmatprep.subr.mxu0 0.0
  %1608 = vmatpush1.msra.mxu0 0.0
  %1609 = vmatprep.subr.mxu0 0.0
  %1610 = vmatpush1.msra.mxu0 0.0
  %1611 = vmatprep.subr.mxu0 0.0
  %1612 = vmatpush1.msra.mxu0 0.0
  %1613 = vmatprep.subr.mxu0 0.0
  %1614 = vmatpush1.msra.mxu0 0.0
  %1615 = vmatprep.subr.mxu0 0.0
  %1616 = vmatpush1.msra.mxu0 0.0
  %1617 = vmatprep.subr.mxu0 0.0
  %1618 = vmatpush1.msra.mxu0 0.0
  %1619 = vmatprep.subr.mxu0 0.0
  %1620 = vmatpush1.msra.mxu0 0.0
  %1621 = vmatprep.subr.mxu0 0.0
  %1622 = vmatpush1.msra.mxu0 0.0
  %1623 = vmatprep.subr.mxu0 0.0
  %1624 = vmatpush1.msra.mxu0 0.0
  %1625 = vmatprep.subr.mxu0 0.0
  %1626 = vmatpush1.msra.mxu0 0.0
  %1627 = vmatprep.subr.mxu0 0.0
  %1628 = vmatpush1.msra.mxu0 0.0
  %1629 = vmatprep.subr.mxu0 0.0
  %1630 = vmatpush1.msra.mxu0 0.0
  %1631 = vmatprep.mubr.f32.mxu0 0.0
  %1632 = vmatmul.mubr.f32.gmra.mrb[0].mxu0 %v1562
  %v1633 = vpop.f32.mrb[0].mxu0
  %v1634 = vadd.f32 %v1544, %v1633
  %v1635 = vpop.f32.mrb[0].mxu0
  %1636 = vmatprep.mubr.f32.mxu0 0.0
  %1637 = vmatmul.mubr.f32.gmra.mrb[0].mxu0 %v1565
  %v1638 = vpop.f32.mrb[0].mxu0
  %v1639 = vadd.f32 %v1544, %v1638
  %v1640 = vpop.f32.mrb[0].mxu0
  %1641 = vdwg.mxu0
  %v1642 = vadd.f32 %v1634, %v26
  %v1643 = vadd.f32 %v1639, %v27
  %v1644 = vld [vmem:[%s6 + $0x4] sm:$0x1]
  %v1645 = vld [vmem:[%s6 + $0x5] sm:$0x1]
  %v1646 = vsel %vm55, %v1642, 0.0
  %1647 = vadd.xlane.f32.xlu0 %v1646
  %v1648 = vpop.xlane.xlu0 %1647
  %v1649 = vsel %vm55, %v1643, 0.0
  %1650 = vadd.xlane.f32.xlu0 %v1649
  %v1651 = vpop.xlane.xlu0 %1650
  %v1652 = vmul.f32 %v1648, %v62
  %v1653 = vmul.f32 %v1651, %v62
  %v1654 = vsub.f32 %v1642, %v1652
  %v1655 = vsub.f32 %v1643, %v1653
  %v1656 = vmul.f32 %v1654, %v1654
  %v1657 = vmul.f32 %v1655, %v1655
  %v1658 = vsel %vm55, %v1656, 0.0
  %1659 = vadd.xlane.f32.xlu0 %v1658
  %v1660 = vpop.xlane.xlu0 %1659
  %v1661 = vsel %vm55, %v1657, 0.0
  %1662 = vadd.xlane.f32.xlu0 %v1661
  %v1663 = vpop.xlane.xlu0 %1662
  %v1664 = vmul.f32 %v1660, %v62
  %v1665 = vmul.f32 %v1663, %v62
  %v1666 = vadd.f32 %v1664, 1e-06
  %v1667 = vadd.f32 %v1665, 1e-06
  %v1668 = vrsqrt.pop %v1666
  %v1669 = vrsqrt.pop %v1667
  %v1670 = vmul.f32 %v1654, %v1668
  %v1671 = vmul.f32 %v1655, %v1669
  %v1672 = vlaneseq
  %v1673 = vshrl.u32 %v1672, 7
  %v1674 = vsub.s32 0, %v1673
  %v1675 = vrot.slane %v1644, %v1674
  %v1676 = vmul.f32 %v1670, %v1675
  %v1677 = vmul.f32 %v1671, %v1675
  %v1678 = vlaneseq
  %v1679 = vshrl.u32 %v1678, 7
  %v1680 = vsub.s32 0, %v1679
  %v1681 = vrot.slane %v1645, %v1680
  %v1682 = vadd.f32 %v1676, %v1681
  %v1683 = vadd.f32 %v1677, %v1681
  %v1684 = vld [vmem:[%s4 + $0x8] sm:$0xff]
  %v1685 = vld [vmem:[%s4 + $0x20] sm:$0xff]
  %v1686 = vld [vmem:[%s4 + $0x38] sm:$0xff]
  %v1687 = vld [vmem:[%s4 + $0x50] sm:$0xff]
  %v1688 = vld [vmem:[%s6 + $0x6] sm:$0x1]
  %v1689 = vlaneseq
  %v1690 = vshrl.u32 %v1689, 7
  %v1691 = vsub.s32 0, %v1690
  %v1692 = vrot.slane %v1688, %v1691
  %v1694 = vsel %vm55, %v1682, 0
  %v1697 = vsel %vm55, %v1683, 0
  %1699 = vmatprep.subr.mxu0 0.0
  %1700 = vmatpush1.msra.mxu0 %v1684
  %1701 = vmatprep.subr.mxu0 0.0
  %1702 = vmatpush1.msra.mxu0 %v1685
  %1703 = vmatprep.subr.mxu0 0.0
  %1704 = vmatpush1.msra.mxu0 %v1686
  %1705 = vmatprep.subr.mxu0 0.0
  %1706 = vmatpush1.msra.mxu0 %v1687
  %1707 = vmatprep.subr.mxu0 0.0
  %1708 = vmatpush1.msra.mxu0 0.0
  %1709 = vmatprep.subr.mxu0 0.0
  %1710 = vmatpush1.msra.mxu0 0.0
  %1711 = vmatprep.subr.mxu0 0.0
  %1712 = vmatpush1.msra.mxu0 0.0
  %1713 = vmatprep.subr.mxu0 0.0
  %1714 = vmatpush1.msra.mxu0 0.0
  %1715 = vmatprep.subr.mxu0 0.0
  %1716 = vmatpush1.msra.mxu0 0.0
  %1717 = vmatprep.subr.mxu0 0.0
  %1718 = vmatpush1.msra.mxu0 0.0
  %1719 = vmatprep.subr.mxu0 0.0
  %1720 = vmatpush1.msra.mxu0 0.0
  %1721 = vmatprep.subr.mxu0 0.0
  %1722 = vmatpush1.msra.mxu0 0.0
  %1723 = vmatprep.subr.mxu0 0.0
  %1724 = vmatpush1.msra.mxu0 0.0
  %1725 = vmatprep.subr.mxu0 0.0
  %1726 = vmatpush1.msra.mxu0 0.0
  %1727 = vmatprep.subr.mxu0 0.0
  %1728 = vmatpush1.msra.mxu0 0.0
  %1729 = vmatprep.subr.mxu0 0.0
  %1730 = vmatpush1.msra.mxu0 0.0
  %1731 = vmatprep.subr.mxu0 0.0
  %1732 = vmatpush1.msra.mxu0 0.0
  %1733 = vmatprep.subr.mxu0 0.0
  %1734 = vmatpush1.msra.mxu0 0.0
  %1735 = vmatprep.subr.mxu0 0.0
  %1736 = vmatpush1.msra.mxu0 0.0
  %1737 = vmatprep.subr.mxu0 0.0
  %1738 = vmatpush1.msra.mxu0 0.0
  %1739 = vmatprep.subr.mxu0 0.0
  %1740 = vmatpush1.msra.mxu0 0.0
  %1741 = vmatprep.subr.mxu0 0.0
  %1742 = vmatpush1.msra.mxu0 0.0
  %1743 = vmatprep.subr.mxu0 0.0
  %1744 = vmatpush1.msra.mxu0 0.0
  %1745 = vmatprep.subr.mxu0 0.0
  %1746 = vmatpush1.msra.mxu0 0.0
  %1747 = vmatprep.subr.mxu0 0.0
  %1748 = vmatpush1.msra.mxu0 0.0
  %1749 = vmatprep.subr.mxu0 0.0
  %1750 = vmatpush1.msra.mxu0 0.0
  %1751 = vmatprep.subr.mxu0 0.0
  %1752 = vmatpush1.msra.mxu0 0.0
  %1753 = vmatprep.subr.mxu0 0.0
  %1754 = vmatpush1.msra.mxu0 0.0
  %1755 = vmatprep.subr.mxu0 0.0
  %1756 = vmatpush1.msra.mxu0 0.0
  %1757 = vmatprep.subr.mxu0 0.0
  %1758 = vmatpush1.msra.mxu0 0.0
  %1759 = vmatprep.subr.mxu0 0.0
  %1760 = vmatpush1.msra.mxu0 0.0
  %1761 = vmatprep.subr.mxu0 0.0
  %1762 = vmatpush1.msra.mxu0 0.0
  %1763 = vmatprep.mubr.f32.mxu0 0.0
  %1764 = vmatmul.mubr.f32.gmra.mrb[0].mxu0 %v1694
  %v1765 = vpop.f32.mrb[0].mxu0
  %v1766 = vadd.f32 %v1692, %v1765
  %v1767 = vpop.f32.mrb[0].mxu0
  %1768 = vmatprep.mubr.f32.mxu0 0.0
  %1769 = vmatmul.mubr.f32.gmra.mrb[0].mxu0 %v1697
  %v1770 = vpop.f32.mrb[0].mxu0
  %v1771 = vadd.f32 %v1692, %v1770
  %v1772 = vpop.f32.mrb[0].mxu0
  %1773 = vdwg.mxu0
  %v1774 = vmul.f32 %v1766, 0.35355338
  %v1775 = vmul.f32 %v1771, 0.35355338
  %v1776 = vld [vmem:[%s6 + $0x7] sm:$0x1]
  %v1777 = vlaneseq
  %v1778 = vshrl.u32 %v1777, 7
  %v1779 = vsub.s32 0, %v1778
  %v1780 = vrot.slane %v1776, %v1779
  %1785 = vrot.lane.b32.xlu0 %v1684, 96
  %v1786 = vpop.permute.xlu0 %1785
  %1787 = vrot.lane.b32.xlu0 %v1685, 96
  %v1788 = vpop.permute.xlu0 %1787
  %1789 = vrot.lane.b32.xlu0 %v1686, 96
  %v1790 = vpop.permute.xlu0 %1789
  %1791 = vrot.lane.b32.xlu0 %v1687, 96
  %v1792 = vpop.permute.xlu0 %1791
  %v1798 = vsel %vm55, %v28, 0
  %v1801 = vsel %vm55, %v29, 0
  %v1804 = vsel %vm55, %v30, 0
  %v1807 = vsel %vm55, %v31, 0
  %1809 = vmatprep.subr.mxu0 0.0
  %1810 = vmatpush1.msra.mxu0 %v1786
  %1811 = vmatprep.subr.mxu0 0.0
  %1812 = vmatpush1.msra.mxu0 %v1788
  %1813 = vmatprep.subr.mxu0 0.0
  %1814 = vmatpush1.msra.mxu0 %v1790
  %1815 = vmatprep.subr.mxu0 0.0
  %1816 = vmatpush1.msra.mxu0 %v1792
  %1817 = vmatprep.subr.mxu0 0.0
  %1818 = vmatpush1.msra.mxu0 0.0
  %1819 = vmatprep.subr.mxu0 0.0
  %1820 = vmatpush1.msra.mxu0 0.0
  %1821 = vmatprep.subr.mxu0 0.0
  %1822 = vmatpush1.msra.mxu0 0.0
  %1823 = vmatprep.subr.mxu0 0.0
  %1824 = vmatpush1.msra.mxu0 0.0
  %1825 = vmatprep.subr.mxu0 0.0
  %1826 = vmatpush1.msra.mxu0 0.0
  %1827 = vmatprep.subr.mxu0 0.0
  %1828 = vmatpush1.msra.mxu0 0.0
  %1829 = vmatprep.subr.mxu0 0.0
  %1830 = vmatpush1.msra.mxu0 0.0
  %1831 = vmatprep.subr.mxu0 0.0
  %1832 = vmatpush1.msra.mxu0 0.0
  %1833 = vmatprep.subr.mxu0 0.0
  %1834 = vmatpush1.msra.mxu0 0.0
  %1835 = vmatprep.subr.mxu0 0.0
  %1836 = vmatpush1.msra.mxu0 0.0
  %1837 = vmatprep.subr.mxu0 0.0
  %1838 = vmatpush1.msra.mxu0 0.0
  %1839 = vmatprep.subr.mxu0 0.0
  %1840 = vmatpush1.msra.mxu0 0.0
  %1841 = vmatprep.subr.mxu0 0.0
  %1842 = vmatpush1.msra.mxu0 0.0
  %1843 = vmatprep.subr.mxu0 0.0
  %1844 = vmatpush1.msra.mxu0 0.0
  %1845 = vmatprep.subr.mxu0 0.0
  %1846 = vmatpush1.msra.mxu0 0.0
  %1847 = vmatprep.subr.mxu0 0.0
  %1848 = vmatpush1.msra.mxu0 0.0
  %1849 = vmatprep.subr.mxu0 0.0
  %1850 = vmatpush1.msra.mxu0 0.0
  %1851 = vmatprep.subr.mxu0 0.0
  %1852 = vmatpush1.msra.mxu0 0.0
  %1853 = vmatprep.subr.mxu0 0.0
  %1854 = vmatpush1.msra.mxu0 0.0
  %1855 = vmatprep.subr.mxu0 0.0
  %1856 = vmatpush1.msra.mxu0 0.0
  %1857 = vmatprep.subr.mxu0 0.0
  %1858 = vmatpush1.msra.mxu0 0.0
  %1859 = vmatprep.subr.mxu0 0.0
  %1860 = vmatpush1.msra.mxu0 0.0
  %1861 = vmatprep.subr.mxu0 0.0
  %1862 = vmatpush1.msra.mxu0 0.0
  %1863 = vmatprep.subr.mxu0 0.0
  %1864 = vmatpush1.msra.mxu0 0.0
  %1865 = vmatprep.subr.mxu0 0.0
  %1866 = vmatpush1.msra.mxu0 0.0
  %1867 = vmatprep.subr.mxu0 0.0
  %1868 = vmatpush1.msra.mxu0 0.0
  %1869 = vmatprep.subr.mxu0 0.0
  %1870 = vmatpush1.msra.mxu0 0.0
  %1871 = vmatprep.subr.mxu0 0.0
  %1872 = vmatpush1.msra.mxu0 0.0
  %1873 = vmatprep.mubr.f32.mxu0 0.0
  %1874 = vmatmul.mubr.f32.gmra.mrb[0].mxu0 %v1798
  %v1875 = vpop.f32.mrb[0].mxu0
  %v1876 = vadd.f32 %v1780, %v1875
  %v1877 = vpop.f32.mrb[0].mxu0
  %1878 = vmatprep.mubr.f32.mxu0 0.0
  %1879 = vmatmul.mubr.f32.gmra.mrb[0].mxu0 %v1801
  %v1880 = vpop.f32.mrb[0].mxu0
  %v1881 = vadd.f32 %v1780, %v1880
  %v1882 = vpop.f32.mrb[0].mxu0
  %1883 = vmatprep.mubr.f32.mxu0 0.0
  %1884 = vmatmul.mubr.f32.gmra.mrb[0].mxu0 %v1804
  %v1885 = vpop.f32.mrb[0].mxu0
  %v1886 = vadd.f32 %v1780, %v1885
  %v1887 = vpop.f32.mrb[0].mxu0
  %1888 = vmatprep.mubr.f32.mxu0 0.0
  %1889 = vmatmul.mubr.f32.gmra.mrb[0].mxu0 %v1807
  %v1890 = vpop.f32.mrb[0].mxu0
  %v1891 = vadd.f32 %v1780, %v1890
  %v1892 = vpop.f32.mrb[0].mxu0
  %1893 = vdwg.mxu0
  %v1894 = vld [vmem:[%s6 + $0x8] sm:$0x1]
  %v1896 = vsel %vm191, %v1774, 0
  %v1899 = vsel %vm191, %v1876, 0
  %v1902 = vsel %vm191, %v1881, 0
  %1904 = vmatprep.subr.mxu0 0.0
  %1905 = vmatpush1.xpose.msra.mxu0 %v1899
  %1906 = vmatprep.subr.mxu0 0.0
  %1907 = vmatpush1.xpose.msra.mxu0 %v1902
  %1908 = vmatprep.subr.mxu0 0.0
  %1909 = vmatpush1.xpose.msra.mxu0 0.0
  %1910 = vmatprep.subr.mxu0 0.0
  %1911 = vmatpush1.xpose.msra.mxu0 0.0
  %1912 = vmatprep.subr.mxu0 0.0
  %1913 = vmatpush1.xpose.msra.mxu0 0.0
  %1914 = vmatprep.subr.mxu0 0.0
  %1915 = vmatpush1.xpose.msra.mxu0 0.0
  %1916 = vmatprep.subr.mxu0 0.0
  %1917 = vmatpush1.xpose.msra.mxu0 0.0
  %1918 = vmatprep.subr.mxu0 0.0
  %1919 = vmatpush1.xpose.msra.mxu0 0.0
  %1920 = vmatprep.subr.mxu0 0.0
  %1921 = vmatpush1.xpose.msra.mxu0 0.0
  %1922 = vmatprep.subr.mxu0 0.0
  %1923 = vmatpush1.xpose.msra.mxu0 0.0
  %1924 = vmatprep.subr.mxu0 0.0
  %1925 = vmatpush1.xpose.msra.mxu0 0.0
  %1926 = vmatprep.subr.mxu0 0.0
  %1927 = vmatpush1.xpose.msra.mxu0 0.0
  %1928 = vmatprep.subr.mxu0 0.0
  %1929 = vmatpush1.xpose.msra.mxu0 0.0
  %1930 = vmatprep.subr.mxu0 0.0
  %1931 = vmatpush1.xpose.msra.mxu0 0.0
  %1932 = vmatprep.subr.mxu0 0.0
  %1933 = vmatpush1.xpose.msra.mxu0 0.0
  %1934 = vmatprep.subr.mxu0 0.0
  %1935 = vmatpush1.xpose.msra.mxu0 0.0
  %1936 = vmatprep.subr.mxu0 0.0
  %1937 = vmatpush1.xpose.msra.mxu0 0.0
  %1938 = vmatprep.subr.mxu0 0.0
  %1939 = vmatpush1.xpose.msra.mxu0 0.0
  %1940 = vmatprep.subr.mxu0 0.0
  %1941 = vmatpush1.xpose.msra.mxu0 0.0
  %1942 = vmatprep.subr.mxu0 0.0
  %1943 = vmatpush1.xpose.msra.mxu0 0.0
  %1944 = vmatprep.subr.mxu0 0.0
  %1945 = vmatpush1.xpose.msra.mxu0 0.0
  %1946 = vmatprep.subr.mxu0 0.0
  %1947 = vmatpush1.xpose.msra.mxu0 0.0
  %1948 = vmatprep.subr.mxu0 0.0
  %1949 = vmatpush1.xpose.msra.mxu0 0.0
  %1950 = vmatprep.subr.mxu0 0.0
  %1951 = vmatpush1.xpose.msra.mxu0 0.0
  %1952 = vmatprep.subr.mxu0 0.0
  %1953 = vmatpush1.xpose.msra.mxu0 0.0
  %1954 = vmatprep.subr.mxu0 0.0
  %1955 = vmatpush1.xpose.msra.mxu0 0.0
  %1956 = vmatprep.subr.mxu0 0.0
  %1957 = vmatpush1.xpose.msra.mxu0 0.0
  %1958 = vmatprep.subr.mxu0 0.0
  %1959 = vmatpush1.xpose.msra.mxu0 0.0
  %1960 = vmatprep.subr.mxu0 0.0
  %1961 = vmatpush1.xpose.msra.mxu0 0.0
  %1962 = vmatprep.subr.mxu0 0.0
  %1963 = vmatpush1.xpose.msra.mxu0 0.0
  %1964 = vmatprep.subr.mxu0 0.0
  %1965 = vmatpush1.xpose.msra.mxu0 0.0
  %1966 = vmatprep.subr.mxu0 0.0
  %1967 = vmatpush1.xpose.msra.mxu0 0.0
  %1968 = vmatprep.mubr.f32.mxu0 0.0
  %1969 = vmatmul.mubr.f32.gmra.mrb[0].mxu0 %v1896
  %v1970 = vpop.f32.mrb[0].mxu0
  %v1971 = vadd.f32 %v51, %v1970
  %v1972 = vpop.f32.mrb[0].mxu0
  %1973 = vdwg.mxu0
  %v1975 = vsel %vm191, %v1775, 0
  %v1978 = vsel %vm191, %v1886, 0
  %v1981 = vsel %vm191, %v1891, 0
  %1983 = vmatprep.subr.mxu0 0.0
  %1984 = vmatpush1.xpose.msra.mxu0 %v1978
  %1985 = vmatprep.subr.mxu0 0.0
  %1986 = vmatpush1.xpose.msra.mxu0 %v1981
  %1987 = vmatprep.subr.mxu0 0.0
  %1988 = vmatpush1.xpose.msra.mxu0 0.0
  %1989 = vmatprep.subr.mxu0 0.0
  %1990 = vmatpush1.xpose.msra.mxu0 0.0
  %1991 = vmatprep.subr.mxu0 0.0
  %1992 = vmatpush1.xpose.msra.mxu0 0.0
  %1993 = vmatprep.subr.mxu0 0.0
  %1994 = vmatpush1.xpose.msra.mxu0 0.0
  %1995 = vmatprep.subr.mxu0 0.0
  %1996 = vmatpush1.xpose.msra.mxu0 0.0
  %1997 = vmatprep.subr.mxu0 0.0
  %1998 = vmatpush1.xpose.msra.mxu0 0.0
  %1999 = vmatprep.subr.mxu0 0.0
  %2000 = vmatpush1.xpose.msra.mxu0 0.0
  %2001 = vmatprep.subr.mxu0 0.0
  %2002 = vmatpush1.xpose.msra.mxu0 0.0
  %2003 = vmatprep.subr.mxu0 0.0
  %2004 = vmatpush1.xpose.msra.mxu0 0.0
  %2005 = vmatprep.subr.mxu0 0.0
  %2006 = vmatpush1.xpose.msra.mxu0 0.0
  %2007 = vmatprep.subr.mxu0 0.0
  %2008 = vmatpush1.xpose.msra.mxu0 0.0
  %2009 = vmatprep.subr.mxu0 0.0
  %2010 = vmatpush1.xpose.msra.mxu0 0.0
  %2011 = vmatprep.subr.mxu0 0.0
  %2012 = vmatpush1.xpose.msra.mxu0 0.0
  %2013 = vmatprep.subr.mxu0 0.0
  %2014 = vmatpush1.xpose.msra.mxu0 0.0
  %2015 = vmatprep.subr.mxu0 0.0
  %2016 = vmatpush1.xpose.msra.mxu0 0.0
  %2017 = vmatprep.subr.mxu0 0.0
  %2018 = vmatpush1.xpose.msra.mxu0 0.0
  %2019 = vmatprep.subr.mxu0 0.0
  %2020 = vmatpush1.xpose.msra.mxu0 0.0
  %2021 = vmatprep.subr.mxu0 0.0
  %2022 = vmatpush1.xpose.msra.mxu0 0.0
  %2023 = vmatprep.subr.mxu0 0.0
  %2024 = vmatpush1.xpose.msra.mxu0 0.0
  %2025 = vmatprep.subr.mxu0 0.0
  %2026 = vmatpush1.xpose.msra.mxu0 0.0
  %2027 = vmatprep.subr.mxu0 0.0
  %2028 = vmatpush1.xpose.msra.mxu0 0.0
  %2029 = vmatprep.subr.mxu0 0.0
  %2030 = vmatpush1.xpose.msra.mxu0 0.0
  %2031 = vmatprep.subr.mxu0 0.0
  %2032 = vmatpush1.xpose.msra.mxu0 0.0
  %2033 = vmatprep.subr.mxu0 0.0
  %2034 = vmatpush1.xpose.msra.mxu0 0.0
  %2035 = vmatprep.subr.mxu0 0.0
  %2036 = vmatpush1.xpose.msra.mxu0 0.0
  %2037 = vmatprep.subr.mxu0 0.0
  %2038 = vmatpush1.xpose.msra.mxu0 0.0
  %2039 = vmatprep.subr.mxu0 0.0
  %2040 = vmatpush1.xpose.msra.mxu0 0.0
  %2041 = vmatprep.subr.mxu0 0.0
  %2042 = vmatpush1.xpose.msra.mxu0 0.0
  %2043 = vmatprep.subr.mxu0 0.0
  %2044 = vmatpush1.xpose.msra.mxu0 0.0
  %2045 = vmatprep.subr.mxu0 0.0
  %2046 = vmatpush1.xpose.msra.mxu0 0.0
  %2047 = vmatprep.mubr.f32.mxu0 0.0
  %2048 = vmatmul.mubr.f32.gmra.mrb[0].mxu0 %v1975
  %v2049 = vpop.f32.mrb[0].mxu0
  %v2050 = vadd.f32 %v52, %v2049
  %v2051 = vpop.f32.mrb[0].mxu0
  %2052 = vdwg.mxu0
  %v2053 = vsel %vm1535, %v1971, -inf
  %2054 = vmax.xlane.f32.xlu0 %v2053
  %v2055 = vpop.xlane.xlu0 %2054
  %v2056 = vsel %vm1535, %v2050, -inf
  %2057 = vmax.xlane.f32.xlu0 %v2056
  %v2058 = vpop.xlane.xlu0 %2057
  %v2059 = vsub.f32 %v1971, %v2055
  %v2060 = vsub.f32 %v2050, %v2058
  %v2061 = vmul.f32 %v2059, 1.442695
  %v2062 = vpow.pop %v2061
  %v2063 = vmul.f32 %v2060, 1.442695
  %v2064 = vpow.pop %v2063
  %v2065 = vsel %vm1535, %v2062, 0.0
  %2066 = vadd.xlane.f32.xlu0 %v2065
  %v2067 = vpop.xlane.xlu0 %2066
  %v2068 = vsel %vm1535, %v2064, 0.0
  %2069 = vadd.xlane.f32.xlu0 %v2068
  %v2070 = vpop.xlane.xlu0 %2069
  %v2071 = vrcp.pop %v2067
  %v2072 = vrcp.pop %v2070
  %v2073 = vmul.f32 %v2062, %v2071
  %v2074 = vmul.f32 %v2064, %v2072
  %2075 = vrot.lane.b32.xlu0 %v1876, 96
  %v2076 = vpop.permute.xlu0 %2075
  %2077 = vrot.lane.b32.xlu0 %v1881, 96
  %v2078 = vpop.permute.xlu0 %2077
  %v2082 = vsel %vm1535, %v2073, 0
  %2084 = vmatprep.subr.mxu0 0.0
  %2085 = vmatpush1.msra.mxu0 %v2076
  %2086 = vmatprep.subr.mxu0 0.0
  %2087 = vmatpush1.msra.mxu0 %v2078
  %2088 = vmatprep.subr.mxu0 0.0
  %2089 = vmatpush1.msra.mxu0 0.0
  %2090 = vmatprep.subr.mxu0 0.0
  %2091 = vmatpush1.msra.mxu0 0.0
  %2092 = vmatprep.subr.mxu0 0.0
  %2093 = vmatpush1.msra.mxu0 0.0
  %2094 = vmatprep.subr.mxu0 0.0
  %2095 = vmatpush1.msra.mxu0 0.0
  %2096 = vmatprep.subr.mxu0 0.0
  %2097 = vmatpush1.msra.mxu0 0.0
  %2098 = vmatprep.subr.mxu0 0.0
  %2099 = vmatpush1.msra.mxu0 0.0
  %2100 = vmatprep.subr.mxu0 0.0
  %2101 = vmatpush1.msra.mxu0 0.0
  %2102 = vmatprep.subr.mxu0 0.0
  %2103 = vmatpush1.msra.mxu0 0.0
  %2104 = vmatprep.subr.mxu0 0.0
  %2105 = vmatpush1.msra.mxu0 0.0
  %2106 = vmatprep.subr.mxu0 0.0
  %2107 = vmatpush1.msra.mxu0 0.0
  %2108 = vmatprep.subr.mxu0 0.0
  %2109 = vmatpush1.msra.mxu0 0.0
  %2110 = vmatprep.subr.mxu0 0.0
  %2111 = vmatpush1.msra.mxu0 0.0
  %2112 = vmatprep.subr.mxu0 0.0
  %2113 = vmatpush1.msra.mxu0 0.0
  %2114 = vmatprep.subr.mxu0 0.0
  %2115 = vmatpush1.msra.mxu0 0.0
  %2116 = vmatprep.subr.mxu0 0.0
  %2117 = vmatpush1.msra.mxu0 0.0
  %2118 = vmatprep.subr.mxu0 0.0
  %2119 = vmatpush1.msra.mxu0 0.0
  %2120 = vmatprep.subr.mxu0 0.0
  %2121 = vmatpush1.msra.mxu0 0.0
  %2122 = vmatprep.subr.mxu0 0.0
  %2123 = vmatpush1.msra.mxu0 0.0
  %2124 = vmatprep.subr.mxu0 0.0
  %2125 = vmatpush1.msra.mxu0 0.0
  %2126 = vmatprep.subr.mxu0 0.0
  %2127 = vmatpush1.msra.mxu0 0.0
  %2128 = vmatprep.subr.mxu0 0.0
  %2129 = vmatpush1.msra.mxu0 0.0
  %2130 = vmatprep.subr.mxu0 0.0
  %2131 = vmatpush1.msra.mxu0 0.0
  %2132 = vmatprep.subr.mxu0 0.0
  %2133 = vmatpush1.msra.mxu0 0.0
  %2134 = vmatprep.subr.mxu0 0.0
  %2135 = vmatpush1.msra.mxu0 0.0
  %2136 = vmatprep.subr.mxu0 0.0
  %2137 = vmatpush1.msra.mxu0 0.0
  %2138 = vmatprep.subr.mxu0 0.0
  %2139 = vmatpush1.msra.mxu0 0.0
  %2140 = vmatprep.subr.mxu0 0.0
  %2141 = vmatpush1.msra.mxu0 0.0
  %2142 = vmatprep.subr.mxu0 0.0
  %2143 = vmatpush1.msra.mxu0 0.0
  %2144 = vmatprep.subr.mxu0 0.0
  %2145 = vmatpush1.msra.mxu0 0.0
  %2146 = vmatprep.subr.mxu0 0.0
  %2147 = vmatpush1.msra.mxu0 0.0
  %2148 = vmatprep.mubr.f32.mxu0 0.0
  %2149 = vmatmul.mubr.f32.gmra.mrb[0].mxu0 %v2082
  %v2150 = vpop.f32.mrb[0].mxu0
  %v2151 = vadd.f32 0.0, %v2150
  %v2152 = vpop.f32.mrb[0].mxu0
  %2153 = vdwg.mxu0
  %2154 = vrot.lane.b32.xlu0 %v1886, 96
  %v2155 = vpop.permute.xlu0 %2154
  %2156 = vrot.lane.b32.xlu0 %v1891, 96
  %v2157 = vpop.permute.xlu0 %2156
  %v2161 = vsel %vm1535, %v2074, 0
  %2163 = vmatprep.subr.mxu0 0.0
  %2164 = vmatpush1.msra.mxu0 %v2155
  %2165 = vmatprep.subr.mxu0 0.0
  %2166 = vmatpush1.msra.mxu0 %v2157
  %2167 = vmatprep.subr.mxu0 0.0
  %2168 = vmatpush1.msra.mxu0 0.0
  %2169 = vmatprep.subr.mxu0 0.0
  %2170 = vmatpush1.msra.mxu0 0.0
  %2171 = vmatprep.subr.mxu0 0.0
  %2172 = vmatpush1.msra.mxu0 0.0
  %2173 = vmatprep.subr.mxu0 0.0
  %2174 = vmatpush1.msra.mxu0 0.0
  %2175 = vmatprep.subr.mxu0 0.0
  %2176 = vmatpush1.msra.mxu0 0.0
  %2177 = vmatprep.subr.mxu0 0.0
  %2178 = vmatpush1.msra.mxu0 0.0
  %2179 = vmatprep.subr.mxu0 0.0
  %2180 = vmatpush1.msra.mxu0 0.0
  %2181 = vmatprep.subr.mxu0 0.0
  %2182 = vmatpush1.msra.mxu0 0.0
  %2183 = vmatprep.subr.mxu0 0.0
  %2184 = vmatpush1.msra.mxu0 0.0
  %2185 = vmatprep.subr.mxu0 0.0
  %2186 = vmatpush1.msra.mxu0 0.0
  %2187 = vmatprep.subr.mxu0 0.0
  %2188 = vmatpush1.msra.mxu0 0.0
  %2189 = vmatprep.subr.mxu0 0.0
  %2190 = vmatpush1.msra.mxu0 0.0
  %2191 = vmatprep.subr.mxu0 0.0
  %2192 = vmatpush1.msra.mxu0 0.0
  %2193 = vmatprep.subr.mxu0 0.0
  %2194 = vmatpush1.msra.mxu0 0.0
  %2195 = vmatprep.subr.mxu0 0.0
  %2196 = vmatpush1.msra.mxu0 0.0
  %2197 = vmatprep.subr.mxu0 0.0
  %2198 = vmatpush1.msra.mxu0 0.0
  %2199 = vmatprep.subr.mxu0 0.0
  %2200 = vmatpush1.msra.mxu0 0.0
  %2201 = vmatprep.subr.mxu0 0.0
  %2202 = vmatpush1.msra.mxu0 0.0
  %2203 = vmatprep.subr.mxu0 0.0
  %2204 = vmatpush1.msra.mxu0 0.0
  %2205 = vmatprep.subr.mxu0 0.0
  %2206 = vmatpush1.msra.mxu0 0.0
  %2207 = vmatprep.subr.mxu0 0.0
  %2208 = vmatpush1.msra.mxu0 0.0
  %2209 = vmatprep.subr.mxu0 0.0
  %2210 = vmatpush1.msra.mxu0 0.0
  %2211 = vmatprep.subr.mxu0 0.0
  %2212 = vmatpush1.msra.mxu0 0.0
  %2213 = vmatprep.subr.mxu0 0.0
  %2214 = vmatpush1.msra.mxu0 0.0
  %2215 = vmatprep.subr.mxu0 0.0
  %2216 = vmatpush1.msra.mxu0 0.0
  %2217 = vmatprep.subr.mxu0 0.0
  %2218 = vmatpush1.msra.mxu0 0.0
  %2219 = vmatprep.subr.mxu0 0.0
  %2220 = vmatpush1.msra.mxu0 0.0
  %2221 = vmatprep.subr.mxu0 0.0
  %2222 = vmatpush1.msra.mxu0 0.0
  %2223 = vmatprep.subr.mxu0 0.0
  %2224 = vmatpush1.msra.mxu0 0.0
  %2225 = vmatprep.subr.mxu0 0.0
  %2226 = vmatpush1.msra.mxu0 0.0
  %2227 = vmatprep.mubr.f32.mxu0 0.0
  %2228 = vmatmul.mubr.f32.gmra.mrb[0].mxu0 %v2161
  %v2229 = vpop.f32.mrb[0].mxu0
  %v2230 = vadd.f32 0.0, %v2229
  %v2231 = vpop.f32.mrb[0].mxu0
  %2232 = vdwg.mxu0
  %2233 = vrot.lane.b32.xlu0 %v1774, 120
  %v2234 = vpop.permute.xlu0 %2233
  %2235 = vrot.lane.b32.xlu0 %v1876, 120
  %v2236 = vpop.permute.xlu0 %2235
  %2237 = vrot.lane.b32.xlu0 %v1881, 120
  %v2238 = vpop.permute.xlu0 %2237
  %v2239 = vsel %vm191, %v2234, 0
  %v2241 = vsel %vm191, %v2236, 0
  %v2243 = vsel %vm191, %v2238, 0
  %2245 = vmatprep.subr.mxu0 0.0
  %2246 = vmatpush1.xpose.msra.mxu0 %v2241
  %2247 = vmatprep.subr.mxu0 0.0
  %2248 = vmatpush1.xpose.msra.mxu0 %v2243
  %2249 = vmatprep.subr.mxu0 0.0
  %2250 = vmatpush1.xpose.msra.mxu0 0.0
  %2251 = vmatprep.subr.mxu0 0.0
  %2252 = vmatpush1.xpose.msra.mxu0 0.0
  %2253 = vmatprep.subr.mxu0 0.0
  %2254 = vmatpush1.xpose.msra.mxu0 0.0
  %2255 = vmatprep.subr.mxu0 0.0
  %2256 = vmatpush1.xpose.msra.mxu0 0.0
  %2257 = vmatprep.subr.mxu0 0.0
  %2258 = vmatpush1.xpose.msra.mxu0 0.0
  %2259 = vmatprep.subr.mxu0 0.0
  %2260 = vmatpush1.xpose.msra.mxu0 0.0
  %2261 = vmatprep.subr.mxu0 0.0
  %2262 = vmatpush1.xpose.msra.mxu0 0.0
  %2263 = vmatprep.subr.mxu0 0.0
  %2264 = vmatpush1.xpose.msra.mxu0 0.0
  %2265 = vmatprep.subr.mxu0 0.0
  %2266 = vmatpush1.xpose.msra.mxu0 0.0
  %2267 = vmatprep.subr.mxu0 0.0
  %2268 = vmatpush1.xpose.msra.mxu0 0.0
  %2269 = vmatprep.subr.mxu0 0.0
  %2270 = vmatpush1.xpose.msra.mxu0 0.0
  %2271 = vmatprep.subr.mxu0 0.0
  %2272 = vmatpush1.xpose.msra.mxu0 0.0
  %2273 = vmatprep.subr.mxu0 0.0
  %2274 = vmatpush1.xpose.msra.mxu0 0.0
  %2275 = vmatprep.subr.mxu0 0.0
  %2276 = vmatpush1.xpose.msra.mxu0 0.0
  %2277 = vmatprep.subr.mxu0 0.0
  %2278 = vmatpush1.xpose.msra.mxu0 0.0
  %2279 = vmatprep.subr.mxu0 0.0
  %2280 = vmatpush1.xpose.msra.mxu0 0.0
  %2281 = vmatprep.subr.mxu0 0.0
  %2282 = vmatpush1.xpose.msra.mxu0 0.0
  %2283 = vmatprep.subr.mxu0 0.0
  %2284 = vmatpush1.xpose.msra.mxu0 0.0
  %2285 = vmatprep.subr.mxu0 0.0
  %2286 = vmatpush1.xpose.msra.mxu0 0.0
  %2287 = vmatprep.subr.mxu0 0.0
  %2288 = vmatpush1.xpose.msra.mxu0 0.0
  %2289 = vmatprep.subr.mxu0 0.0
  %2290 = vmatpush1.xpose.msra.mxu0 0.0
  %2291 = vmatprep.subr.mxu0 0.0
  %2292 = vmatpush1.xpose.msra.mxu0 0.0
  %2293 = vmatprep.subr.mxu0 0.0
  %2294 = vmatpush1.xpose.msra.mxu0 0.0
  %2295 = vmatprep.subr.mxu0 0.0
  %2296 = vmatpush1.xpose.msra.mxu0 0.0
  %2297 = vmatprep.subr.mxu0 0.0
  %2298 = vmatpush1.xpose.msra.mxu0 0.0
  %2299 = vmatprep.subr.mxu0 0.0
  %2300 = vmatpush1.xpose.msra.mxu0 0.0
  %2301 = vmatprep.subr.mxu0 0.0
  %2302 = vmatpush1.xpose.msra.mxu0 0.0
  %2303 = vmatprep.subr.mxu0 0.0
  %2304 = vmatpush1.xpose.msra.mxu0 0.0
  %2305 = vmatprep.subr.mxu0 0.0
  %2306 = vmatpush1.xpose.msra.mxu0 0.0
  %2307 = vmatprep.subr.mxu0 0.0
  %2308 = vmatpush1.xpose.msra.mxu0 0.0
  %2309 = vmatprep.mubr.f32.mxu0 0.0
  %2310 = vmatmul.mubr.f32.gmra.mrb[0].mxu0 %v2239
  %v2311 = vpop.f32.mrb[0].mxu0
  %v2312 = vadd.f32 %v51, %v2311
  %v2313 = vpop.f32.mrb[0].mxu0
  %2314 = vdwg.mxu0
  %2315 = vrot.lane.b32.xlu0 %v1775, 120
  %v2316 = vpop.permute.xlu0 %2315
  %2317 = vrot.lane.b32.xlu0 %v1886, 120
  %v2318 = vpop.permute.xlu0 %2317
  %2319 = vrot.lane.b32.xlu0 %v1891, 120
  %v2320 = vpop.permute.xlu0 %2319
  %v2321 = vsel %vm191, %v2316, 0
  %v2323 = vsel %vm191, %v2318, 0
  %v2325 = vsel %vm191, %v2320, 0
  %2327 = vmatprep.subr.mxu0 0.0
  %2328 = vmatpush1.xpose.msra.mxu0 %v2323
  %2329 = vmatprep.subr.mxu0 0.0
  %2330 = vmatpush1.xpose.msra.mxu0 %v2325
  %2331 = vmatprep.subr.mxu0 0.0
  %2332 = vmatpush1.xpose.msra.mxu0 0.0
  %2333 = vmatprep.subr.mxu0 0.0
  %2334 = vmatpush1.xpose.msra.mxu0 0.0
  %2335 = vmatprep.subr.mxu0 0.0
  %2336 = vmatpush1.xpose.msra.mxu0 0.0
  %2337 = vmatprep.subr.mxu0 0.0
  %2338 = vmatpush1.xpose.msra.mxu0 0.0
  %2339 = vmatprep.subr.mxu0 0.0
  %2340 = vmatpush1.xpose.msra.mxu0 0.0
  %2341 = vmatprep.subr.mxu0 0.0
  %2342 = vmatpush1.xpose.msra.mxu0 0.0
  %2343 = vmatprep.subr.mxu0 0.0
  %2344 = vmatpush1.xpose.msra.mxu0 0.0
  %2345 = vmatprep.subr.mxu0 0.0
  %2346 = vmatpush1.xpose.msra.mxu0 0.0
  %2347 = vmatprep.subr.mxu0 0.0
  %2348 = vmatpush1.xpose.msra.mxu0 0.0
  %2349 = vmatprep.subr.mxu0 0.0
  %2350 = vmatpush1.xpose.msra.mxu0 0.0
  %2351 = vmatprep.subr.mxu0 0.0
  %2352 = vmatpush1.xpose.msra.mxu0 0.0
  %2353 = vmatprep.subr.mxu0 0.0
  %2354 = vmatpush1.xpose.msra.mxu0 0.0
  %2355 = vmatprep.subr.mxu0 0.0
  %2356 = vmatpush1.xpose.msra.mxu0 0.0
  %2357 = vmatprep.subr.mxu0 0.0
  %2358 = vmatpush1.xpose.msra.mxu0 0.0
  %2359 = vmatprep.subr.mxu0 0.0
  %2360 = vmatpush1.xpose.msra.mxu0 0.0
  %2361 = vmatprep.subr.mxu0 0.0
  %2362 = vmatpush1.xpose.msra.mxu0 0.0
  %2363 = vmatprep.subr.mxu0 0.0
  %2364 = vmatpush1.xpose.msra.mxu0 0.0
  %2365 = vmatprep.subr.mxu0 0.0
  %2366 = vmatpush1.xpose.msra.mxu0 0.0
  %2367 = vmatprep.subr.mxu0 0.0
  %2368 = vmatpush1.xpose.msra.mxu0 0.0
  %2369 = vmatprep.subr.mxu0 0.0
  %2370 = vmatpush1.xpose.msra.mxu0 0.0
  %2371 = vmatprep.subr.mxu0 0.0
  %2372 = vmatpush1.xpose.msra.mxu0 0.0
  %2373 = vmatprep.subr.mxu0 0.0
  %2374 = vmatpush1.xpose.msra.mxu0 0.0
  %2375 = vmatprep.subr.mxu0 0.0
  %2376 = vmatpush1.xpose.msra.mxu0 0.0
  %2377 = vmatprep.subr.mxu0 0.0
  %2378 = vmatpush1.xpose.msra.mxu0 0.0
  %2379 = vmatprep.subr.mxu0 0.0
  %2380 = vmatpush1.xpose.msra.mxu0 0.0
  %2381 = vmatprep.subr.mxu0 0.0
  %2382 = vmatpush1.xpose.msra.mxu0 0.0
  %2383 = vmatprep.subr.mxu0 0.0
  %2384 = vmatpush1.xpose.msra.mxu0 0.0
  %2385 = vmatprep.subr.mxu0 0.0
  %2386 = vmatpush1.xpose.msra.mxu0 0.0
  %2387 = vmatprep.subr.mxu0 0.0
  %2388 = vmatpush1.xpose.msra.mxu0 0.0
  %2389 = vmatprep.subr.mxu0 0.0
  %2390 = vmatpush1.xpose.msra.mxu0 0.0
  %2391 = vmatprep.mubr.f32.mxu0 0.0
  %2392 = vmatmul.mubr.f32.gmra.mrb[0].mxu0 %v2321
  %v2393 = vpop.f32.mrb[0].mxu0
  %v2394 = vadd.f32 %v52, %v2393
  %v2395 = vpop.f32.mrb[0].mxu0
  %2396 = vdwg.mxu0
  %v2397 = vsel %vm1535, %v2312, -inf
  %2398 = vmax.xlane.f32.xlu0 %v2397
  %v2399 = vpop.xlane.xlu0 %2398
  %v2400 = vsel %vm1535, %v2394, -inf
  %2401 = vmax.xlane.f32.xlu0 %v2400
  %v2402 = vpop.xlane.xlu0 %2401
  %v2403 = vsub.f32 %v2312, %v2399
  %v2404 = vsub.f32 %v2394, %v2402
  %v2405 = vmul.f32 %v2403, 1.442695
  %v2406 = vpow.pop %v2405
  %v2407 = vmul.f32 %v2404, 1.442695
  %v2408 = vpow.pop %v2407
  %v2409 = vsel %vm1535, %v2406, 0.0
  %2410 = vadd.xlane.f32.xlu0 %v2409
  %v2411 = vpop.xlane.xlu0 %2410
  %v2412 = vsel %vm1535, %v2408, 0.0
  %2413 = vadd.xlane.f32.xlu0 %v2412
  %v2414 = vpop.xlane.xlu0 %2413
  %v2415 = vrcp.pop %v2411
  %v2416 = vrcp.pop %v2414
  %v2417 = vmul.f32 %v2406, %v2415
  %v2418 = vmul.f32 %v2408, %v2416
  %2419 = vrot.lane.b32.xlu0 %v1876, 88
  %v2420 = vpop.permute.xlu0 %2419
  %2421 = vrot.lane.b32.xlu0 %v1881, 88
  %v2422 = vpop.permute.xlu0 %2421
  %v2426 = vsel %vm1535, %v2417, 0
  %2428 = vmatprep.subr.mxu0 0.0
  %2429 = vmatpush1.msra.mxu0 %v2420
  %2430 = vmatprep.subr.mxu0 0.0
  %2431 = vmatpush1.msra.mxu0 %v2422
  %2432 = vmatprep.subr.mxu0 0.0
  %2433 = vmatpush1.msra.mxu0 0.0
  %2434 = vmatprep.subr.mxu0 0.0
  %2435 = vmatpush1.msra.mxu0 0.0
  %2436 = vmatprep.subr.mxu0 0.0
  %2437 = vmatpush1.msra.mxu0 0.0
  %2438 = vmatprep.subr.mxu0 0.0
  %2439 = vmatpush1.msra.mxu0 0.0
  %2440 = vmatprep.subr.mxu0 0.0
  %2441 = vmatpush1.msra.mxu0 0.0
  %2442 = vmatprep.subr.mxu0 0.0
  %2443 = vmatpush1.msra.mxu0 0.0
  %2444 = vmatprep.subr.mxu0 0.0
  %2445 = vmatpush1.msra.mxu0 0.0
  %2446 = vmatprep.subr.mxu0 0.0
  %2447 = vmatpush1.msra.mxu0 0.0
  %2448 = vmatprep.subr.mxu0 0.0
  %2449 = vmatpush1.msra.mxu0 0.0
  %2450 = vmatprep.subr.mxu0 0.0
  %2451 = vmatpush1.msra.mxu0 0.0
  %2452 = vmatprep.subr.mxu0 0.0
  %2453 = vmatpush1.msra.mxu0 0.0
  %2454 = vmatprep.subr.mxu0 0.0
  %2455 = vmatpush1.msra.mxu0 0.0
  %2456 = vmatprep.subr.mxu0 0.0
  %2457 = vmatpush1.msra.mxu0 0.0
  %2458 = vmatprep.subr.mxu0 0.0
  %2459 = vmatpush1.msra.mxu0 0.0
  %2460 = vmatprep.subr.mxu0 0.0
  %2461 = vmatpush1.msra.mxu0 0.0
  %2462 = vmatprep.subr.mxu0 0.0
  %2463 = vmatpush1.msra.mxu0 0.0
  %2464 = vmatprep.subr.mxu0 0.0
  %2465 = vmatpush1.msra.mxu0 0.0
  %2466 = vmatprep.subr.mxu0 0.0
  %2467 = vmatpush1.msra.mxu0 0.0
  %2468 = vmatprep.subr.mxu0 0.0
  %2469 = vmatpush1.msra.mxu0 0.0
  %2470 = vmatprep.subr.mxu0 0.0
  %2471 = vmatpush1.msra.mxu0 0.0
  %2472 = vmatprep.subr.mxu0 0.0
  %2473 = vmatpush1.msra.mxu0 0.0
  %2474 = vmatprep.subr.mxu0 0.0
  %2475 = vmatpush1.msra.mxu0 0.0
  %2476 = vmatprep.subr.mxu0 0.0
  %2477 = vmatpush1.msra.mxu0 0.0
  %2478 = vmatprep.subr.mxu0 0.0
  %2479 = vmatpush1.msra.mxu0 0.0
  %2480 = vmatprep.subr.mxu0 0.0
  %2481 = vmatpush1.msra.mxu0 0.0
  %2482 = vmatprep.subr.mxu0 0.0
  %2483 = vmatpush1.msra.mxu0 0.0
  %2484 = vmatprep.subr.mxu0 0.0
  %2485 = vmatpush1.msra.mxu0 0.0
  %2486 = vmatprep.subr.mxu0 0.0
  %2487 = vmatpush1.msra.mxu0 0.0
  %2488 = vmatprep.subr.mxu0 0.0
  %2489 = vmatpush1.msra.mxu0 0.0
  %2490 = vmatprep.subr.mxu0 0.0
  %2491 = vmatpush1.msra.mxu0 0.0
  %2492 = vmatprep.mubr.f32.mxu0 0.0
  %2493 = vmatmul.mubr.f32.gmra.mrb[0].mxu0 %v2426
  %v2494 = vpop.f32.mrb[0].mxu0
  %v2495 = vadd.f32 0.0, %v2494
  %v2496 = vpop.f32.mrb[0].mxu0
  %2497 = vdwg.mxu0
  %2498 = vrot.lane.b32.xlu0 %v1886, 88
  %v2499 = vpop.permute.xlu0 %2498
  %2500 = vrot.lane.b32.xlu0 %v1891, 88
  %v2501 = vpop.permute.xlu0 %2500
  %v2505 = vsel %vm1535, %v2418, 0
  %2507 = vmatprep.subr.mxu0 0.0
  %2508 = vmatpush1.msra.mxu0 %v2499
  %2509 = vmatprep.subr.mxu0 0.0
  %2510 = vmatpush1.msra.mxu0 %v2501
  %2511 = vmatprep.subr.mxu0 0.0
  %2512 = vmatpush1.msra.mxu0 0.0
  %2513 = vmatprep.subr.mxu0 0.0
  %2514 = vmatpush1.msra.mxu0 0.0
  %2515 = vmatprep.subr.mxu0 0.0
  %2516 = vmatpush1.msra.mxu0 0.0
  %2517 = vmatprep.subr.mxu0 0.0
  %2518 = vmatpush1.msra.mxu0 0.0
  %2519 = vmatprep.subr.mxu0 0.0
  %2520 = vmatpush1.msra.mxu0 0.0
  %2521 = vmatprep.subr.mxu0 0.0
  %2522 = vmatpush1.msra.mxu0 0.0
  %2523 = vmatprep.subr.mxu0 0.0
  %2524 = vmatpush1.msra.mxu0 0.0
  %2525 = vmatprep.subr.mxu0 0.0
  %2526 = vmatpush1.msra.mxu0 0.0
  %2527 = vmatprep.subr.mxu0 0.0
  %2528 = vmatpush1.msra.mxu0 0.0
  %2529 = vmatprep.subr.mxu0 0.0
  %2530 = vmatpush1.msra.mxu0 0.0
  %2531 = vmatprep.subr.mxu0 0.0
  %2532 = vmatpush1.msra.mxu0 0.0
  %2533 = vmatprep.subr.mxu0 0.0
  %2534 = vmatpush1.msra.mxu0 0.0
  %2535 = vmatprep.subr.mxu0 0.0
  %2536 = vmatpush1.msra.mxu0 0.0
  %2537 = vmatprep.subr.mxu0 0.0
  %2538 = vmatpush1.msra.mxu0 0.0
  %2539 = vmatprep.subr.mxu0 0.0
  %2540 = vmatpush1.msra.mxu0 0.0
  %2541 = vmatprep.subr.mxu0 0.0
  %2542 = vmatpush1.msra.mxu0 0.0
  %2543 = vmatprep.subr.mxu0 0.0
  %2544 = vmatpush1.msra.mxu0 0.0
  %2545 = vmatprep.subr.mxu0 0.0
  %2546 = vmatpush1.msra.mxu0 0.0
  %2547 = vmatprep.subr.mxu0 0.0
  %2548 = vmatpush1.msra.mxu0 0.0
  %2549 = vmatprep.subr.mxu0 0.0
  %2550 = vmatpush1.msra.mxu0 0.0
  %2551 = vmatprep.subr.mxu0 0.0
  %2552 = vmatpush1.msra.mxu0 0.0
  %2553 = vmatprep.subr.mxu0 0.0
  %2554 = vmatpush1.msra.mxu0 0.0
  %2555 = vmatprep.subr.mxu0 0.0
  %2556 = vmatpush1.msra.mxu0 0.0
  %2557 = vmatprep.subr.mxu0 0.0
  %2558 = vmatpush1.msra.mxu0 0.0
  %2559 = vmatprep.subr.mxu0 0.0
  %2560 = vmatpush1.msra.mxu0 0.0
  %2561 = vmatprep.subr.mxu0 0.0
  %2562 = vmatpush1.msra.mxu0 0.0
  %2563 = vmatprep.subr.mxu0 0.0
  %2564 = vmatpush1.msra.mxu0 0.0
  %2565 = vmatprep.subr.mxu0 0.0
  %2566 = vmatpush1.msra.mxu0 0.0
  %2567 = vmatprep.subr.mxu0 0.0
  %2568 = vmatpush1.msra.mxu0 0.0
  %2569 = vmatprep.subr.mxu0 0.0
  %2570 = vmatpush1.msra.mxu0 0.0
  %2571 = vmatprep.mubr.f32.mxu0 0.0
  %2572 = vmatmul.mubr.f32.gmra.mrb[0].mxu0 %v2505
  %v2573 = vpop.f32.mrb[0].mxu0
  %v2574 = vadd.f32 0.0, %v2573
  %v2575 = vpop.f32.mrb[0].mxu0
  %2576 = vdwg.mxu0
  %2577 = vrot.lane.b32.xlu0 %v1774, 112
  %v2578 = vpop.permute.xlu0 %2577
  %2579 = vrot.lane.b32.xlu0 %v1876, 112
  %v2580 = vpop.permute.xlu0 %2579
  %2581 = vrot.lane.b32.xlu0 %v1881, 112
  %v2582 = vpop.permute.xlu0 %2581
  %v2583 = vsel %vm191, %v2578, 0
  %v2585 = vsel %vm191, %v2580, 0
  %v2587 = vsel %vm191, %v2582, 0
  %2589 = vmatprep.subr.mxu0 0.0
  %2590 = vmatpush1.xpose.msra.mxu0 %v2585
  %2591 = vmatprep.subr.mxu0 0.0
  %2592 = vmatpush1.xpose.msra.mxu0 %v2587
  %2593 = vmatprep.subr.mxu0 0.0
  %2594 = vmatpush1.xpose.msra.mxu0 0.0
  %2595 = vmatprep.subr.mxu0 0.0
  %2596 = vmatpush1.xpose.msra.mxu0 0.0
  %2597 = vmatprep.subr.mxu0 0.0
  %2598 = vmatpush1.xpose.msra.mxu0 0.0
  %2599 = vmatprep.subr.mxu0 0.0
  %2600 = vmatpush1.xpose.msra.mxu0 0.0
  %2601 = vmatprep.subr.mxu0 0.0
  %2602 = vmatpush1.xpose.msra.mxu0 0.0
  %2603 = vmatprep.subr.mxu0 0.0
  %2604 = vmatpush1.xpose.msra.mxu0 0.0
  %2605 = vmatprep.subr.mxu0 0.0
  %2606 = vmatpush1.xpose.msra.mxu0 0.0
  %2607 = vmatprep.subr.mxu0 0.0
  %2608 = vmatpush1.xpose.msra.mxu0 0.0
  %2609 = vmatprep.subr.mxu0 0.0
  %2610 = vmatpush1.xpose.msra.mxu0 0.0
  %2611 = vmatprep.subr.mxu0 0.0
  %2612 = vmatpush1.xpose.msra.mxu0 0.0
  %2613 = vmatprep.subr.mxu0 0.0
  %2614 = vmatpush1.xpose.msra.mxu0 0.0
  %2615 = vmatprep.subr.mxu0 0.0
  %2616 = vmatpush1.xpose.msra.mxu0 0.0
  %2617 = vmatprep.subr.mxu0 0.0
  %2618 = vmatpush1.xpose.msra.mxu0 0.0
  %2619 = vmatprep.subr.mxu0 0.0
  %2620 = vmatpush1.xpose.msra.mxu0 0.0
  %2621 = vmatprep.subr.mxu0 0.0
  %2622 = vmatpush1.xpose.msra.mxu0 0.0
  %2623 = vmatprep.subr.mxu0 0.0
  %2624 = vmatpush1.xpose.msra.mxu0 0.0
  %2625 = vmatprep.subr.mxu0 0.0
  %2626 = vmatpush1.xpose.msra.mxu0 0.0
  %2627 = vmatprep.subr.mxu0 0.0
  %2628 = vmatpush1.xpose.msra.mxu0 0.0
  %2629 = vmatprep.subr.mxu0 0.0
  %2630 = vmatpush1.xpose.msra.mxu0 0.0
  %2631 = vmatprep.subr.mxu0 0.0
  %2632 = vmatpush1.xpose.msra.mxu0 0.0
  %2633 = vmatprep.subr.mxu0 0.0
  %2634 = vmatpush1.xpose.msra.mxu0 0.0
  %2635 = vmatprep.subr.mxu0 0.0
  %2636 = vmatpush1.xpose.msra.mxu0 0.0
  %2637 = vmatprep.subr.mxu0 0.0
  %2638 = vmatpush1.xpose.msra.mxu0 0.0
  %2639 = vmatprep.subr.mxu0 0.0
  %2640 = vmatpush1.xpose.msra.mxu0 0.0
  %2641 = vmatprep.subr.mxu0 0.0
  %2642 = vmatpush1.xpose.msra.mxu0 0.0
  %2643 = vmatprep.subr.mxu0 0.0
  %2644 = vmatpush1.xpose.msra.mxu0 0.0
  %2645 = vmatprep.subr.mxu0 0.0
  %2646 = vmatpush1.xpose.msra.mxu0 0.0
  %2647 = vmatprep.subr.mxu0 0.0
  %2648 = vmatpush1.xpose.msra.mxu0 0.0
  %2649 = vmatprep.subr.mxu0 0.0
  %2650 = vmatpush1.xpose.msra.mxu0 0.0
  %2651 = vmatprep.subr.mxu0 0.0
  %2652 = vmatpush1.xpose.msra.mxu0 0.0
  %2653 = vmatprep.mubr.f32.mxu0 0.0
  %2654 = vmatmul.mubr.f32.gmra.mrb[0].mxu0 %v2583
  %v2655 = vpop.f32.mrb[0].mxu0
  %v2656 = vadd.f32 %v51, %v2655
  %v2657 = vpop.f32.mrb[0].mxu0
  %2658 = vdwg.mxu0
  %2659 = vrot.lane.b32.xlu0 %v1775, 112
  %v2660 = vpop.permute.xlu0 %2659
  %2661 = vrot.lane.b32.xlu0 %v1886, 112
  %v2662 = vpop.permute.xlu0 %2661
  %2663 = vrot.lane.b32.xlu0 %v1891, 112
  %v2664 = vpop.permute.xlu0 %2663
  %v2665 = vsel %vm191, %v2660, 0
  %v2667 = vsel %vm191, %v2662, 0
  %v2669 = vsel %vm191, %v2664, 0
  %2671 = vmatprep.subr.mxu0 0.0
  %2672 = vmatpush1.xpose.msra.mxu0 %v2667
  %2673 = vmatprep.subr.mxu0 0.0
  %2674 = vmatpush1.xpose.msra.mxu0 %v2669
  %2675 = vmatprep.subr.mxu0 0.0
  %2676 = vmatpush1.xpose.msra.mxu0 0.0
  %2677 = vmatprep.subr.mxu0 0.0
  %2678 = vmatpush1.xpose.msra.mxu0 0.0
  %2679 = vmatprep.subr.mxu0 0.0
  %2680 = vmatpush1.xpose.msra.mxu0 0.0
  %2681 = vmatprep.subr.mxu0 0.0
  %2682 = vmatpush1.xpose.msra.mxu0 0.0
  %2683 = vmatprep.subr.mxu0 0.0
  %2684 = vmatpush1.xpose.msra.mxu0 0.0
  %2685 = vmatprep.subr.mxu0 0.0
  %2686 = vmatpush1.xpose.msra.mxu0 0.0
  %2687 = vmatprep.subr.mxu0 0.0
  %2688 = vmatpush1.xpose.msra.mxu0 0.0
  %2689 = vmatprep.subr.mxu0 0.0
  %2690 = vmatpush1.xpose.msra.mxu0 0.0
  %2691 = vmatprep.subr.mxu0 0.0
  %2692 = vmatpush1.xpose.msra.mxu0 0.0
  %2693 = vmatprep.subr.mxu0 0.0
  %2694 = vmatpush1.xpose.msra.mxu0 0.0
  %2695 = vmatprep.subr.mxu0 0.0
  %2696 = vmatpush1.xpose.msra.mxu0 0.0
  %2697 = vmatprep.subr.mxu0 0.0
  %2698 = vmatpush1.xpose.msra.mxu0 0.0
  %2699 = vmatprep.subr.mxu0 0.0
  %2700 = vmatpush1.xpose.msra.mxu0 0.0
  %2701 = vmatprep.subr.mxu0 0.0
  %2702 = vmatpush1.xpose.msra.mxu0 0.0
  %2703 = vmatprep.subr.mxu0 0.0
  %2704 = vmatpush1.xpose.msra.mxu0 0.0
  %2705 = vmatprep.subr.mxu0 0.0
  %2706 = vmatpush1.xpose.msra.mxu0 0.0
  %2707 = vmatprep.subr.mxu0 0.0
  %2708 = vmatpush1.xpose.msra.mxu0 0.0
  %2709 = vmatprep.subr.mxu0 0.0
  %2710 = vmatpush1.xpose.msra.mxu0 0.0
  %2711 = vmatprep.subr.mxu0 0.0
  %2712 = vmatpush1.xpose.msra.mxu0 0.0
  %2713 = vmatprep.subr.mxu0 0.0
  %2714 = vmatpush1.xpose.msra.mxu0 0.0
  %2715 = vmatprep.subr.mxu0 0.0
  %2716 = vmatpush1.xpose.msra.mxu0 0.0
  %2717 = vmatprep.subr.mxu0 0.0
  %2718 = vmatpush1.xpose.msra.mxu0 0.0
  %2719 = vmatprep.subr.mxu0 0.0
  %2720 = vmatpush1.xpose.msra.mxu0 0.0
  %2721 = vmatprep.subr.mxu0 0.0
  %2722 = vmatpush1.xpose.msra.mxu0 0.0
  %2723 = vmatprep.subr.mxu0 0.0
  %2724 = vmatpush1.xpose.msra.mxu0 0.0
  %2725 = vmatprep.subr.mxu0 0.0
  %2726 = vmatpush1.xpose.msra.mxu0 0.0
  %2727 = vmatprep.subr.mxu0 0.0
  %2728 = vmatpush1.xpose.msra.mxu0 0.0
  %2729 = vmatprep.subr.mxu0 0.0
  %2730 = vmatpush1.xpose.msra.mxu0 0.0
  %2731 = vmatprep.subr.mxu0 0.0
  %2732 = vmatpush1.xpose.msra.mxu0 0.0
  %2733 = vmatprep.subr.mxu0 0.0
  %2734 = vmatpush1.xpose.msra.mxu0 0.0
  %2735 = vmatprep.mubr.f32.mxu0 0.0
  %2736 = vmatmul.mubr.f32.gmra.mrb[0].mxu0 %v2665
  %v2737 = vpop.f32.mrb[0].mxu0
  %v2738 = vadd.f32 %v52, %v2737
  %v2739 = vpop.f32.mrb[0].mxu0
  %2740 = vdwg.mxu0
  %v2741 = vsel %vm1535, %v2656, -inf
  %2742 = vmax.xlane.f32.xlu0 %v2741
  %v2743 = vpop.xlane.xlu0 %2742
  %v2744 = vsel %vm1535, %v2738, -inf
  %2745 = vmax.xlane.f32.xlu0 %v2744
  %v2746 = vpop.xlane.xlu0 %2745
  %v2747 = vsub.f32 %v2656, %v2743
  %v2748 = vsub.f32 %v2738, %v2746
  %v2749 = vmul.f32 %v2747, 1.442695
  %v2750 = vpow.pop %v2749
  %v2751 = vmul.f32 %v2748, 1.442695
  %v2752 = vpow.pop %v2751
  %v2753 = vsel %vm1535, %v2750, 0.0
  %2754 = vadd.xlane.f32.xlu0 %v2753
  %v2755 = vpop.xlane.xlu0 %2754
  %v2756 = vsel %vm1535, %v2752, 0.0
  %2757 = vadd.xlane.f32.xlu0 %v2756
  %v2758 = vpop.xlane.xlu0 %2757
  %v2759 = vrcp.pop %v2755
  %v2760 = vrcp.pop %v2758
  %v2761 = vmul.f32 %v2750, %v2759
  %v2762 = vmul.f32 %v2752, %v2760
  %2763 = vrot.lane.b32.xlu0 %v1876, 80
  %v2764 = vpop.permute.xlu0 %2763
  %2765 = vrot.lane.b32.xlu0 %v1881, 80
  %v2766 = vpop.permute.xlu0 %2765
  %v2770 = vsel %vm1535, %v2761, 0
  %2772 = vmatprep.subr.mxu0 0.0
  %2773 = vmatpush1.msra.mxu0 %v2764
  %2774 = vmatprep.subr.mxu0 0.0
  %2775 = vmatpush1.msra.mxu0 %v2766
  %2776 = vmatprep.subr.mxu0 0.0
  %2777 = vmatpush1.msra.mxu0 0.0
  %2778 = vmatprep.subr.mxu0 0.0
  %2779 = vmatpush1.msra.mxu0 0.0
  %2780 = vmatprep.subr.mxu0 0.0
  %2781 = vmatpush1.msra.mxu0 0.0
  %2782 = vmatprep.subr.mxu0 0.0
  %2783 = vmatpush1.msra.mxu0 0.0
  %2784 = vmatprep.subr.mxu0 0.0
  %2785 = vmatpush1.msra.mxu0 0.0
  %2786 = vmatprep.subr.mxu0 0.0
  %2787 = vmatpush1.msra.mxu0 0.0
  %2788 = vmatprep.subr.mxu0 0.0
  %2789 = vmatpush1.msra.mxu0 0.0
  %2790 = vmatprep.subr.mxu0 0.0
  %2791 = vmatpush1.msra.mxu0 0.0
  %2792 = vmatprep.subr.mxu0 0.0
  %2793 = vmatpush1.msra.mxu0 0.0
  %2794 = vmatprep.subr.mxu0 0.0
  %2795 = vmatpush1.msra.mxu0 0.0
  %2796 = vmatprep.subr.mxu0 0.0
  %2797 = vmatpush1.msra.mxu0 0.0
  %2798 = vmatprep.subr.mxu0 0.0
  %2799 = vmatpush1.msra.mxu0 0.0
  %2800 = vmatprep.subr.mxu0 0.0
  %2801 = vmatpush1.msra.mxu0 0.0
  %2802 = vmatprep.subr.mxu0 0.0
  %2803 = vmatpush1.msra.mxu0 0.0
  %2804 = vmatprep.subr.mxu0 0.0
  %2805 = vmatpush1.msra.mxu0 0.0
  %2806 = vmatprep.subr.mxu0 0.0
  %2807 = vmatpush1.msra.mxu0 0.0
  %2808 = vmatprep.subr.mxu0 0.0
  %2809 = vmatpush1.msra.mxu0 0.0
  %2810 = vmatprep.subr.mxu0 0.0
  %2811 = vmatpush1.msra.mxu0 0.0
  %2812 = vmatprep.subr.mxu0 0.0
  %2813 = vmatpush1.msra.mxu0 0.0
  %2814 = vmatprep.subr.mxu0 0.0
  %2815 = vmatpush1.msra.mxu0 0.0
  %2816 = vmatprep.subr.mxu0 0.0
  %2817 = vmatpush1.msra.mxu0 0.0
  %2818 = vmatprep.subr.mxu0 0.0
  %2819 = vmatpush1.msra.mxu0 0.0
  %2820 = vmatprep.subr.mxu0 0.0
  %2821 = vmatpush1.msra.mxu0 0.0
  %2822 = vmatprep.subr.mxu0 0.0
  %2823 = vmatpush1.msra.mxu0 0.0
  %2824 = vmatprep.subr.mxu0 0.0
  %2825 = vmatpush1.msra.mxu0 0.0
  %2826 = vmatprep.subr.mxu0 0.0
  %2827 = vmatpush1.msra.mxu0 0.0
  %2828 = vmatprep.subr.mxu0 0.0
  %2829 = vmatpush1.msra.mxu0 0.0
  %2830 = vmatprep.subr.mxu0 0.0
  %2831 = vmatpush1.msra.mxu0 0.0
  %2832 = vmatprep.subr.mxu0 0.0
  %2833 = vmatpush1.msra.mxu0 0.0
  %2834 = vmatprep.subr.mxu0 0.0
  %2835 = vmatpush1.msra.mxu0 0.0
  %2836 = vmatprep.mubr.f32.mxu0 0.0
  %2837 = vmatmul.mubr.f32.gmra.mrb[0].mxu0 %v2770
  %v2838 = vpop.f32.mrb[0].mxu0
  %v2839 = vadd.f32 0.0, %v2838
  %v2840 = vpop.f32.mrb[0].mxu0
  %2841 = vdwg.mxu0
  %2842 = vrot.lane.b32.xlu0 %v1886, 80
  %v2843 = vpop.permute.xlu0 %2842
  %2844 = vrot.lane.b32.xlu0 %v1891, 80
  %v2845 = vpop.permute.xlu0 %2844
  %v2849 = vsel %vm1535, %v2762, 0
  %2851 = vmatprep.subr.mxu0 0.0
  %2852 = vmatpush1.msra.mxu0 %v2843
  %2853 = vmatprep.subr.mxu0 0.0
  %2854 = vmatpush1.msra.mxu0 %v2845
  %2855 = vmatprep.subr.mxu0 0.0
  %2856 = vmatpush1.msra.mxu0 0.0
  %2857 = vmatprep.subr.mxu0 0.0
  %2858 = vmatpush1.msra.mxu0 0.0
  %2859 = vmatprep.subr.mxu0 0.0
  %2860 = vmatpush1.msra.mxu0 0.0
  %2861 = vmatprep.subr.mxu0 0.0
  %2862 = vmatpush1.msra.mxu0 0.0
  %2863 = vmatprep.subr.mxu0 0.0
  %2864 = vmatpush1.msra.mxu0 0.0
  %2865 = vmatprep.subr.mxu0 0.0
  %2866 = vmatpush1.msra.mxu0 0.0
  %2867 = vmatprep.subr.mxu0 0.0
  %2868 = vmatpush1.msra.mxu0 0.0
  %2869 = vmatprep.subr.mxu0 0.0
  %2870 = vmatpush1.msra.mxu0 0.0
  %2871 = vmatprep.subr.mxu0 0.0
  %2872 = vmatpush1.msra.mxu0 0.0
  %2873 = vmatprep.subr.mxu0 0.0
  %2874 = vmatpush1.msra.mxu0 0.0
  %2875 = vmatprep.subr.mxu0 0.0
  %2876 = vmatpush1.msra.mxu0 0.0
  %2877 = vmatprep.subr.mxu0 0.0
  %2878 = vmatpush1.msra.mxu0 0.0
  %2879 = vmatprep.subr.mxu0 0.0
  %2880 = vmatpush1.msra.mxu0 0.0
  %2881 = vmatprep.subr.mxu0 0.0
  %2882 = vmatpush1.msra.mxu0 0.0
  %2883 = vmatprep.subr.mxu0 0.0
  %2884 = vmatpush1.msra.mxu0 0.0
  %2885 = vmatprep.subr.mxu0 0.0
  %2886 = vmatpush1.msra.mxu0 0.0
  %2887 = vmatprep.subr.mxu0 0.0
  %2888 = vmatpush1.msra.mxu0 0.0
  %2889 = vmatprep.subr.mxu0 0.0
  %2890 = vmatpush1.msra.mxu0 0.0
  %2891 = vmatprep.subr.mxu0 0.0
  %2892 = vmatpush1.msra.mxu0 0.0
  %2893 = vmatprep.subr.mxu0 0.0
  %2894 = vmatpush1.msra.mxu0 0.0
  %2895 = vmatprep.subr.mxu0 0.0
  %2896 = vmatpush1.msra.mxu0 0.0
  %2897 = vmatprep.subr.mxu0 0.0
  %2898 = vmatpush1.msra.mxu0 0.0
  %2899 = vmatprep.subr.mxu0 0.0
  %2900 = vmatpush1.msra.mxu0 0.0
  %2901 = vmatprep.subr.mxu0 0.0
  %2902 = vmatpush1.msra.mxu0 0.0
  %2903 = vmatprep.subr.mxu0 0.0
  %2904 = vmatpush1.msra.mxu0 0.0
  %2905 = vmatprep.subr.mxu0 0.0
  %2906 = vmatpush1.msra.mxu0 0.0
  %2907 = vmatprep.subr.mxu0 0.0
  %2908 = vmatpush1.msra.mxu0 0.0
  %2909 = vmatprep.subr.mxu0 0.0
  %2910 = vmatpush1.msra.mxu0 0.0
  %2911 = vmatprep.subr.mxu0 0.0
  %2912 = vmatpush1.msra.mxu0 0.0
  %2913 = vmatprep.subr.mxu0 0.0
  %2914 = vmatpush1.msra.mxu0 0.0
  %2915 = vmatprep.mubr.f32.mxu0 0.0
  %2916 = vmatmul.mubr.f32.gmra.mrb[0].mxu0 %v2849
  %v2917 = vpop.f32.mrb[0].mxu0
  %v2918 = vadd.f32 0.0, %v2917
  %v2919 = vpop.f32.mrb[0].mxu0
  %2920 = vdwg.mxu0
  %2921 = vrot.lane.b32.xlu0 %v1774, 104
  %v2922 = vpop.permute.xlu0 %2921
  %2923 = vrot.lane.b32.xlu0 %v1876, 104
  %v2924 = vpop.permute.xlu0 %2923
  %2925 = vrot.lane.b32.xlu0 %v1881, 104
  %v2926 = vpop.permute.xlu0 %2925
  %v2927 = vsel %vm191, %v2922, 0
  %v2929 = vsel %vm191, %v2924, 0
  %v2931 = vsel %vm191, %v2926, 0
  %2933 = vmatprep.subr.mxu0 0.0
  %2934 = vmatpush1.xpose.msra.mxu0 %v2929
  %2935 = vmatprep.subr.mxu0 0.0
  %2936 = vmatpush1.xpose.msra.mxu0 %v2931
  %2937 = vmatprep.subr.mxu0 0.0
  %2938 = vmatpush1.xpose.msra.mxu0 0.0
  %2939 = vmatprep.subr.mxu0 0.0
  %2940 = vmatpush1.xpose.msra.mxu0 0.0
  %2941 = vmatprep.subr.mxu0 0.0
  %2942 = vmatpush1.xpose.msra.mxu0 0.0
  %2943 = vmatprep.subr.mxu0 0.0
  %2944 = vmatpush1.xpose.msra.mxu0 0.0
  %2945 = vmatprep.subr.mxu0 0.0
  %2946 = vmatpush1.xpose.msra.mxu0 0.0
  %2947 = vmatprep.subr.mxu0 0.0
  %2948 = vmatpush1.xpose.msra.mxu0 0.0
  %2949 = vmatprep.subr.mxu0 0.0
  %2950 = vmatpush1.xpose.msra.mxu0 0.0
  %2951 = vmatprep.subr.mxu0 0.0
  %2952 = vmatpush1.xpose.msra.mxu0 0.0
  %2953 = vmatprep.subr.mxu0 0.0
  %2954 = vmatpush1.xpose.msra.mxu0 0.0
  %2955 = vmatprep.subr.mxu0 0.0
  %2956 = vmatpush1.xpose.msra.mxu0 0.0
  %2957 = vmatprep.subr.mxu0 0.0
  %2958 = vmatpush1.xpose.msra.mxu0 0.0
  %2959 = vmatprep.subr.mxu0 0.0
  %2960 = vmatpush1.xpose.msra.mxu0 0.0
  %2961 = vmatprep.subr.mxu0 0.0
  %2962 = vmatpush1.xpose.msra.mxu0 0.0
  %2963 = vmatprep.subr.mxu0 0.0
  %2964 = vmatpush1.xpose.msra.mxu0 0.0
  %2965 = vmatprep.subr.mxu0 0.0
  %2966 = vmatpush1.xpose.msra.mxu0 0.0
  %2967 = vmatprep.subr.mxu0 0.0
  %2968 = vmatpush1.xpose.msra.mxu0 0.0
  %2969 = vmatprep.subr.mxu0 0.0
  %2970 = vmatpush1.xpose.msra.mxu0 0.0
  %2971 = vmatprep.subr.mxu0 0.0
  %2972 = vmatpush1.xpose.msra.mxu0 0.0
  %2973 = vmatprep.subr.mxu0 0.0
  %2974 = vmatpush1.xpose.msra.mxu0 0.0
  %2975 = vmatprep.subr.mxu0 0.0
  %2976 = vmatpush1.xpose.msra.mxu0 0.0
  %2977 = vmatprep.subr.mxu0 0.0
  %2978 = vmatpush1.xpose.msra.mxu0 0.0
  %2979 = vmatprep.subr.mxu0 0.0
  %2980 = vmatpush1.xpose.msra.mxu0 0.0
  %2981 = vmatprep.subr.mxu0 0.0
  %2982 = vmatpush1.xpose.msra.mxu0 0.0
  %2983 = vmatprep.subr.mxu0 0.0
  %2984 = vmatpush1.xpose.msra.mxu0 0.0
  %2985 = vmatprep.subr.mxu0 0.0
  %2986 = vmatpush1.xpose.msra.mxu0 0.0
  %2987 = vmatprep.subr.mxu0 0.0
  %2988 = vmatpush1.xpose.msra.mxu0 0.0
  %2989 = vmatprep.subr.mxu0 0.0
  %2990 = vmatpush1.xpose.msra.mxu0 0.0
  %2991 = vmatprep.subr.mxu0 0.0
  %2992 = vmatpush1.xpose.msra.mxu0 0.0
  %2993 = vmatprep.subr.mxu0 0.0
  %2994 = vmatpush1.xpose.msra.mxu0 0.0
  %2995 = vmatprep.subr.mxu0 0.0
  %2996 = vmatpush1.xpose.msra.mxu0 0.0
  %2997 = vmatprep.mubr.f32.mxu0 0.0
  %2998 = vmatmul.mubr.f32.gmra.mrb[0].mxu0 %v2927
  %v2999 = vpop.f32.mrb[0].mxu0
  %v3000 = vadd.f32 %v51, %v2999
  %v3001 = vpop.f32.mrb[0].mxu0
  %3002 = vdwg.mxu0
  %3003 = vrot.lane.b32.xlu0 %v1775, 104
  %v3004 = vpop.permute.xlu0 %3003
  %3005 = vrot.lane.b32.xlu0 %v1886, 104
  %v3006 = vpop.permute.xlu0 %3005
  %3007 = vrot.lane.b32.xlu0 %v1891, 104
  %v3008 = vpop.permute.xlu0 %3007
  %v3009 = vsel %vm191, %v3004, 0
  %v3011 = vsel %vm191, %v3006, 0
  %v3013 = vsel %vm191, %v3008, 0
  %3015 = vmatprep.subr.mxu0 0.0
  %3016 = vmatpush1.xpose.msra.mxu0 %v3011
  %3017 = vmatprep.subr.mxu0 0.0
  %3018 = vmatpush1.xpose.msra.mxu0 %v3013
  %3019 = vmatprep.subr.mxu0 0.0
  %3020 = vmatpush1.xpose.msra.mxu0 0.0
  %3021 = vmatprep.subr.mxu0 0.0
  %3022 = vmatpush1.xpose.msra.mxu0 0.0
  %3023 = vmatprep.subr.mxu0 0.0
  %3024 = vmatpush1.xpose.msra.mxu0 0.0
  %3025 = vmatprep.subr.mxu0 0.0
  %3026 = vmatpush1.xpose.msra.mxu0 0.0
  %3027 = vmatprep.subr.mxu0 0.0
  %3028 = vmatpush1.xpose.msra.mxu0 0.0
  %3029 = vmatprep.subr.mxu0 0.0
  %3030 = vmatpush1.xpose.msra.mxu0 0.0
  %3031 = vmatprep.subr.mxu0 0.0
  %3032 = vmatpush1.xpose.msra.mxu0 0.0
  %3033 = vmatprep.subr.mxu0 0.0
  %3034 = vmatpush1.xpose.msra.mxu0 0.0
  %3035 = vmatprep.subr.mxu0 0.0
  %3036 = vmatpush1.xpose.msra.mxu0 0.0
  %3037 = vmatprep.subr.mxu0 0.0
  %3038 = vmatpush1.xpose.msra.mxu0 0.0
  %3039 = vmatprep.subr.mxu0 0.0
  %3040 = vmatpush1.xpose.msra.mxu0 0.0
  %3041 = vmatprep.subr.mxu0 0.0
  %3042 = vmatpush1.xpose.msra.mxu0 0.0
  %3043 = vmatprep.subr.mxu0 0.0
  %3044 = vmatpush1.xpose.msra.mxu0 0.0
  %3045 = vmatprep.subr.mxu0 0.0
  %3046 = vmatpush1.xpose.msra.mxu0 0.0
  %3047 = vmatprep.subr.mxu0 0.0
  %3048 = vmatpush1.xpose.msra.mxu0 0.0
  %3049 = vmatprep.subr.mxu0 0.0
  %3050 = vmatpush1.xpose.msra.mxu0 0.0
  %3051 = vmatprep.subr.mxu0 0.0
  %3052 = vmatpush1.xpose.msra.mxu0 0.0
  %3053 = vmatprep.subr.mxu0 0.0
  %3054 = vmatpush1.xpose.msra.mxu0 0.0
  %3055 = vmatprep.subr.mxu0 0.0
  %3056 = vmatpush1.xpose.msra.mxu0 0.0
  %3057 = vmatprep.subr.mxu0 0.0
  %3058 = vmatpush1.xpose.msra.mxu0 0.0
  %3059 = vmatprep.subr.mxu0 0.0
  %3060 = vmatpush1.xpose.msra.mxu0 0.0
  %3061 = vmatprep.subr.mxu0 0.0
  %3062 = vmatpush1.xpose.msra.mxu0 0.0
  %3063 = vmatprep.subr.mxu0 0.0
  %3064 = vmatpush1.xpose.msra.mxu0 0.0
  %3065 = vmatprep.subr.mxu0 0.0
  %3066 = vmatpush1.xpose.msra.mxu0 0.0
  %3067 = vmatprep.subr.mxu0 0.0
  %3068 = vmatpush1.xpose.msra.mxu0 0.0
  %3069 = vmatprep.subr.mxu0 0.0
  %3070 = vmatpush1.xpose.msra.mxu0 0.0
  %3071 = vmatprep.subr.mxu0 0.0
  %3072 = vmatpush1.xpose.msra.mxu0 0.0
  %3073 = vmatprep.subr.mxu0 0.0
  %3074 = vmatpush1.xpose.msra.mxu0 0.0
  %3075 = vmatprep.subr.mxu0 0.0
  %3076 = vmatpush1.xpose.msra.mxu0 0.0
  %3077 = vmatprep.subr.mxu0 0.0
  %3078 = vmatpush1.xpose.msra.mxu0 0.0
  %3079 = vmatprep.mubr.f32.mxu0 0.0
  %3080 = vmatmul.mubr.f32.gmra.mrb[0].mxu0 %v3009
  %v3081 = vpop.f32.mrb[0].mxu0
  %v3082 = vadd.f32 %v52, %v3081
  %v3083 = vpop.f32.mrb[0].mxu0
  %3084 = vdwg.mxu0
  %v3085 = vsel %vm1535, %v3000, -inf
  %3086 = vmax.xlane.f32.xlu0 %v3085
  %v3087 = vpop.xlane.xlu0 %3086
  %v3088 = vsel %vm1535, %v3082, -inf
  %3089 = vmax.xlane.f32.xlu0 %v3088
  %v3090 = vpop.xlane.xlu0 %3089
  %v3091 = vsub.f32 %v3000, %v3087
  %v3092 = vsub.f32 %v3082, %v3090
  %v3093 = vmul.f32 %v3091, 1.442695
  %v3094 = vpow.pop %v3093
  %v3095 = vmul.f32 %v3092, 1.442695
  %v3096 = vpow.pop %v3095
  %v3097 = vsel %vm1535, %v3094, 0.0
  %3098 = vadd.xlane.f32.xlu0 %v3097
  %v3099 = vpop.xlane.xlu0 %3098
  %v3100 = vsel %vm1535, %v3096, 0.0
  %3101 = vadd.xlane.f32.xlu0 %v3100
  %v3102 = vpop.xlane.xlu0 %3101
  %v3103 = vrcp.pop %v3099
  %v3104 = vrcp.pop %v3102
  %v3105 = vmul.f32 %v3094, %v3103
  %v3106 = vmul.f32 %v3096, %v3104
  %3107 = vrot.lane.b32.xlu0 %v1876, 72
  %v3108 = vpop.permute.xlu0 %3107
  %3109 = vrot.lane.b32.xlu0 %v1881, 72
  %v3110 = vpop.permute.xlu0 %3109
  %v3114 = vsel %vm1535, %v3105, 0
  %3116 = vmatprep.subr.mxu0 0.0
  %3117 = vmatpush1.msra.mxu0 %v3108
  %3118 = vmatprep.subr.mxu0 0.0
  %3119 = vmatpush1.msra.mxu0 %v3110
  %3120 = vmatprep.subr.mxu0 0.0
  %3121 = vmatpush1.msra.mxu0 0.0
  %3122 = vmatprep.subr.mxu0 0.0
  %3123 = vmatpush1.msra.mxu0 0.0
  %3124 = vmatprep.subr.mxu0 0.0
  %3125 = vmatpush1.msra.mxu0 0.0
  %3126 = vmatprep.subr.mxu0 0.0
  %3127 = vmatpush1.msra.mxu0 0.0
  %3128 = vmatprep.subr.mxu0 0.0
  %3129 = vmatpush1.msra.mxu0 0.0
  %3130 = vmatprep.subr.mxu0 0.0
  %3131 = vmatpush1.msra.mxu0 0.0
  %3132 = vmatprep.subr.mxu0 0.0
  %3133 = vmatpush1.msra.mxu0 0.0
  %3134 = vmatprep.subr.mxu0 0.0
  %3135 = vmatpush1.msra.mxu0 0.0
  %3136 = vmatprep.subr.mxu0 0.0
  %3137 = vmatpush1.msra.mxu0 0.0
  %3138 = vmatprep.subr.mxu0 0.0
  %3139 = vmatpush1.msra.mxu0 0.0
  %3140 = vmatprep.subr.mxu0 0.0
  %3141 = vmatpush1.msra.mxu0 0.0
  %3142 = vmatprep.subr.mxu0 0.0
  %3143 = vmatpush1.msra.mxu0 0.0
  %3144 = vmatprep.subr.mxu0 0.0
  %3145 = vmatpush1.msra.mxu0 0.0
  %3146 = vmatprep.subr.mxu0 0.0
  %3147 = vmatpush1.msra.mxu0 0.0
  %3148 = vmatprep.subr.mxu0 0.0
  %3149 = vmatpush1.msra.mxu0 0.0
  %3150 = vmatprep.subr.mxu0 0.0
  %3151 = vmatpush1.msra.mxu0 0.0
  %3152 = vmatprep.subr.mxu0 0.0
  %3153 = vmatpush1.msra.mxu0 0.0
  %3154 = vmatprep.subr.mxu0 0.0
  %3155 = vmatpush1.msra.mxu0 0.0
  %3156 = vmatprep.subr.mxu0 0.0
  %3157 = vmatpush1.msra.mxu0 0.0
  %3158 = vmatprep.subr.mxu0 0.0
  %3159 = vmatpush1.msra.mxu0 0.0
  %3160 = vmatprep.subr.mxu0 0.0
  %3161 = vmatpush1.msra.mxu0 0.0
  %3162 = vmatprep.subr.mxu0 0.0
  %3163 = vmatpush1.msra.mxu0 0.0
  %3164 = vmatprep.subr.mxu0 0.0
  %3165 = vmatpush1.msra.mxu0 0.0
  %3166 = vmatprep.subr.mxu0 0.0
  %3167 = vmatpush1.msra.mxu0 0.0
  %3168 = vmatprep.subr.mxu0 0.0
  %3169 = vmatpush1.msra.mxu0 0.0
  %3170 = vmatprep.subr.mxu0 0.0
  %3171 = vmatpush1.msra.mxu0 0.0
  %3172 = vmatprep.subr.mxu0 0.0
  %3173 = vmatpush1.msra.mxu0 0.0
  %3174 = vmatprep.subr.mxu0 0.0
  %3175 = vmatpush1.msra.mxu0 0.0
  %3176 = vmatprep.subr.mxu0 0.0
  %3177 = vmatpush1.msra.mxu0 0.0
  %3178 = vmatprep.subr.mxu0 0.0
  %3179 = vmatpush1.msra.mxu0 0.0
  %3180 = vmatprep.mubr.f32.mxu0 0.0
  %3181 = vmatmul.mubr.f32.gmra.mrb[0].mxu0 %v3114
  %v3182 = vpop.f32.mrb[0].mxu0
  %v3183 = vadd.f32 0.0, %v3182
  %v3184 = vpop.f32.mrb[0].mxu0
  %3185 = vdwg.mxu0
  %3186 = vrot.lane.b32.xlu0 %v1886, 72
  %v3187 = vpop.permute.xlu0 %3186
  %3188 = vrot.lane.b32.xlu0 %v1891, 72
  %v3189 = vpop.permute.xlu0 %3188
  %v3193 = vsel %vm1535, %v3106, 0
  %3195 = vmatprep.subr.mxu0 0.0
  %3196 = vmatpush1.msra.mxu0 %v3187
  %3197 = vmatprep.subr.mxu0 0.0
  %3198 = vmatpush1.msra.mxu0 %v3189
  %3199 = vmatprep.subr.mxu0 0.0
  %3200 = vmatpush1.msra.mxu0 0.0
  %3201 = vmatprep.subr.mxu0 0.0
  %3202 = vmatpush1.msra.mxu0 0.0
  %3203 = vmatprep.subr.mxu0 0.0
  %3204 = vmatpush1.msra.mxu0 0.0
  %3205 = vmatprep.subr.mxu0 0.0
  %3206 = vmatpush1.msra.mxu0 0.0
  %3207 = vmatprep.subr.mxu0 0.0
  %3208 = vmatpush1.msra.mxu0 0.0
  %3209 = vmatprep.subr.mxu0 0.0
  %3210 = vmatpush1.msra.mxu0 0.0
  %3211 = vmatprep.subr.mxu0 0.0
  %3212 = vmatpush1.msra.mxu0 0.0
  %3213 = vmatprep.subr.mxu0 0.0
  %3214 = vmatpush1.msra.mxu0 0.0
  %3215 = vmatprep.subr.mxu0 0.0
  %3216 = vmatpush1.msra.mxu0 0.0
  %3217 = vmatprep.subr.mxu0 0.0
  %3218 = vmatpush1.msra.mxu0 0.0
  %3219 = vmatprep.subr.mxu0 0.0
  %3220 = vmatpush1.msra.mxu0 0.0
  %3221 = vmatprep.subr.mxu0 0.0
  %3222 = vmatpush1.msra.mxu0 0.0
  %3223 = vmatprep.subr.mxu0 0.0
  %3224 = vmatpush1.msra.mxu0 0.0
  %3225 = vmatprep.subr.mxu0 0.0
  %3226 = vmatpush1.msra.mxu0 0.0
  %3227 = vmatprep.subr.mxu0 0.0
  %3228 = vmatpush1.msra.mxu0 0.0
  %3229 = vmatprep.subr.mxu0 0.0
  %3230 = vmatpush1.msra.mxu0 0.0
  %3231 = vmatprep.subr.mxu0 0.0
  %3232 = vmatpush1.msra.mxu0 0.0
  %3233 = vmatprep.subr.mxu0 0.0
  %3234 = vmatpush1.msra.mxu0 0.0
  %3235 = vmatprep.subr.mxu0 0.0
  %3236 = vmatpush1.msra.mxu0 0.0
  %3237 = vmatprep.subr.mxu0 0.0
  %3238 = vmatpush1.msra.mxu0 0.0
  %3239 = vmatprep.subr.mxu0 0.0
  %3240 = vmatpush1.msra.mxu0 0.0
  %3241 = vmatprep.subr.mxu0 0.0
  %3242 = vmatpush1.msra.mxu0 0.0
  %3243 = vmatprep.subr.mxu0 0.0
  %3244 = vmatpush1.msra.mxu0 0.0
  %3245 = vmatprep.subr.mxu0 0.0
  %3246 = vmatpush1.msra.mxu0 0.0
  %3247 = vmatprep.subr.mxu0 0.0
  %3248 = vmatpush1.msra.mxu0 0.0
  %3249 = vmatprep.subr.mxu0 0.0
  %3250 = vmatpush1.msra.mxu0 0.0
  %3251 = vmatprep.subr.mxu0 0.0
  %3252 = vmatpush1.msra.mxu0 0.0
  %3253 = vmatprep.subr.mxu0 0.0
  %3254 = vmatpush1.msra.mxu0 0.0
  %3255 = vmatprep.subr.mxu0 0.0
  %3256 = vmatpush1.msra.mxu0 0.0
  %3257 = vmatprep.subr.mxu0 0.0
  %3258 = vmatpush1.msra.mxu0 0.0
  %3259 = vmatprep.mubr.f32.mxu0 0.0
  %3260 = vmatmul.mubr.f32.gmra.mrb[0].mxu0 %v3193
  %v3261 = vpop.f32.mrb[0].mxu0
  %v3262 = vadd.f32 0.0, %v3261
  %v3263 = vpop.f32.mrb[0].mxu0
  %3264 = vdwg.mxu0
  %3267 = vrot.lane.b32.xlu0 %v2495, 8
  %v3268 = vpop.permute.xlu0 %3267
  %3269 = vrot.lane.b32.xlu0 %v2574, 8
  %v3270 = vpop.permute.xlu0 %3269
  %3275 = vrot.lane.b32.xlu0 %v2839, 16
  %v3276 = vpop.permute.xlu0 %3275
  %3277 = vrot.lane.b32.xlu0 %v2918, 16
  %v3278 = vpop.permute.xlu0 %3277
  %3283 = vrot.lane.b32.xlu0 %v3183, 24
  %v3284 = vpop.permute.xlu0 %3283
  %3285 = vrot.lane.b32.xlu0 %v3262, 24
  %v3286 = vpop.permute.xlu0 %3285
  %v3289 = vsel %vm191, %v2151, %v3268
  %v3290 = vsel %vm191, %v2230, %v3270
  %v3291 = vsel %vm1535, %v3289, %v3276
  %v3292 = vsel %vm1535, %v3290, %v3278
  %v3293 = vsel %vm1538, %v3291, %v3284
  %v3294 = vsel %vm1538, %v3292, %v3286
  %v3295 = vlaneseq
  %v3296 = vshrl.u32 %v3295, 7
  %v3297 = vsub.s32 0, %v3296
  %v3298 = vrot.slane %v1894, %v3297
  %3299 = vrot.lane.b32.xlu0 %v1684, 32
  %v3300 = vpop.permute.xlu0 %3299
  %3301 = vrot.lane.b32.xlu0 %v1685, 32
  %v3302 = vpop.permute.xlu0 %3301
  %3303 = vrot.lane.b32.xlu0 %v1686, 32
  %v3304 = vpop.permute.xlu0 %3303
  %3305 = vrot.lane.b32.xlu0 %v1687, 32
  %v3306 = vpop.permute.xlu0 %3305
  %v3312 = vsel %vm55, %v3293, 0
  %v3315 = vsel %vm55, %v3294, 0
  %3317 = vmatprep.subr.mxu0 0.0
  %3318 = vmatpush1.msra.mxu0 %v3300
  %3319 = vmatprep.subr.mxu0 0.0
  %3320 = vmatpush1.msra.mxu0 %v3302
  %3321 = vmatprep.subr.mxu0 0.0
  %3322 = vmatpush1.msra.mxu0 %v3304
  %3323 = vmatprep.subr.mxu0 0.0
  %3324 = vmatpush1.msra.mxu0 %v3306
  %3325 = vmatprep.subr.mxu0 0.0
  %3326 = vmatpush1.msra.mxu0 0.0
  %3327 = vmatprep.subr.mxu0 0.0
  %3328 = vmatpush1.msra.mxu0 0.0
  %3329 = vmatprep.subr.mxu0 0.0
  %3330 = vmatpush1.msra.mxu0 0.0
  %3331 = vmatprep.subr.mxu0 0.0
  %3332 = vmatpush1.msra.mxu0 0.0
  %3333 = vmatprep.subr.mxu0 0.0
  %3334 = vmatpush1.msra.mxu0 0.0
  %3335 = vmatprep.subr.mxu0 0.0
  %3336 = vmatpush1.msra.mxu0 0.0
  %3337 = vmatprep.subr.mxu0 0.0
  %3338 = vmatpush1.msra.mxu0 0.0
  %3339 = vmatprep.subr.mxu0 0.0
  %3340 = vmatpush1.msra.mxu0 0.0
  %3341 = vmatprep.subr.mxu0 0.0
  %3342 = vmatpush1.msra.mxu0 0.0
  %3343 = vmatprep.subr.mxu0 0.0
  %3344 = vmatpush1.msra.mxu0 0.0
  %3345 = vmatprep.subr.mxu0 0.0
  %3346 = vmatpush1.msra.mxu0 0.0
  %3347 = vmatprep.subr.mxu0 0.0
  %3348 = vmatpush1.msra.mxu0 0.0
  %3349 = vmatprep.subr.mxu0 0.0
  %3350 = vmatpush1.msra.mxu0 0.0
  %3351 = vmatprep.subr.mxu0 0.0
  %3352 = vmatpush1.msra.mxu0 0.0
  %3353 = vmatprep.subr.mxu0 0.0
  %3354 = vmatpush1.msra.mxu0 0.0
  %3355 = vmatprep.subr.mxu0 0.0
  %3356 = vmatpush1.msra.mxu0 0.0
  %3357 = vmatprep.subr.mxu0 0.0
  %3358 = vmatpush1.msra.mxu0 0.0
  %3359 = vmatprep.subr.mxu0 0.0
  %3360 = vmatpush1.msra.mxu0 0.0
  %3361 = vmatprep.subr.mxu0 0.0
  %3362 = vmatpush1.msra.mxu0 0.0
  %3363 = vmatprep.subr.mxu0 0.0
  %3364 = vmatpush1.msra.mxu0 0.0
  %3365 = vmatprep.subr.mxu0 0.0
  %3366 = vmatpush1.msra.mxu0 0.0
  %3367 = vmatprep.subr.mxu0 0.0
  %3368 = vmatpush1.msra.mxu0 0.0
  %3369 = vmatprep.subr.mxu0 0.0
  %3370 = vmatpush1.msra.mxu0 0.0
  %3371 = vmatprep.subr.mxu0 0.0
  %3372 = vmatpush1.msra.mxu0 0.0
  %3373 = vmatprep.subr.mxu0 0.0
  %3374 = vmatpush1.msra.mxu0 0.0
  %3375 = vmatprep.subr.mxu0 0.0
  %3376 = vmatpush1.msra.mxu0 0.0
  %3377 = vmatprep.subr.mxu0 0.0
  %3378 = vmatpush1.msra.mxu0 0.0
  %3379 = vmatprep.subr.mxu0 0.0
  %3380 = vmatpush1.msra.mxu0 0.0
  %3381 = vmatprep.mubr.f32.mxu0 0.0
  %3382 = vmatmul.mubr.f32.gmra.mrb[0].mxu0 %v3312
  %v3383 = vpop.f32.mrb[0].mxu0
  %v3384 = vadd.f32 %v3298, %v3383
  %v3385 = vpop.f32.mrb[0].mxu0
  %3386 = vmatprep.mubr.f32.mxu0 0.0
  %3387 = vmatmul.mubr.f32.gmra.mrb[0].mxu0 %v3315
  %v3388 = vpop.f32.mrb[0].mxu0
  %v3389 = vadd.f32 %v3298, %v3388
  %v3390 = vpop.f32.mrb[0].mxu0
  %3391 = vdwg.mxu0
  %v3392 = vadd.f32 %v3384, %v1642
  %v3393 = vadd.f32 %v3389, %v1643
  %v3394 = vld [vmem:[%s6 + $0x9] sm:$0x1]
  %v3395 = vld [vmem:[%s6 + $0xa] sm:$0x1]
  %v3396 = vsel %vm55, %v3392, 0.0
  %3397 = vadd.xlane.f32.xlu0 %v3396
  %v3398 = vpop.xlane.xlu0 %3397
  %v3399 = vsel %vm55, %v3393, 0.0
  %3400 = vadd.xlane.f32.xlu0 %v3399
  %v3401 = vpop.xlane.xlu0 %3400
  %v3402 = vmul.f32 %v3398, %v62
  %v3403 = vmul.f32 %v3401, %v62
  %v3404 = vsub.f32 %v3392, %v3402
  %v3405 = vsub.f32 %v3393, %v3403
  %v3406 = vmul.f32 %v3404, %v3404
  %v3407 = vmul.f32 %v3405, %v3405
  %v3408 = vsel %vm55, %v3406, 0.0
  %3409 = vadd.xlane.f32.xlu0 %v3408
  %v3410 = vpop.xlane.xlu0 %3409
  %v3411 = vsel %vm55, %v3407, 0.0
  %3412 = vadd.xlane.f32.xlu0 %v3411
  %v3413 = vpop.xlane.xlu0 %3412
  %v3414 = vmul.f32 %v3410, %v62
  %v3415 = vmul.f32 %v3413, %v62
  %v3416 = vadd.f32 %v3414, 1e-06
  %v3417 = vadd.f32 %v3415, 1e-06
  %v3418 = vrsqrt.pop %v3416
  %v3419 = vrsqrt.pop %v3417
  %v3420 = vmul.f32 %v3404, %v3418
  %v3421 = vmul.f32 %v3405, %v3419
  %v3422 = vlaneseq
  %v3423 = vshrl.u32 %v3422, 7
  %v3424 = vsub.s32 0, %v3423
  %v3425 = vrot.slane %v3394, %v3424
  %v3426 = vmul.f32 %v3420, %v3425
  %v3427 = vmul.f32 %v3421, %v3425
  %v3428 = vlaneseq
  %v3429 = vshrl.u32 %v3428, 7
  %v3430 = vsub.s32 0, %v3429
  %v3431 = vrot.slane %v3395, %v3430
  %v3432 = vadd.f32 %v3426, %v3431
  %v3433 = vadd.f32 %v3427, %v3431
  %v3434 = vld [vmem:[%s4 + $0x10] sm:$0xff]
  %v3435 = vld [vmem:[%s4 + $0x28] sm:$0xff]
  %v3436 = vld [vmem:[%s4 + $0x40] sm:$0xff]
  %v3437 = vld [vmem:[%s4 + $0x58] sm:$0xff]
  %v3438 = vld [vmem:[%s6 + $0xb] sm:$0x1]
  %v3439 = vlaneseq
  %v3440 = vshrl.u32 %v3439, 7
  %v3441 = vsub.s32 0, %v3440
  %v3442 = vrot.slane %v3438, %v3441
  %v3444 = vsel %vm55, %v3432, 0
  %v3447 = vsel %vm55, %v3433, 0
  %3449 = vmatprep.subr.mxu0 0.0
  %3450 = vmatpush1.msra.mxu0 %v3434
  %3451 = vmatprep.subr.mxu0 0.0
  %3452 = vmatpush1.msra.mxu0 %v3435
  %3453 = vmatprep.subr.mxu0 0.0
  %3454 = vmatpush1.msra.mxu0 %v3436
  %3455 = vmatprep.subr.mxu0 0.0
  %3456 = vmatpush1.msra.mxu0 %v3437
  %3457 = vmatprep.subr.mxu0 0.0
  %3458 = vmatpush1.msra.mxu0 0.0
  %3459 = vmatprep.subr.mxu0 0.0
  %3460 = vmatpush1.msra.mxu0 0.0
  %3461 = vmatprep.subr.mxu0 0.0
  %3462 = vmatpush1.msra.mxu0 0.0
  %3463 = vmatprep.subr.mxu0 0.0
  %3464 = vmatpush1.msra.mxu0 0.0
  %3465 = vmatprep.subr.mxu0 0.0
  %3466 = vmatpush1.msra.mxu0 0.0
  %3467 = vmatprep.subr.mxu0 0.0
  %3468 = vmatpush1.msra.mxu0 0.0
  %3469 = vmatprep.subr.mxu0 0.0
  %3470 = vmatpush1.msra.mxu0 0.0
  %3471 = vmatprep.subr.mxu0 0.0
  %3472 = vmatpush1.msra.mxu0 0.0
  %3473 = vmatprep.subr.mxu0 0.0
  %3474 = vmatpush1.msra.mxu0 0.0
  %3475 = vmatprep.subr.mxu0 0.0
  %3476 = vmatpush1.msra.mxu0 0.0
  %3477 = vmatprep.subr.mxu0 0.0
  %3478 = vmatpush1.msra.mxu0 0.0
  %3479 = vmatprep.subr.mxu0 0.0
  %3480 = vmatpush1.msra.mxu0 0.0
  %3481 = vmatprep.subr.mxu0 0.0
  %3482 = vmatpush1.msra.mxu0 0.0
  %3483 = vmatprep.subr.mxu0 0.0
  %3484 = vmatpush1.msra.mxu0 0.0
  %3485 = vmatprep.subr.mxu0 0.0
  %3486 = vmatpush1.msra.mxu0 0.0
  %3487 = vmatprep.subr.mxu0 0.0
  %3488 = vmatpush1.msra.mxu0 0.0
  %3489 = vmatprep.subr.mxu0 0.0
  %3490 = vmatpush1.msra.mxu0 0.0
  %3491 = vmatprep.subr.mxu0 0.0
  %3492 = vmatpush1.msra.mxu0 0.0
  %3493 = vmatprep.subr.mxu0 0.0
  %3494 = vmatpush1.msra.mxu0 0.0
  %3495 = vmatprep.subr.mxu0 0.0
  %3496 = vmatpush1.msra.mxu0 0.0
  %3497 = vmatprep.subr.mxu0 0.0
  %3498 = vmatpush1.msra.mxu0 0.0
  %3499 = vmatprep.subr.mxu0 0.0
  %3500 = vmatpush1.msra.mxu0 0.0
  %3501 = vmatprep.subr.mxu0 0.0
  %3502 = vmatpush1.msra.mxu0 0.0
  %3503 = vmatprep.subr.mxu0 0.0
  %3504 = vmatpush1.msra.mxu0 0.0
  %3505 = vmatprep.subr.mxu0 0.0
  %3506 = vmatpush1.msra.mxu0 0.0
  %3507 = vmatprep.subr.mxu0 0.0
  %3508 = vmatpush1.msra.mxu0 0.0
  %3509 = vmatprep.subr.mxu0 0.0
  %3510 = vmatpush1.msra.mxu0 0.0
  %3511 = vmatprep.subr.mxu0 0.0
  %3512 = vmatpush1.msra.mxu0 0.0
  %3513 = vmatprep.mubr.f32.mxu0 0.0
  %3514 = vmatmul.mubr.f32.gmra.mrb[0].mxu0 %v3444
  %v3515 = vpop.f32.mrb[0].mxu0
  %v3516 = vadd.f32 %v3442, %v3515
  %v3517 = vpop.f32.mrb[0].mxu0
  %3518 = vmatprep.mubr.f32.mxu0 0.0
  %3519 = vmatmul.mubr.f32.gmra.mrb[0].mxu0 %v3447
  %v3520 = vpop.f32.mrb[0].mxu0
  %v3521 = vadd.f32 %v3442, %v3520
  %v3522 = vpop.f32.mrb[0].mxu0
  %3523 = vdwg.mxu0
  %v3524 = vmul.f32 %v3516, 0.5
  %v3525 = vmul.f32 %v3521, 0.5
  %v3526 = vmul.f32 %v3516, 0.044715
  %v3527 = vmul.f32 %v3521, 0.044715
  %v3528 = vmul.f32 %v3526, %v3516
  %v3529 = vmul.f32 %v3527, %v3521
  %v3530 = vmul.f32 %v3528, %v3516
  %v3531 = vmul.f32 %v3529, %v3521
  %v3532 = vadd.f32 %v3516, %v3530
  %v3533 = vadd.f32 %v3521, %v3531
  %v3534 = vmul.f32 %v3532, 0.7978845
  %v3535 = vmul.f32 %v3533, 0.7978845
  %v3536 = vtanh.pop %v3534
  %v3537 = vtanh.pop %v3535
  %v3538 = vadd.f32 %v3536, 1.0
  %v3539 = vadd.f32 %v3537, 1.0
  %v3540 = vmul.f32 %v3524, %v3538
  %v3541 = vmul.f32 %v3525, %v3539
  %v3542 = vld [vmem:[%s5] sm:$0xff]
  %v3543 = vld [vmem:[%s5 + $0x8] sm:$0xff]
  %v3544 = vld [vmem:[%s5 + $0x10] sm:$0xff]
  %v3545 = vld [vmem:[%s5 + $0x18] sm:$0xff]
  %v3546 = vld [vmem:[%s5 + $0x20] sm:$0xff]
  %v3547 = vld [vmem:[%s5 + $0x28] sm:$0xff]
  %v3548 = vld [vmem:[%s5 + $0x30] sm:$0xff]
  %v3549 = vld [vmem:[%s5 + $0x38] sm:$0xff]
  %v3550 = vld [vmem:[%s6 + $0xc] sm:$0x1]
  %v3551 = vlaneseq
  %v3552 = vshrl.u32 %v3551, 7
  %v3553 = vsub.s32 0, %v3552
  %v3554 = vrot.slane %v3550, %v3553
  %vm3555 = vcmask 523264
  %v3557 = vsel %vm3555, %v3540, 0
  %v3560 = vsel %vm3555, %v3541, 0
  %3562 = vmatprep.subr.mxu0 0.0
  %3563 = vmatpush1.msra.mxu0 %v3542
  %3564 = vmatprep.subr.mxu0 0.0
  %3565 = vmatpush1.msra.mxu0 %v3543
  %3566 = vmatprep.subr.mxu0 0.0
  %3567 = vmatpush1.msra.mxu0 %v3544
  %3568 = vmatprep.subr.mxu0 0.0
  %3569 = vmatpush1.msra.mxu0 %v3545
  %3570 = vmatprep.subr.mxu0 0.0
  %3571 = vmatpush1.msra.mxu0 %v3546
  %3572 = vmatprep.subr.mxu0 0.0
  %3573 = vmatpush1.msra.mxu0 %v3547
  %3574 = vmatprep.subr.mxu0 0.0
  %3575 = vmatpush1.msra.mxu0 %v3548
  %3576 = vmatprep.subr.mxu0 0.0
  %3577 = vmatpush1.msra.mxu0 %v3549
  %3578 = vmatprep.subr.mxu0 0.0
  %3579 = vmatpush1.msra.mxu0 0.0
  %3580 = vmatprep.subr.mxu0 0.0
  %3581 = vmatpush1.msra.mxu0 0.0
  %3582 = vmatprep.subr.mxu0 0.0
  %3583 = vmatpush1.msra.mxu0 0.0
  %3584 = vmatprep.subr.mxu0 0.0
  %3585 = vmatpush1.msra.mxu0 0.0
  %3586 = vmatprep.subr.mxu0 0.0
  %3587 = vmatpush1.msra.mxu0 0.0
  %3588 = vmatprep.subr.mxu0 0.0
  %3589 = vmatpush1.msra.mxu0 0.0
  %3590 = vmatprep.subr.mxu0 0.0
  %3591 = vmatpush1.msra.mxu0 0.0
  %3592 = vmatprep.subr.mxu0 0.0
  %3593 = vmatpush1.msra.mxu0 0.0
  %3594 = vmatprep.subr.mxu0 0.0
  %3595 = vmatpush1.msra.mxu0 0.0
  %3596 = vmatprep.subr.mxu0 0.0
  %3597 = vmatpush1.msra.mxu0 0.0
  %3598 = vmatprep.subr.mxu0 0.0
  %3599 = vmatpush1.msra.mxu0 0.0
  %3600 = vmatprep.subr.mxu0 0.0
  %3601 = vmatpush1.msra.mxu0 0.0
  %3602 = vmatprep.subr.mxu0 0.0
  %3603 = vmatpush1.msra.mxu0 0.0
  %3604 = vmatprep.subr.mxu0 0.0
  %3605 = vmatpush1.msra.mxu0 0.0
  %3606 = vmatprep.subr.mxu0 0.0
  %3607 = vmatpush1.msra.mxu0 0.0
  %3608 = vmatprep.subr.mxu0 0.0
  %3609 = vmatpush1.msra.mxu0 0.0
  %3610 = vmatprep.subr.mxu0 0.0
  %3611 = vmatpush1.msra.mxu0 0.0
  %3612 = vmatprep.subr.mxu0 0.0
  %3613 = vmatpush1.msra.mxu0 0.0
  %3614 = vmatprep.subr.mxu0 0.0
  %3615 = vmatpush1.msra.mxu0 0.0
  %3616 = vmatprep.subr.mxu0 0.0
  %3617 = vmatpush1.msra.mxu0 0.0
  %3618 = vmatprep.subr.mxu0 0.0
  %3619 = vmatpush1.msra.mxu0 0.0
  %3620 = vmatprep.subr.mxu0 0.0
  %3621 = vmatpush1.msra.mxu0 0.0
  %3622 = vmatprep.subr.mxu0 0.0
  %3623 = vmatpush1.msra.mxu0 0.0
  %3624 = vmatprep.subr.mxu0 0.0
  %3625 = vmatpush1.msra.mxu0 0.0
  %3626 = vmatprep.mubr.f32.mxu0 0.0
  %3627 = vmatmul.mubr.f32.gmra.mrb[0].mxu0 %v3557
  %v3628 = vpop.f32.mrb[0].mxu0
  %v3629 = vadd.f32 %v3554, %v3628
  %v3630 = vpop.f32.mrb[0].mxu0
  %3631 = vmatprep.mubr.f32.mxu0 0.0
  %3632 = vmatmul.mubr.f32.gmra.mrb[0].mxu0 %v3560
  %v3633 = vpop.f32.mrb[0].mxu0
  %v3634 = vadd.f32 %v3554, %v3633
  %v3635 = vpop.f32.mrb[0].mxu0
  %3636 = vdwg.mxu0
  %v3637 = vadd.f32 %v3629, %v3392
  %v3638 = vadd.f32 %v3634, %v3393
  %3639 = vrot.lane.b32.xlu0 %v93, 32
  %v3640 = vpop.permute.xlu0 %3639
  %3641 = vrot.lane.b32.xlu0 %v94, 32
  %v3642 = vpop.permute.xlu0 %3641
  %v3645 = vsel %vm55, %v3637, %v3640
  %v3646 = vsel %vm55, %v3638, %v3642
  %3647 = vst.msk [vmem:[%s7] sm:$0xff] %vm3555, %v3645
  %3648 = vst.msk [vmem:[%s7 + $0x8] sm:$0xff] %vm3555, %v3646
  // Predicated region
  $region30: #{transformer_decoder_layer.1} parent=0 // pred_check
    _
  $region31: #{transformer_decoder_layer.1} parent=0 // pred_check_branch
    %3650 = sbr.rel (0) target = $region33
  $region32: #{transformer_decoder_layer.1} parent=0 // pred_region
    _
  $region33: #{transformer_decoder_layer.1} parent=0 // pred_fallthru
    _
  // Predicated region
  $region34: #{transformer_decoder_layer.1} parent=0 // pred_check
    _
  $region35: #{transformer_decoder_layer.1} parent=0 // pred_check_branch
    %3652 = sbr.rel (0) target = $region37
  $region36: #{transformer_decoder_layer.1} parent=0 // pred_region
    _
  $region37: #{transformer_decoder_layer.1} parent=0 // pred_fallthru
    _

</llo_original>
